<compile_context>
chip_gen: v7x
topology: tpu7x:2x2x1
jax: 0.10.0
libtpu: 0.0.40
codegen_flags: <defaults>
</compile_context>

<pallas_src>
import numpy as np
import jax
import jax.numpy as jnp
from jax.experimental import pallas as pl
from jax.experimental.pallas import tpu as pltpu

# ---- problem sizes (module hard-codes 128 conv channels, 5x5 pool, 3200->1024 fc1) ----
N = 2                      # batch
IN_C = 4                   # in_channels
H = W = 16                 # input spatial
HW = H * W
OUT_C = 128                # ConvBlock output channels
POOL = 5                   # adaptive_avg_pool2d target (5, 5)
SP = POOL * POOL           # 25 pooled positions
FC1_IN = OUT_C * SP        # 3200
FC1_OUT = 1024
NUM_CLASSES = 10
PAD_CLASSES = 128          # lane-dense fc2 output width (sliced back to NUM_CLASSES in glue)
BN_EPS = 1e-5

TN = 256                   # fc1 output-column tile
NB = FC1_OUT // TN         # grid length (4)


def _adaptive_pool_matrix(h, w, oh, ow):
    """(h*w, oh*ow) matrix implementing F.adaptive_avg_pool2d bin semantics."""
    p = np.zeros((h * w, oh * ow), np.float32)
    for i in range(oh):
        h0, h1 = (i * h) // oh, -((-(i + 1) * h) // oh)
        for j in range(ow):
            w0, w1 = (j * w) // ow, -((-(j + 1) * w) // ow)
            cnt = float((h1 - h0) * (w1 - w0))
            for hh in range(h0, h1):
                for ww in range(w0, w1):
                    p[hh * w + ww, i * ow + j] = 1.0 / cnt
    return p


# hoisted module-level constant (no per-call Python triple loop)
_POOL_MAT = _adaptive_pool_matrix(H, W, POOL, POOL)          # (H*W, 25)


def auxiliary_kernel(x_ref, pt_ref, wc_ref, bns_ref, bnb_ref,
                     w1_ref, b1_ref, w2_ref, b2_ref, out_ref):
    # x_ref  : (N, H*W, IN_C) f32
    # pt_ref : (25, H*W)      f32   adaptive-avg-pool matrix (transposed)
    # wc_ref : (IN_C, 128)    f32   1x1 conv weight
    # bns/bnb: (1, 128)       f32   folded BN scale / (conv-bias + BN) bias
    # w1_ref : (3200, TN)     bf16  fc1 weight column tile ((spatial, channel) row order)
    # b1_ref : (1, TN)        f32   fc1 bias tile
    # w2_ref : (TN, 128)      bf16  fc2 weight tile (columns padded to 128)
    # b2_ref : (1, 128)       f32   fc2 bias (padded)
    # out_ref: (1, N, 128)    f32   fc2 partial sum for this column block
    pt = pt_ref[...]
    wc = wc_ref[...]
    bns = bns_ref[...]
    bnb = bnb_ref[...]

    # Front end (pool + 1x1 conv + fused BN + ReLU) is tiny; recomputed per grid step so
    # the column axis can stay 'parallel' (v7x megacore sharding) with no cross-step state.
    feats = []
    for n in range(N):                                            # tiny batch: unrolled
        x_n = x_ref[n]                                            # (H*W, IN_C)
        pooled = jnp.dot(pt, x_n, preferred_element_type=jnp.float32)    # (25, IN_C)
        conv = jnp.dot(pooled, wc, preferred_element_type=jnp.float32)   # (25, 128)
        feat = jnp.maximum(conv * bns + bnb, 0.0)                        # (25, 128)
        feats.append(feat.reshape(1, FC1_IN))                            # (s, c)-major flatten
    feat_flat = jnp.concatenate(feats, axis=0).astype(jnp.bfloat16)      # (N, 3200)

    # fc1 column block: one big matmul streaming this weight tile once, f32 accumulation.
    h1 = jnp.dot(feat_flat, w1_ref[...], preferred_element_type=jnp.float32)  # (N, TN)
    h1 = jnp.maximum(h1 + b1_ref[...], 0.0)
    # F.dropout(p=0.7, training=False) is the identity at inference.

    # fc2 partial contribution of this column block.
    partial = jnp.dot(h1.astype(jnp.bfloat16), w2_ref[...],
                      preferred_element_type=jnp.float32)                     # (N, 128)
    out_ref[0] = partial

    # Add the fc2 bias exactly once (on the last column block).
    @pl.when(pl.program_id(0) == pl.num_programs(0) - 1)
    def _():
        out_ref[0] = out_ref[0] + b2_ref[...]


def make_params(key):
    k = jax.random.split(key, 6)
    # ConvBlock: Conv2d(IN_C, 128, 1) [weight (128, IN_C, 1, 1), bias (128,)] + BatchNorm2d(128)
    conv_w = 0.05 * jax.random.normal(k[0], (OUT_C, IN_C, 1, 1), jnp.float32)
    conv_b = 0.05 * jax.random.normal(k[1], (OUT_C,), jnp.float32)
    gamma = jnp.ones((OUT_C,), jnp.float32)
    beta = jnp.zeros((OUT_C,), jnp.float32)
    run_mean = jnp.zeros((OUT_C,), jnp.float32)
    run_var = jnp.ones((OUT_C,), jnp.float32)
    # fc1 / fc2 (PyTorch layout: (out_features, in_features))
    fc1_w = 0.02 * jax.random.normal(k[2], (FC1_OUT, FC1_IN), jnp.float32)
    fc1_b = 0.02 * jax.random.normal(k[3], (FC1_OUT,), jnp.float32)
    fc2_w = 0.02 * jax.random.normal(k[4], (NUM_CLASSES, FC1_OUT), jnp.float32)
    fc2_b = 0.02 * jax.random.normal(k[5], (NUM_CLASSES,), jnp.float32)
    return dict(conv_w=conv_w, conv_b=conv_b, gamma=gamma, beta=beta,
                run_mean=run_mean, run_var=run_var,
                fc1_w=fc1_w, fc1_b=fc1_b, fc2_w=fc2_w, fc2_b=fc2_b)


def pack_params(p):
    wc = p["conv_w"].reshape(OUT_C, IN_C).T                       # (IN_C, 128)
    scale = p["gamma"] / jnp.sqrt(p["run_var"] + BN_EPS)          # (128,)
    bns = scale.reshape(1, OUT_C)
    bnb = (p["conv_b"] * scale + p["beta"] - p["run_mean"] * scale).reshape(1, OUT_C)
    # PyTorch flatten index = c*25 + s  ->  reorder fc1 rows to (s, c) to match the
    # kernel's (25, 128) row-major flatten; cast the 6.5 MB weight to bf16.
    w1 = (p["fc1_w"].T.reshape(OUT_C, SP, FC1_OUT)
          .transpose(1, 0, 2).reshape(FC1_IN, FC1_OUT)).astype(jnp.bfloat16)
    b1 = p["fc1_b"].reshape(1, FC1_OUT)
    # fc2: pad output columns to a lane-dense 128, cast to bf16.
    w2 = jnp.pad(p["fc2_w"].T, ((0, 0), (0, PAD_CLASSES - NUM_CLASSES))).astype(jnp.bfloat16)
    b2 = jnp.pad(p["fc2_b"].reshape(1, NUM_CLASSES),
                 ((0, 0), (0, PAD_CLASSES - NUM_CLASSES)))
    return wc, bns, bnb, w1, b1, w2, b2


def auxiliary_forward(x_nchw, params):
    n, c, h, w = x_nchw.shape
    x_flat = jnp.transpose(x_nchw, (0, 2, 3, 1)).reshape(n, h * w, c)   # (N, H*W, C)
    pt = jnp.asarray(_POOL_MAT.T)                                       # (25, H*W)
    wc, bns, bnb, w1, b1, w2, b2 = pack_params(params)

    partials = pl.pallas_call(
        auxiliary_kernel,
        out_shape=jax.ShapeDtypeStruct((NB, n, PAD_CLASSES), jnp.float32),
        grid=(NB,),
        in_specs=[
            pl.BlockSpec((n, h * w, c), lambda j: (0, 0, 0)),        # x (constant block)
            pl.BlockSpec((SP, h * w), lambda j: (0, 0)),             # pool matrix
            pl.BlockSpec((c, OUT_C), lambda j: (0, 0)),              # 1x1 conv weight
            pl.BlockSpec((1, OUT_C), lambda j: (0, 0)),              # BN scale
            pl.BlockSpec((1, OUT_C), lambda j: (0, 0)),              # BN bias
            pl.BlockSpec((FC1_IN, TN), lambda j: (0, j)),            # fc1 weight tile (bf16)
            pl.BlockSpec((1, TN), lambda j: (0, j)),                 # fc1 bias tile
            pl.BlockSpec((TN, PAD_CLASSES), lambda j: (j, 0)),       # fc2 weight tile (bf16)
            pl.BlockSpec((1, PAD_CLASSES), lambda j: (0, 0)),        # fc2 bias (padded)
        ],
        out_specs=pl.BlockSpec((1, n, PAD_CLASSES), lambda j: (j, 0, 0)),
        compiler_params=pltpu.CompilerParams(
            dimension_semantics=("parallel",)),
    )(x_flat, pt, wc, bns, bnb, w1, b1, w2, b2)

    # Sum the per-column-block fc2 partials and drop the lane padding.
    return jnp.sum(partials, axis=0)[:, :NUM_CLASSES]


def auxiliary_reference(x_nchw, params):
    """Pure-JAX reference following the PyTorch op order exactly (eval mode)."""
    n, c, h, w = x_nchw.shape
    pmat = jnp.asarray(_POOL_MAT)                                        # (H*W, 25)
    pooled = jnp.einsum("nck,ks->ncs", x_nchw.reshape(n, c, h * w), pmat)  # (N,C,25)
    conv_w = params["conv_w"].reshape(OUT_C, IN_C)
    y = jnp.einsum("oc,ncs->nos", conv_w, pooled) + params["conv_b"][None, :, None]
    scale = params["gamma"] / jnp.sqrt(params["run_var"] + BN_EPS)
    y = (y - params["run_mean"][None, :, None]) * scale[None, :, None] \
        + params["beta"][None, :, None]
    y = jnp.maximum(y, 0.0)
    flat = y.reshape(n, OUT_C * SP)                                      # c-major flatten
    h1 = jnp.maximum(flat @ params["fc1_w"].T + params["fc1_b"], 0.0)
    return h1 @ params["fc2_w"].T + params["fc2_b"]


if __name__ == "__main__":
    key = jax.random.PRNGKey(0)
    kx, kp = jax.random.split(key)
    x = jax.random.normal(kx, (N, IN_C, H, W), jnp.float32)
    params = make_params(kp)

    out = jax.block_until_ready(auxiliary_forward(x, params))
    ref = jax.block_until_ready(auxiliary_reference(x, params))

    assert out.shape == (N, NUM_CLASSES)
    assert bool(jnp.all(jnp.isfinite(out)))
    assert bool(jnp.allclose(out, ref, rtol=1e-2, atol=1e-2)), "mismatch vs reference"
    print("KERNEL_OK")
</pallas_src>

<mosaic_0001>
module attributes {stable_mosaic.version = 11 : i64} {
  func.func @auxiliary_kernel(%arg0: i32, %arg1: memref<2x256x4xf32, #tpu.memory_space<vmem>>, %arg2: memref<25x256xf32, #tpu.memory_space<vmem>>, %arg3: memref<4x128xf32, #tpu.memory_space<vmem>>, %arg4: memref<1x128xf32, #tpu.memory_space<vmem>>, %arg5: memref<1x128xf32, #tpu.memory_space<vmem>>, %arg6: memref<3200x256xbf16, #tpu.memory_space<vmem>>, %arg7: memref<1x256xf32, #tpu.memory_space<vmem>>, %arg8: memref<256x128xbf16, #tpu.memory_space<vmem>>, %arg9: memref<1x128xf32, #tpu.memory_space<vmem>>, %arg10: memref<1x2x128xf32, #tpu.memory_space<vmem>>) attributes {dimension_semantics = [#tpu.dimension_semantics<parallel>], iteration_bounds = array<i64: 4>, scalar_prefetch = 0 : i64, scratch_operands = 0 : i64, tpu.core_type = #tpu.core_type<tc>, window_params = [{pipeline_mode = #tpu.pipeline_mode<synchronous>, transform_indices = @transform_0, window_bounds = array<i64: 2, 256, 4>}, {pipeline_mode = #tpu.pipeline_mode<synchronous>, transform_indices = @transform_1, window_bounds = array<i64: 25, 256>}, {pipeline_mode = #tpu.pipeline_mode<synchronous>, transform_indices = @transform_2, window_bounds = array<i64: 4, 128>}, {pipeline_mode = #tpu.pipeline_mode<synchronous>, transform_indices = @transform_3, window_bounds = array<i64: 1, 128>}, {pipeline_mode = #tpu.pipeline_mode<synchronous>, transform_indices = @transform_4, window_bounds = array<i64: 1, 128>}, {transform_indices = @transform_5, window_bounds = array<i64: 3200, 256>}, {transform_indices = @transform_6, window_bounds = array<i64: 1, 256>}, {transform_indices = @transform_7, window_bounds = array<i64: 256, 128>}, {pipeline_mode = #tpu.pipeline_mode<synchronous>, transform_indices = @transform_8, window_bounds = array<i64: 1, 128>}, {transform_indices = @transform_9, window_bounds = array<i64: 1, 2, 128>}]} {
    %c0 = arith.constant 0 : index
    %c0_0 = arith.constant 0 : index
    %0 = vector.load %arg2[%c0, %c0_0] : memref<25x256xf32, #tpu.memory_space<vmem>>, vector<25x256xf32>
    %c0_1 = arith.constant 0 : index
    %c0_2 = arith.constant 0 : index
    %1 = vector.load %arg3[%c0_1, %c0_2] : memref<4x128xf32, #tpu.memory_space<vmem>>, vector<4x128xf32>
    %c0_3 = arith.constant 0 : index
    %c0_4 = arith.constant 0 : index
    %2 = vector.load %arg4[%c0_3, %c0_4] : memref<1x128xf32, #tpu.memory_space<vmem>>, vector<1x128xf32>
    %c0_5 = arith.constant 0 : index
    %c0_6 = arith.constant 0 : index
    %3 = vector.load %arg5[%c0_5, %c0_6] : memref<1x128xf32, #tpu.memory_space<vmem>>, vector<1x128xf32>
    %c0_7 = arith.constant 0 : index
    %c0_8 = arith.constant 0 : index
    %c0_9 = arith.constant 0 : index
    %4 = vector.load %arg1[%c0_7, %c0_8, %c0_9] : memref<2x256x4xf32, #tpu.memory_space<vmem>>, vector<1x256x4xf32>
    %5 = vector.shape_cast %4 : vector<1x256x4xf32> to vector<256x4xf32>
    %cst = arith.constant dense<0.000000e+00> : vector<25x4xf32>
    %6 = tpu.matmul %0, %5, %cst {dimension_numbers = #tpu.dot_dimension_numbers<[1], [0], [0], [1], [0, 0, 1, 1], [], []>} : vector<25x256xf32>, vector<256x4xf32>, vector<25x4xf32> -> vector<25x4xf32>
    %cst_10 = arith.constant dense<0.000000e+00> : vector<25x128xf32>
    %7 = tpu.matmul %6, %1, %cst_10 {dimension_numbers = #tpu.dot_dimension_numbers<[1], [0], [0], [1], [0, 0, 1, 1], [], []>} : vector<25x4xf32>, vector<4x128xf32>, vector<25x128xf32> -> vector<25x128xf32>
    %8 = vector.broadcast %2 : vector<1x128xf32> to vector<25x128xf32>
    %9 = arith.mulf %7, %8 : vector<25x128xf32>
    %10 = vector.broadcast %3 : vector<1x128xf32> to vector<25x128xf32>
    %11 = arith.addf %9, %10 : vector<25x128xf32>
    %cst_11 = arith.constant 0.000000e+00 : f32
    %12 = vector.broadcast %cst_11 : f32 to vector<25x128xf32>
    %13 = arith.maximumf %11, %12 : vector<25x128xf32>
    %14 = vector.shape_cast %13 : vector<25x128xf32> to vector<1x3200xf32>
    %c1 = arith.constant 1 : index
    %c0_12 = arith.constant 0 : index
    %c0_13 = arith.constant 0 : index
    %15 = vector.load %arg1[%c1, %c0_12, %c0_13] : memref<2x256x4xf32, #tpu.memory_space<vmem>>, vector<1x256x4xf32>
    %16 = vector.shape_cast %15 : vector<1x256x4xf32> to vector<256x4xf32>
    %cst_14 = arith.constant dense<0.000000e+00> : vector<25x4xf32>
    %17 = tpu.matmul %0, %16, %cst_14 {dimension_numbers = #tpu.dot_dimension_numbers<[1], [0], [0], [1], [0, 0, 1, 1], [], []>} : vector<25x256xf32>, vector<256x4xf32>, vector<25x4xf32> -> vector<25x4xf32>
    %cst_15 = arith.constant dense<0.000000e+00> : vector<25x128xf32>
    %18 = tpu.matmul %17, %1, %cst_15 {dimension_numbers = #tpu.dot_dimension_numbers<[1], [0], [0], [1], [0, 0, 1, 1], [], []>} : vector<25x4xf32>, vector<4x128xf32>, vector<25x128xf32> -> vector<25x128xf32>
    %19 = vector.broadcast %2 : vector<1x128xf32> to vector<25x128xf32>
    %20 = arith.mulf %18, %19 : vector<25x128xf32>
    %21 = vector.broadcast %3 : vector<1x128xf32> to vector<25x128xf32>
    %22 = arith.addf %20, %21 : vector<25x128xf32>
    %cst_16 = arith.constant 0.000000e+00 : f32
    %23 = vector.broadcast %cst_16 : f32 to vector<25x128xf32>
    %24 = arith.maximumf %22, %23 : vector<25x128xf32>
    %25 = vector.shape_cast %24 : vector<25x128xf32> to vector<1x3200xf32>
    %26 = tpu.concatenate %14, %25 in 0 : vector<1x3200xf32>, vector<1x3200xf32> -> vector<2x3200xf32>
    %27 = arith.truncf %26 : vector<2x3200xf32> to vector<2x3200xbf16>
    %c0_17 = arith.constant 0 : index
    %c0_18 = arith.constant 0 : index
    %28 = vector.load %arg6[%c0_17, %c0_18] : memref<3200x256xbf16, #tpu.memory_space<vmem>>, vector<3200x256xbf16>
    %cst_19 = arith.constant dense<0.000000e+00> : vector<2x256xf32>
    %29 = tpu.matmul %27, %28, %cst_19 {dimension_numbers = #tpu.dot_dimension_numbers<[1], [0], [0], [1], [0, 0, 1, 1], [], []>} : vector<2x3200xbf16>, vector<3200x256xbf16>, vector<2x256xf32> -> vector<2x256xf32>
    %c0_20 = arith.constant 0 : index
    %c0_21 = arith.constant 0 : index
    %30 = vector.load %arg7[%c0_20, %c0_21] : memref<1x256xf32, #tpu.memory_space<vmem>>, vector<1x256xf32>
    %31 = vector.broadcast %30 : vector<1x256xf32> to vector<2x256xf32>
    %32 = arith.addf %29, %31 : vector<2x256xf32>
    %cst_22 = arith.constant 0.000000e+00 : f32
    %33 = vector.broadcast %cst_22 : f32 to vector<2x256xf32>
    %34 = arith.maximumf %32, %33 : vector<2x256xf32>
    %35 = arith.truncf %34 : vector<2x256xf32> to vector<2x256xbf16>
    %c0_23 = arith.constant 0 : index
    %c0_24 = arith.constant 0 : index
    %36 = vector.load %arg8[%c0_23, %c0_24] : memref<256x128xbf16, #tpu.memory_space<vmem>>, vector<256x128xbf16>
    %cst_25 = arith.constant dense<0.000000e+00> : vector<2x128xf32>
    %37 = tpu.matmul %35, %36, %cst_25 {dimension_numbers = #tpu.dot_dimension_numbers<[1], [0], [0], [1], [0, 0, 1, 1], [], []>} : vector<2x256xbf16>, vector<256x128xbf16>, vector<2x128xf32> -> vector<2x128xf32>
    %c0_26 = arith.constant 0 : index
    %c0_27 = arith.constant 0 : index
    %c0_28 = arith.constant 0 : index
    %38 = vector.load %arg10[%c0_26, %c0_27, %c0_28] : memref<1x2x128xf32, #tpu.memory_space<vmem>>, vector<1x2x128xf32>
    %39 = vector.shape_cast %38 : vector<1x2x128xf32> to vector<2x128xf32>
    %40 = vector.shape_cast %37 : vector<2x128xf32> to vector<1x2x128xf32>
    tpu.vector_store %arg10[%c0_26, %c0_27, %c0_28], %40 {strides = array<i32>} : memref<1x2x128xf32, #tpu.memory_space<vmem>>, vector<1x2x128xf32>,
    %c3_i32 = arith.constant 3 : i32
    %41 = arith.cmpi eq, %arg0, %c3_i32 : i32
    %42 = arith.extui %41 : i1 to i32
    %c0_i32 = arith.constant 0 : i32
    %43 = arith.cmpi ne, %42, %c0_i32 : i32
    scf.if %43 {
      %c0_29 = arith.constant 0 : index
      %c0_30 = arith.constant 0 : index
      %c0_31 = arith.constant 0 : index
      %44 = vector.load %arg10[%c0_29, %c0_30, %c0_31] : memref<1x2x128xf32, #tpu.memory_space<vmem>>, vector<1x2x128xf32>
      %45 = vector.shape_cast %44 : vector<1x2x128xf32> to vector<2x128xf32>
      %c0_32 = arith.constant 0 : index
      %c0_33 = arith.constant 0 : index
      %46 = vector.load %arg9[%c0_32, %c0_33] : memref<1x128xf32, #tpu.memory_space<vmem>>, vector<1x128xf32>
      %47 = vector.broadcast %46 : vector<1x128xf32> to vector<2x128xf32>
      %48 = arith.addf %45, %47 : vector<2x128xf32>
      %c0_34 = arith.constant 0 : index
      %c0_35 = arith.constant 0 : index
      %c0_36 = arith.constant 0 : index
      %49 = vector.load %arg10[%c0_34, %c0_35, %c0_36] : memref<1x2x128xf32, #tpu.memory_space<vmem>>, vector<1x2x128xf32>
      %50 = vector.shape_cast %49 : vector<1x2x128xf32> to vector<2x128xf32>
      %51 = vector.shape_cast %48 : vector<2x128xf32> to vector<1x2x128xf32>
      tpu.vector_store %arg10[%c0_34, %c0_35, %c0_36], %51 {strides = array<i32>} : memref<1x2x128xf32, #tpu.memory_space<vmem>>, vector<1x2x128xf32>,
    } else {
    }
    return
  }
  func.func @transform_0(%arg0: i32) -> (i32, i32, i32) {
    %c0_i32 = arith.constant 0 : i32
    %c0_i32_0 = arith.constant 0 : i32
    %c0_i32_1 = arith.constant 0 : i32
    %c0_i32_2 = arith.constant 0 : i32
    return %c0_i32, %c0_i32_0, %c0_i32_1 : i32, i32, i32
  }
  func.func @transform_1(%arg0: i32) -> (i32, i32) {
    %c0_i32 = arith.constant 0 : i32
    %c0_i32_0 = arith.constant 0 : i32
    %c0_i32_1 = arith.constant 0 : i32
    return %c0_i32, %c0_i32_0 : i32, i32
  }
  func.func @transform_2(%arg0: i32) -> (i32, i32) {
    %c0_i32 = arith.constant 0 : i32
    %c0_i32_0 = arith.constant 0 : i32
    %c0_i32_1 = arith.constant 0 : i32
    return %c0_i32, %c0_i32_0 : i32, i32
  }
  func.func @transform_3(%arg0: i32) -> (i32, i32) {
    %c0_i32 = arith.constant 0 : i32
    %c0_i32_0 = arith.constant 0 : i32
    %c0_i32_1 = arith.constant 0 : i32
    return %c0_i32, %c0_i32_0 : i32, i32
  }
  func.func @transform_4(%arg0: i32) -> (i32, i32) {
    %c0_i32 = arith.constant 0 : i32
    %c0_i32_0 = arith.constant 0 : i32
    %c0_i32_1 = arith.constant 0 : i32
    return %c0_i32, %c0_i32_0 : i32, i32
  }
  func.func @transform_5(%arg0: i32) -> (i32, i32) {
    %c0_i32 = arith.constant 0 : i32
    %c0_i32_0 = arith.constant 0 : i32
    return %c0_i32, %arg0 : i32, i32
  }
  func.func @transform_6(%arg0: i32) -> (i32, i32) {
    %c0_i32 = arith.constant 0 : i32
    %c0_i32_0 = arith.constant 0 : i32
    return %c0_i32, %arg0 : i32, i32
  }
  func.func @transform_7(%arg0: i32) -> (i32, i32) {
    %c0_i32 = arith.constant 0 : i32
    %c0_i32_0 = arith.constant 0 : i32
    return %arg0, %c0_i32 : i32, i32
  }
  func.func @transform_8(%arg0: i32) -> (i32, i32) {
    %c0_i32 = arith.constant 0 : i32
    %c0_i32_0 = arith.constant 0 : i32
    %c0_i32_1 = arith.constant 0 : i32
    return %c0_i32, %c0_i32_0 : i32, i32
  }
  func.func @transform_9(%arg0: i32) -> (i32, i32, i32) {
    %c0_i32 = arith.constant 0 : i32
    %c0_i32_0 = arith.constant 0 : i32
    %c0_i32_1 = arith.constant 0 : i32
    return %arg0, %c0_i32, %c0_i32_0 : i32, i32, i32
  }
}

</mosaic_0001>

<llo_original>
// kernel: tpu_custom_call.1
$region0: #{tpu_custom_call.1}
  #allocation0 [shape = 'u32[]', space=smem, size = 0x4, offset = 0x4, fixed_abs, tag = 'smem constant byte address 0x4 - core index']
  #allocation1 [shape = 'u32[144,128]{1,0:T(1,128)}', space=vmem, size = 0x12000, scoped, tag = 'internal scratch']
  %s0 = inlined_call_operand.vmem [shape: f32[2,256,4], index: 0, kind: input, shape index: {}]
  %s1 = inlined_call_operand.hbm [shape: f32[25,256], index: 1, kind: input, shape index: {}]
  %s2 = inlined_call_operand.hbm [shape: f32[4,128], index: 2, kind: input, shape index: {}]
  %s3 = inlined_call_operand.hbm [shape: f32[1,128], index: 3, kind: input, shape index: {}]
  %s4 = inlined_call_operand.hbm [shape: f32[1,128], index: 4, kind: input, shape index: {}]
  %s5 = inlined_call_operand.hbm [shape: bf16[3200,1024], index: 5, kind: input, shape index: {}]
  %s6 = inlined_call_operand.hbm [shape: f32[1,1024], index: 6, kind: input, shape index: {}]
  %s7 = inlined_call_operand.hbm [shape: bf16[1024,128], index: 7, kind: input, shape index: {}]
  %s8 = inlined_call_operand.hbm [shape: f32[1,128], index: 8, kind: input, shape index: {}]
  %s9 = inlined_call_operand.hbm [shape: f32[4,2,128], index: 9, kind: output, shape index: {}]
  %s10 = sld [smem:[#allocation0]]
  $region105: #{tpu_custom_call.1} parent=0
    _
  %s12 = ssub.s32 1, %s10
  %s13 = scalar_select 0, %s12, %s10
  $region1: #{tpu_custom_call.1} parent=0
    #allocation2 [shape = 'u8[32768]{0}', space=vmem, size = 0x8000, scoped, tag = 'input window, operand 1, single buffered']
    #allocation3 [shape = 's32[2]{0}', space=sflag, size = 0x8, scoped, tag = 'scoped memory for tpu_custom_call.1']
    #allocation4 [shape = 's32[2]{0}', space=sflag, size = 0x8, scoped, tag = 'scoped memory for tpu_custom_call.1']
    #allocation5 [shape = 'u8[2048]{0}', space=vmem, size = 0x800, scoped, tag = 'input window, operand 2, single buffered']
    #allocation6 [shape = 's32[1]{0}', space=sflag, size = 0x4, scoped, tag = 'scoped memory for tpu_custom_call.1']
    #allocation7 [shape = 'u8[512]{0}', space=vmem, size = 0x400, scoped, tag = 'input window, operand 3, single buffered']
    #allocation8 [shape = 'u8[512]{0}', space=vmem, size = 0x400, scoped, tag = 'input window, operand 4, single buffered']
    #allocation9 [shape = 's32[1]{0}', space=sflag, size = 0x4, scoped, tag = 'scoped memory for tpu_custom_call.1']
    #allocation10 [shape = 'u8[3276800]{0}', space=vmem, size = 0x320000, scoped, tag = 'input window, operand 5']
    #allocation11 [shape = 'u8[2048]{0}', space=vmem, size = 0x800, scoped, tag = 'input window, operand 6']
    #allocation12 [shape = 'u8[131072]{0}', space=vmem, size = 0x20000, scoped, tag = 'input window, operand 7']
    #allocation13 [shape = 'u8[512]{0}', space=vmem, size = 0x400, scoped, tag = 'input window, operand 8, single buffered']
    #allocation14 [shape = 'u8[2048]{0}', space=vmem, size = 0x800, scoped, tag = 'output window, operand 0']
    %14 = vsyncpa [#allocation3], 0
    %15 = vsyncpa [#allocation6], 0
    %16 = vsyncpa [#allocation9], 0
    %17 = vsyncpa [#allocation4], 0
    %s18 = scalar_lea.sflag [#allocation4], 1
    %19 = vsyncpa %s18, 0
    loop: start=0, step=1, limit=6
    $region2: #{tpu_custom_call.1} parent=1 // loop_pre_header
      _
    $region3: #{tpu_custom_call.1} parent=1 // loop_header
      %s21 = sphi 0, %s25
      %p22 = scmp.ge.s32.totalorder %s21, 6
      %s29 = sphi 0, %s29
      %s31 = sphi 0, %s29
      %s32 = sphi 0, %s31
      %s46 = sphi 0, %s32
      %s50 = sphi 0, %s50
      %s52 = sphi 0, %s50
      %s53 = sphi 0, %s52
      %s67 = sphi 0, %s53
      %s71 = sphi 0, %s71
      %s73 = sphi 0, %s71
      %s74 = sphi 0, %s73
      %s88 = sphi 0, %s74
      %s92 = sphi 0, %s92
      %s94 = sphi 0, %s92
      %s95 = sphi 0, %s94
      %s109 = sphi 0, %s95
      %s113 = sphi 0, %s113
      %s115 = sphi 0, %s113
      %s116 = sphi 0, %s115
      %s130 = sphi 0, %s116
      %s136 = sphi 0, %s138
      %s139 = sphi 0, %s136
      %s140 = sphi 0, %s139
      %s156 = sphi 0, %s140
      %s162 = sphi 0, %s164
      %s165 = sphi 0, %s162
      %s166 = sphi 0, %s165
      %s182 = sphi 0, %s166
      %s188 = sphi 0, %s190
      %s191 = sphi 0, %s188
      %s192 = sphi 0, %s191
      %s208 = sphi 0, %s192
      %s212 = sphi 0, %s212
      %s214 = sphi 0, %s212
      %s215 = sphi 0, %s214
      %s229 = sphi 0, %s215
      %s235 = sphi 0, %s237
      %s238 = sphi 0, %s235
      %s239 = sphi 0, %s238
      %s255 = sphi 0, %s239
    $region4: #{tpu_custom_call.1} parent=1 // loop_header_branch
      %24 = sbr.rel (%p22) target = $region8
    $region5: #{tpu_custom_call.1} parent=1 // loop_body
      %s26 = ssub.s32 %s21, 1
      %s27 = ssub.s32 %s21, 2
      %s28 = sadd.s32 %s21, 1
      %s30 = sadd.s32 %s29, 1
      %p33 = scmp.eq.s32.totalorder %s21, 3
      %p34 = scmp.ne.s32.totalorder %s29, %s31
      %p35 = scmp.eq.s32.totalorder %s21, 0
      %p36 = por %p34, %p35
      %p37 = scmp.ne.s32.totalorder %s29, %s31
      %p38 = scmp.eq.s32.totalorder %s26, 3
      %p39 = por %p37, %p38
      %p40 = scmp.ne.s32.totalorder %s31, %s32
      %p41 = scmp.eq.s32.totalorder %s26, 0
      %p42 = por %p40, %p41
      %p43 = scmp.ne.s32.totalorder %s31, %s32
      %p44 = scmp.eq.s32.totalorder %s27, 3
      %p45 = por %p43, %p44
      %p47 = scmp.ne.s32.totalorder %s32, %s46
      %p48 = scmp.eq.s32.totalorder %s27, 0
      %p49 = por %p47, %p48
      %s51 = sadd.s32 %s50, 1
      %p54 = scmp.eq.s32.totalorder %s21, 3
      %p55 = scmp.ne.s32.totalorder %s50, %s52
      %p56 = scmp.eq.s32.totalorder %s21, 0
      %p57 = por %p55, %p56
      %p58 = scmp.ne.s32.totalorder %s50, %s52
      %p59 = scmp.eq.s32.totalorder %s26, 3
      %p60 = por %p58, %p59
      %p61 = scmp.ne.s32.totalorder %s52, %s53
      %p62 = scmp.eq.s32.totalorder %s26, 0
      %p63 = por %p61, %p62
      %p64 = scmp.ne.s32.totalorder %s52, %s53
      %p65 = scmp.eq.s32.totalorder %s27, 3
      %p66 = por %p64, %p65
      %p68 = scmp.ne.s32.totalorder %s53, %s67
      %p69 = scmp.eq.s32.totalorder %s27, 0
      %p70 = por %p68, %p69
      %s72 = sadd.s32 %s71, 1
      %p75 = scmp.eq.s32.totalorder %s21, 3
      %p76 = scmp.ne.s32.totalorder %s71, %s73
      %p77 = scmp.eq.s32.totalorder %s21, 0
      %p78 = por %p76, %p77
      %p79 = scmp.ne.s32.totalorder %s71, %s73
      %p80 = scmp.eq.s32.totalorder %s26, 3
      %p81 = por %p79, %p80
      %p82 = scmp.ne.s32.totalorder %s73, %s74
      %p83 = scmp.eq.s32.totalorder %s26, 0
      %p84 = por %p82, %p83
      %p85 = scmp.ne.s32.totalorder %s73, %s74
      %p86 = scmp.eq.s32.totalorder %s27, 3
      %p87 = por %p85, %p86
      %p89 = scmp.ne.s32.totalorder %s74, %s88
      %p90 = scmp.eq.s32.totalorder %s27, 0
      %p91 = por %p89, %p90
      %s93 = sadd.s32 %s92, 1
      %p96 = scmp.eq.s32.totalorder %s21, 3
      %p97 = scmp.ne.s32.totalorder %s92, %s94
      %p98 = scmp.eq.s32.totalorder %s21, 0
      %p99 = por %p97, %p98
      %p100 = scmp.ne.s32.totalorder %s92, %s94
      %p101 = scmp.eq.s32.totalorder %s26, 3
      %p102 = por %p100, %p101
      %p103 = scmp.ne.s32.totalorder %s94, %s95
      %p104 = scmp.eq.s32.totalorder %s26, 0
      %p105 = por %p103, %p104
      %p106 = scmp.ne.s32.totalorder %s94, %s95
      %p107 = scmp.eq.s32.totalorder %s27, 3
      %p108 = por %p106, %p107
      %p110 = scmp.ne.s32.totalorder %s95, %s109
      %p111 = scmp.eq.s32.totalorder %s27, 0
      %p112 = por %p110, %p111
      %s114 = sadd.s32 %s113, 1
      %p117 = scmp.eq.s32.totalorder %s21, 3
      %p118 = scmp.ne.s32.totalorder %s113, %s115
      %p119 = scmp.eq.s32.totalorder %s21, 0
      %p120 = por %p118, %p119
      %p121 = scmp.ne.s32.totalorder %s113, %s115
      %p122 = scmp.eq.s32.totalorder %s26, 3
      %p123 = por %p121, %p122
      %p124 = scmp.ne.s32.totalorder %s115, %s116
      %p125 = scmp.eq.s32.totalorder %s26, 0
      %p126 = por %p124, %p125
      %p127 = scmp.ne.s32.totalorder %s115, %s116
      %p128 = scmp.eq.s32.totalorder %s27, 3
      %p129 = por %p127, %p128
      %p131 = scmp.ne.s32.totalorder %s116, %s130
      %p132 = scmp.eq.s32.totalorder %s27, 0
      %p133 = por %p131, %p132
      %s134 = ssub.s32 %s21, %s28
      %p135 = scmp.eq.s32.totalorder %s134, 0
      %s137 = sadd.s32 %s136, 1
      %s138 = scalar_select %p135, %s136, %s137
      %p141 = pneg %p135
      %p142 = scmp.eq.s32.totalorder %s21, 3
      %p143 = por %p141, %p142
      %p144 = scmp.ne.s32.totalorder %s136, %s139
      %p145 = scmp.eq.s32.totalorder %s21, 0
      %p146 = por %p144, %p145
      %p147 = scmp.ne.s32.totalorder %s136, %s139
      %p148 = scmp.eq.s32.totalorder %s26, 3
      %p149 = por %p147, %p148
      %p150 = scmp.ne.s32.totalorder %s139, %s140
      %p151 = scmp.eq.s32.totalorder %s26, 0
      %p152 = por %p150, %p151
      %p153 = scmp.ne.s32.totalorder %s139, %s140
      %p154 = scmp.eq.s32.totalorder %s27, 3
      %p155 = por %p153, %p154
      %p157 = scmp.ne.s32.totalorder %s140, %s156
      %p158 = scmp.eq.s32.totalorder %s27, 0
      %p159 = por %p157, %p158
      %s160 = ssub.s32 %s21, %s28
      %p161 = scmp.eq.s32.totalorder %s160, 0
      %s163 = sadd.s32 %s162, 1
      %s164 = scalar_select %p161, %s162, %s163
      %p167 = pneg %p161
      %p168 = scmp.eq.s32.totalorder %s21, 3
      %p169 = por %p167, %p168
      %p170 = scmp.ne.s32.totalorder %s162, %s165
      %p171 = scmp.eq.s32.totalorder %s21, 0
      %p172 = por %p170, %p171
      %p173 = scmp.ne.s32.totalorder %s162, %s165
      %p174 = scmp.eq.s32.totalorder %s26, 3
      %p175 = por %p173, %p174
      %p176 = scmp.ne.s32.totalorder %s165, %s166
      %p177 = scmp.eq.s32.totalorder %s26, 0
      %p178 = por %p176, %p177
      %p179 = scmp.ne.s32.totalorder %s165, %s166
      %p180 = scmp.eq.s32.totalorder %s27, 3
      %p181 = por %p179, %p180
      %p183 = scmp.ne.s32.totalorder %s166, %s182
      %p184 = scmp.eq.s32.totalorder %s27, 0
      %p185 = por %p183, %p184
      %s186 = ssub.s32 %s21, %s28
      %p187 = scmp.eq.s32.totalorder %s186, 0
      %s189 = sadd.s32 %s188, 1
      %s190 = scalar_select %p187, %s188, %s189
      %p193 = pneg %p187
      %p194 = scmp.eq.s32.totalorder %s21, 3
      %p195 = por %p193, %p194
      %p196 = scmp.ne.s32.totalorder %s188, %s191
      %p197 = scmp.eq.s32.totalorder %s21, 0
      %p198 = por %p196, %p197
      %p199 = scmp.ne.s32.totalorder %s188, %s191
      %p200 = scmp.eq.s32.totalorder %s26, 3
      %p201 = por %p199, %p200
      %p202 = scmp.ne.s32.totalorder %s191, %s192
      %p203 = scmp.eq.s32.totalorder %s26, 0
      %p204 = por %p202, %p203
      %p205 = scmp.ne.s32.totalorder %s191, %s192
      %p206 = scmp.eq.s32.totalorder %s27, 3
      %p207 = por %p205, %p206
      %p209 = scmp.ne.s32.totalorder %s192, %s208
      %p210 = scmp.eq.s32.totalorder %s27, 0
      %p211 = por %p209, %p210
      %s213 = sadd.s32 %s212, 1
      %p216 = scmp.eq.s32.totalorder %s21, 3
      %p217 = scmp.ne.s32.totalorder %s212, %s214
      %p218 = scmp.eq.s32.totalorder %s21, 0
      %p219 = por %p217, %p218
      %p220 = scmp.ne.s32.totalorder %s212, %s214
      %p221 = scmp.eq.s32.totalorder %s26, 3
      %p222 = por %p220, %p221
      %p223 = scmp.ne.s32.totalorder %s214, %s215
      %p224 = scmp.eq.s32.totalorder %s26, 0
      %p225 = por %p223, %p224
      %p226 = scmp.ne.s32.totalorder %s214, %s215
      %p227 = scmp.eq.s32.totalorder %s27, 3
      %p228 = por %p226, %p227
      %p230 = scmp.ne.s32.totalorder %s215, %s229
      %p231 = scmp.eq.s32.totalorder %s27, 0
      %p232 = por %p230, %p231
      %s233 = ssub.s32 %s21, %s28
      %p234 = scmp.eq.s32.totalorder %s233, 0
      %s236 = sadd.s32 %s235, 1
      %s237 = scalar_select %p234, %s235, %s236
      %p240 = pneg %p234
      %p241 = scmp.eq.s32.totalorder %s21, 3
      %p242 = por %p240, %p241
      %p243 = scmp.ne.s32.totalorder %s235, %s238
      %p244 = scmp.eq.s32.totalorder %s21, 0
      %p245 = por %p243, %p244
      %p246 = scmp.ne.s32.totalorder %s235, %s238
      %p247 = scmp.eq.s32.totalorder %s26, 3
      %p248 = por %p246, %p247
      %p249 = scmp.ne.s32.totalorder %s238, %s239
      %p250 = scmp.eq.s32.totalorder %s26, 0
      %p251 = por %p249, %p250
      %p252 = scmp.ne.s32.totalorder %s238, %s239
      %p253 = scmp.eq.s32.totalorder %s27, 3
      %p254 = por %p252, %p253
      %p256 = scmp.ne.s32.totalorder %s239, %s255
      %p257 = scmp.eq.s32.totalorder %s27, 0
      %p258 = por %p256, %p257
      %p259 = scmp.le.s32.totalorder 1, %s21
      %p260 = scmp.lt.s32.totalorder %s21, 5
      %p261 = pnand %p259, %p260
      %p262 = pneg %p261
      // Predicated region
      $region9: #{tpu_custom_call.1} parent=5 // pred_check
        _
      $region10: #{tpu_custom_call.1} parent=5 // pred_check_branch
        %264 = sbr.rel (%p261) target = $region12
      $region11: #{tpu_custom_call.1} parent=5 // pred_region
        %s265 = ssub.s32 %s21, 1
        // Predicated region
        $region13: #{tpu_custom_call.1} parent=11 // pred_check
          %p266 = pneg %p42
        $region14: #{tpu_custom_call.1} parent=11 // pred_check_branch
          %268 = sbr.rel (%p266) target = $region16
        $region15: #{tpu_custom_call.1} parent=11 // pred_region
          _
        $region16: #{tpu_custom_call.1} parent=11 // pred_fallthru
          _
        // Predicated region
        $region17: #{tpu_custom_call.1} parent=11 // pred_check
          %p269 = pneg %p63
        $region18: #{tpu_custom_call.1} parent=11 // pred_check_branch
          %271 = sbr.rel (%p269) target = $region20
        $region19: #{tpu_custom_call.1} parent=11 // pred_region
          %s273 = ssub.s32 1024, 1024
          %274 = vsyncadd [#allocation3], %s273
          %s275 = sshll.u32 [#allocation2], 4
          %s276 = int_to_ptr.vmem [resolvable:$true] %s275
          %281 = dma.hbm_to_vmem [thread:$0]  %s1, 1024, %s276, [#allocation3], 256, 256, 16
        $region20: #{tpu_custom_call.1} parent=11 // pred_fallthru
          _
        // Predicated region
        $region21: #{tpu_custom_call.1} parent=11 // pred_check
          %p282 = pneg %p84
        $region22: #{tpu_custom_call.1} parent=11 // pred_check_branch
          %284 = sbr.rel (%p282) target = $region24
        $region23: #{tpu_custom_call.1} parent=11 // pred_region
          %s286 = ssub.s32 64, 64
          %287 = vsyncadd [#allocation6], %s286
          %s289 = sshll.u32 [#allocation5], 4
          %s290 = int_to_ptr.vmem [resolvable:$true] %s289
          %292 = dma.hbm_to_vmem [thread:$0]  %s2, 64, %s290, [#allocation6]
        $region24: #{tpu_custom_call.1} parent=11 // pred_fallthru
          _
        // Predicated region
        $region25: #{tpu_custom_call.1} parent=11 // pred_check
          %p293 = pneg %p105
        $region26: #{tpu_custom_call.1} parent=11 // pred_check_branch
          %295 = sbr.rel (%p293) target = $region28
        $region27: #{tpu_custom_call.1} parent=11 // pred_region
          %s297 = ssub.s32 16, 16
          %298 = vsyncadd [#allocation6], %s297
          %s300 = sshll.u32 [#allocation7], 4
          %s301 = int_to_ptr.vmem [resolvable:$true] %s300
          %303 = dma.hbm_to_vmem [thread:$0]  %s3, 16, %s301, [#allocation6]
        $region28: #{tpu_custom_call.1} parent=11 // pred_fallthru
          _
        // Predicated region
        $region29: #{tpu_custom_call.1} parent=11 // pred_check
          %p304 = pneg %p126
        $region30: #{tpu_custom_call.1} parent=11 // pred_check_branch
          %306 = sbr.rel (%p304) target = $region32
        $region31: #{tpu_custom_call.1} parent=11 // pred_region
          %s308 = ssub.s32 16, 16
          %309 = vsyncadd [#allocation9], %s308
          %s311 = sshll.u32 [#allocation8], 4
          %s312 = int_to_ptr.vmem [resolvable:$true] %s311
          %314 = dma.hbm_to_vmem [thread:$0]  %s4, 16, %s312, [#allocation9]
        $region32: #{tpu_custom_call.1} parent=11 // pred_fallthru
          _
        // Predicated region
        $region33: #{tpu_custom_call.1} parent=11 // pred_check
          %p315 = pneg %p225
        $region34: #{tpu_custom_call.1} parent=11 // pred_check_branch
          %317 = sbr.rel (%p315) target = $region36
        $region35: #{tpu_custom_call.1} parent=11 // pred_region
          %s319 = ssub.s32 16, 16
          %320 = vsyncadd [#allocation6], %s319
          %s322 = sshll.u32 [#allocation13], 4
          %s323 = int_to_ptr.vmem [resolvable:$true] %s322
          %325 = dma.hbm_to_vmem [thread:$0]  %s8, 16, %s323, [#allocation6]
        $region36: #{tpu_custom_call.1} parent=11 // pred_fallthru
          _
      $region12: #{tpu_custom_call.1} parent=5 // pred_fallthru
        _
      %p326 = scmp.lt.s32.totalorder %s21, 4
      // Predicated region
      $region37: #{tpu_custom_call.1} parent=5 // pred_check
        %p327 = pneg %p326
      $region38: #{tpu_custom_call.1} parent=5 // pred_check_branch
        %329 = sbr.rel (%p327) target = $region40
      $region39: #{tpu_custom_call.1} parent=5 // pred_region
        // Predicated region
        $region41: #{tpu_custom_call.1} parent=39 // pred_check
          %p330 = pneg %p146
        $region42: #{tpu_custom_call.1} parent=39 // pred_check_branch
          %332 = sbr.rel (%p330) target = $region44
        $region43: #{tpu_custom_call.1} parent=39 // pred_region
          %s333 = sand.u32 %s21, 1
          %s334 = scalar_lea.sflag [#allocation3], %s333
          %s335 = sand.u32 %s136, 1
          %s336 = smul.addr %s335, 3200
          %s337 = scalar_lea.vmem [#allocation10], %s336
          %s338 = smul.u32 2, %s21
          %s340 = ssub.s32 51200, 51200
          %341 = vsyncadd %s334, %s340
          %s342 = smul.addr %s338, 64
          %s343 = scalar_lea.hbm %s5, %s342
          %s344 = sshll.u32 %s337, 4
          %s345 = int_to_ptr.vmem [resolvable:$true] %s344
          %350 = dma.hbm_to_vmem [thread:$0]  %s343, 51200, %s345, %s334, 512, 128, 8
        $region44: #{tpu_custom_call.1} parent=39 // pred_fallthru
          _
        // Predicated region
        $region45: #{tpu_custom_call.1} parent=39 // pred_check
          %p351 = pneg %p172
        $region46: #{tpu_custom_call.1} parent=39 // pred_check_branch
          %353 = sbr.rel (%p351) target = $region48
        $region47: #{tpu_custom_call.1} parent=39 // pred_region
          %s354 = sand.u32 %s21, 1
          %s355 = scalar_lea.sflag [#allocation3], %s354
          %s356 = sand.u32 %s162, 1
          %s357 = smul.addr %s356, 2
          %s358 = scalar_lea.vmem [#allocation11], %s357
          %s359 = smul.u32 2, %s21
          %s361 = ssub.s32 32, 32
          %362 = vsyncadd %s355, %s361
          %s363 = smul.addr %s359, 16
          %s364 = scalar_lea.hbm %s6, %s363
          %s366 = sshll.u32 %s358, 4
          %s367 = int_to_ptr.vmem [resolvable:$true] %s366
          %369 = dma.hbm_to_vmem [thread:$0]  %s364, 32, %s367, %s355
        $region48: #{tpu_custom_call.1} parent=39 // pred_fallthru
          _
        // Predicated region
        $region49: #{tpu_custom_call.1} parent=39 // pred_check
          %p370 = pneg %p198
        $region50: #{tpu_custom_call.1} parent=39 // pred_check_branch
          %372 = sbr.rel (%p370) target = $region52
        $region51: #{tpu_custom_call.1} parent=39 // pred_region
          %s373 = sand.u32 %s21, 1
          %s374 = scalar_lea.sflag [#allocation3], %s373
          %s375 = sand.u32 %s188, 1
          %s376 = smul.addr %s375, 128
          %s377 = scalar_lea.vmem [#allocation12], %s376
          %s378 = smul.u32 32, %s21
          %s380 = ssub.s32 2048, 2048
          %381 = vsyncadd %s374, %s380
          %s382 = smul.addr %s378, 64
          %s383 = scalar_lea.hbm %s7, %s382
          %s384 = sshll.u32 %s377, 4
          %s385 = int_to_ptr.vmem [resolvable:$true] %s384
          %390 = dma.hbm_to_vmem [thread:$0]  %s383, 2048, %s385, %s374, 64, 64, 4
        $region52: #{tpu_custom_call.1} parent=39 // pred_fallthru
          _
      $region40: #{tpu_custom_call.1} parent=5 // pred_fallthru
        _
      %p391 = scmp.le.s32.totalorder 1, %s21
      %p392 = scmp.lt.s32.totalorder %s21, 5
      %p393 = pnand %p391, %p392
      %p394 = pneg %p393
      // Predicated region
      $region53: #{tpu_custom_call.1} parent=5 // pred_check
        _
      $region54: #{tpu_custom_call.1} parent=5 // pred_check_branch
        %396 = sbr.rel (%p393) target = $region56
      $region55: #{tpu_custom_call.1} parent=5 // pred_region
        %s397 = ssub.s32 %s21, 1
        // Predicated region
        $region57: #{tpu_custom_call.1} parent=55 // pred_check
          %p398 = pneg %p63
        $region58: #{tpu_custom_call.1} parent=55 // pred_check_branch
          %400 = sbr.rel (%p398) target = $region60
        $region59: #{tpu_custom_call.1} parent=55 // pred_region
          %401 = dma.done [#allocation3], 1024
        $region60: #{tpu_custom_call.1} parent=55 // pred_fallthru
          _
        // Predicated region
        $region61: #{tpu_custom_call.1} parent=55 // pred_check
          %p402 = pneg %p84
        $region62: #{tpu_custom_call.1} parent=55 // pred_check_branch
          %404 = sbr.rel (%p402) target = $region64
        $region63: #{tpu_custom_call.1} parent=55 // pred_region
          %405 = dma.done [#allocation6], 64
        $region64: #{tpu_custom_call.1} parent=55 // pred_fallthru
          _
        // Predicated region
        $region65: #{tpu_custom_call.1} parent=55 // pred_check
          %p406 = pneg %p105
        $region66: #{tpu_custom_call.1} parent=55 // pred_check_branch
          %408 = sbr.rel (%p406) target = $region68
        $region67: #{tpu_custom_call.1} parent=55 // pred_region
          %409 = dma.done [#allocation6], 16
        $region68: #{tpu_custom_call.1} parent=55 // pred_fallthru
          _
        // Predicated region
        $region69: #{tpu_custom_call.1} parent=55 // pred_check
          %p410 = pneg %p126
        $region70: #{tpu_custom_call.1} parent=55 // pred_check_branch
          %412 = sbr.rel (%p410) target = $region72
        $region71: #{tpu_custom_call.1} parent=55 // pred_region
          %413 = dma.done [#allocation9], 16
        $region72: #{tpu_custom_call.1} parent=55 // pred_fallthru
          _
        %s414 = sand.u32 %s26, 1
        %s415 = scalar_lea.sflag [#allocation3], %s414
        %s416 = sand.u32 %s139, 1
        %s417 = smul.addr %s416, 3200
        %s418 = scalar_lea.vmem [#allocation10], %s417
        // Predicated region
        $region73: #{tpu_custom_call.1} parent=55 // pred_check
          %p419 = pneg %p152
        $region74: #{tpu_custom_call.1} parent=55 // pred_check_branch
          %421 = sbr.rel (%p419) target = $region76
        $region75: #{tpu_custom_call.1} parent=55 // pred_region
          %422 = dma.done %s415, 51200
        $region76: #{tpu_custom_call.1} parent=55 // pred_fallthru
          _
        %s423 = sand.u32 %s26, 1
        %s424 = scalar_lea.sflag [#allocation3], %s423
        %s425 = sand.u32 %s165, 1
        %s426 = smul.addr %s425, 2
        %s427 = scalar_lea.vmem [#allocation11], %s426
        // Predicated region
        $region77: #{tpu_custom_call.1} parent=55 // pred_check
          %p428 = pneg %p178
        $region78: #{tpu_custom_call.1} parent=55 // pred_check_branch
          %430 = sbr.rel (%p428) target = $region80
        $region79: #{tpu_custom_call.1} parent=55 // pred_region
          %431 = dma.done %s424, 32
        $region80: #{tpu_custom_call.1} parent=55 // pred_fallthru
          _
        %s432 = sand.u32 %s26, 1
        %s433 = scalar_lea.sflag [#allocation3], %s432
        %s434 = sand.u32 %s191, 1
        %s435 = smul.addr %s434, 128
        %s436 = scalar_lea.vmem [#allocation12], %s435
        // Predicated region
        $region81: #{tpu_custom_call.1} parent=55 // pred_check
          %p437 = pneg %p204
        $region82: #{tpu_custom_call.1} parent=55 // pred_check_branch
          %439 = sbr.rel (%p437) target = $region84
        $region83: #{tpu_custom_call.1} parent=55 // pred_region
          %440 = dma.done %s433, 2048
        $region84: #{tpu_custom_call.1} parent=55 // pred_fallthru
          _
        // Predicated region
        $region85: #{tpu_custom_call.1} parent=55 // pred_check
          %p441 = pneg %p225
        $region86: #{tpu_custom_call.1} parent=55 // pred_check_branch
          %443 = sbr.rel (%p441) target = $region88
        $region87: #{tpu_custom_call.1} parent=55 // pred_region
          %444 = dma.done [#allocation6], 16
        $region88: #{tpu_custom_call.1} parent=55 // pred_fallthru
          _
        %p445 = pneg %p42
        %p446 = pneg %p39
        %p447 = pneg %p63
        %p448 = pneg %p60
        %p449 = pneg %p84
        %p450 = pneg %p81
        %p451 = pneg %p105
        %p452 = pneg %p102
        %p453 = pneg %p126
        %p454 = pneg %p123
        %s455 = sand.u32 %s26, 1
        %s456 = scalar_lea.sflag [#allocation3], %s455
        %s457 = sand.u32 %s139, 1
        %s458 = smul.addr %s457, 3200
        %s459 = scalar_lea.vmem [#allocation10], %s458
        %p460 = pneg %p152
        %p461 = pneg %p149
        %s462 = sand.u32 %s26, 1
        %s463 = scalar_lea.sflag [#allocation3], %s462
        %s464 = sand.u32 %s165, 1
        %s465 = smul.addr %s464, 2
        %s466 = scalar_lea.vmem [#allocation11], %s465
        %p467 = pneg %p178
        %p468 = pneg %p175
        %s469 = sand.u32 %s26, 1
        %s470 = scalar_lea.sflag [#allocation3], %s469
        %s471 = sand.u32 %s191, 1
        %s472 = smul.addr %s471, 128
        %s473 = scalar_lea.vmem [#allocation12], %s472
        %p474 = pneg %p204
        %p475 = pneg %p201
        %p476 = pneg %p225
        %p477 = pneg %p222
        %p478 = pneg %p251
        %p479 = pneg %p248
        %s480 = sand.u32 %s238, 1
        %s481 = scalar_lea.sflag [#allocation4], %s480
        %s482 = sand.u32 %s238, 1
        %s483 = smul.addr %s482, 2
        %s484 = scalar_lea.vmem [#allocation14], %s483
        %s485 = smul.u32 2, %s26
        %s486 = smul.u32 2, %s26
        %s487 = smul.u32 32, %s26
        %v489 = vld [vmem:[#allocation2] sm:$0xff]
        %v490 = vld [vmem:[#allocation2 + $0x8] sm:$0xff]
        %v491 = vld [vmem:[#allocation2 + $0x10] sm:$0xff]
        %v492 = vld [vmem:[#allocation2 + $0x18] sm:$0xff]
        %v493 = vld [vmem:[#allocation2 + $0x20] sm:$0xff]
        %v494 = vld [vmem:[#allocation2 + $0x28] sm:$0xff]
        %v495 = vld [vmem:[#allocation2 + $0x30] sm:$0x1]
        %v496 = vld [vmem:[#allocation2 + $0x38] sm:$0x1]
        %v497 = vld [vmem:[#allocation5] sm:$0xf]
        %v498 = vld [vmem:[#allocation7] sm:$0x1]
        %v499 = vld [vmem:[#allocation8] sm:$0x1]
        %v500 = vld [vmem:[%s0] sm:$0xff]
        %v501 = vld [vmem:[%s0 + $0x8] sm:$0xff]
        %v502 = vld [vmem:[%s0 + $0x10] sm:$0xff]
        %v503 = vld [vmem:[%s0 + $0x18] sm:$0xff]
        %v504 = vld [vmem:[%s0 + $0x20] sm:$0xff]
        %v505 = vld [vmem:[%s0 + $0x28] sm:$0xff]
        %v506 = vld [vmem:[%s0 + $0x30] sm:$0xff]
        %v507 = vld [vmem:[%s0 + $0x38] sm:$0xff]
        %v508 = vld [vmem:[%s0 + $0x40] sm:$0xff]
        %v509 = vld [vmem:[%s0 + $0x48] sm:$0xff]
        %v510 = vld [vmem:[%s0 + $0x50] sm:$0xff]
        %v511 = vld [vmem:[%s0 + $0x58] sm:$0xff]
        %v512 = vld [vmem:[%s0 + $0x60] sm:$0xff]
        %v513 = vld [vmem:[%s0 + $0x68] sm:$0xff]
        %v514 = vld [vmem:[%s0 + $0x70] sm:$0xff]
        %v515 = vld [vmem:[%s0 + $0x78] sm:$0xff]
        %v516 = vld [vmem:[%s0 + $0x80] sm:$0xff]
        %v517 = vld [vmem:[%s0 + $0x88] sm:$0xff]
        %v518 = vld [vmem:[%s0 + $0x90] sm:$0xff]
        %v519 = vld [vmem:[%s0 + $0x98] sm:$0xff]
        %v520 = vld [vmem:[%s0 + $0xa0] sm:$0xff]
        %v521 = vld [vmem:[%s0 + $0xa8] sm:$0xff]
        %v522 = vld [vmem:[%s0 + $0xb0] sm:$0xff]
        %v523 = vld [vmem:[%s0 + $0xb8] sm:$0xff]
        %v524 = vld [vmem:[%s0 + $0xc0] sm:$0xff]
        %v525 = vld [vmem:[%s0 + $0xc8] sm:$0xff]
        %v526 = vld [vmem:[%s0 + $0xd0] sm:$0xff]
        %v527 = vld [vmem:[%s0 + $0xd8] sm:$0xff]
        %v528 = vld [vmem:[%s0 + $0xe0] sm:$0xff]
        %v529 = vld [vmem:[%s0 + $0xe8] sm:$0xff]
        %v530 = vld [vmem:[%s0 + $0xf0] sm:$0xff]
        %v531 = vld [vmem:[%s0 + $0xf8] sm:$0xff]
        %532 = vmatprep.subr.mxu0 0.0
        %533 = vmatpush1.msra.mxu0 %v500
        %534 = vmatprep.subr.mxu0 0.0
        %535 = vmatpush1.msra.mxu0 %v501
        %536 = vmatprep.subr.mxu0 0.0
        %537 = vmatpush1.msra.mxu0 %v502
        %538 = vmatprep.subr.mxu0 0.0
        %539 = vmatpush1.msra.mxu0 %v503
        %540 = vmatprep.subr.mxu0 0.0
        %541 = vmatpush1.msra.mxu0 %v504
        %542 = vmatprep.subr.mxu0 0.0
        %543 = vmatpush1.msra.mxu0 %v505
        %544 = vmatprep.subr.mxu0 0.0
        %545 = vmatpush1.msra.mxu0 %v506
        %546 = vmatprep.subr.mxu0 0.0
        %547 = vmatpush1.msra.mxu0 %v507
        %548 = vmatprep.subr.mxu0 0.0
        %549 = vmatpush1.msra.mxu0 %v508
        %550 = vmatprep.subr.mxu0 0.0
        %551 = vmatpush1.msra.mxu0 %v509
        %552 = vmatprep.subr.mxu0 0.0
        %553 = vmatpush1.msra.mxu0 %v510
        %554 = vmatprep.subr.mxu0 0.0
        %555 = vmatpush1.msra.mxu0 %v511
        %556 = vmatprep.subr.mxu0 0.0
        %557 = vmatpush1.msra.mxu0 %v512
        %558 = vmatprep.subr.mxu0 0.0
        %559 = vmatpush1.msra.mxu0 %v513
        %560 = vmatprep.subr.mxu0 0.0
        %561 = vmatpush1.msra.mxu0 %v514
        %562 = vmatprep.subr.mxu0 0.0
        %563 = vmatpush1.msra.mxu0 %v515
        %564 = vmatprep.subr.mxu0 0.0
        %565 = vmatpush1.msra.mxu0 %v516
        %566 = vmatprep.subr.mxu0 0.0
        %567 = vmatpush1.msra.mxu0 %v517
        %568 = vmatprep.subr.mxu0 0.0
        %569 = vmatpush1.msra.mxu0 %v518
        %570 = vmatprep.subr.mxu0 0.0
        %571 = vmatpush1.msra.mxu0 %v519
        %572 = vmatprep.subr.mxu0 0.0
        %573 = vmatpush1.msra.mxu0 %v520
        %574 = vmatprep.subr.mxu0 0.0
        %575 = vmatpush1.msra.mxu0 %v521
        %576 = vmatprep.subr.mxu0 0.0
        %577 = vmatpush1.msra.mxu0 %v522
        %578 = vmatprep.subr.mxu0 0.0
        %579 = vmatpush1.msra.mxu0 %v523
        %580 = vmatprep.subr.mxu0 0.0
        %581 = vmatpush1.msra.mxu0 %v524
        %582 = vmatprep.subr.mxu0 0.0
        %583 = vmatpush1.msra.mxu0 %v525
        %584 = vmatprep.subr.mxu0 0.0
        %585 = vmatpush1.msra.mxu0 %v526
        %586 = vmatprep.subr.mxu0 0.0
        %587 = vmatpush1.msra.mxu0 %v527
        %588 = vmatprep.subr.mxu0 0.0
        %589 = vmatpush1.msra.mxu0 %v528
        %590 = vmatprep.subr.mxu0 0.0
        %591 = vmatpush1.msra.mxu0 %v529
        %592 = vmatprep.subr.mxu0 0.0
        %593 = vmatpush1.msra.mxu0 %v530
        %594 = vmatprep.subr.mxu0 0.0
        %595 = vmatpush1.msra.mxu0 %v531
        %596 = vmatprep.mubr.f32.mxu0 %v490
        %597 = vmatmul.mubr.f32.gmra.mrb[0].mxu0 %v489
        %v598 = vpop.f32.mrb[0].mxu0
        %v599 = vadd.f32 0.0, %v598
        %v600 = vpop.f32.mrb[0].mxu0
        %601 = vmatprep.mubr.f32.mxu0 %v492
        %602 = vmatmul.mubr.f32.gmra.mrb[0].mxu0 %v491
        %v603 = vpop.f32.mrb[0].mxu0
        %v604 = vadd.f32 0.0, %v603
        %v605 = vpop.f32.mrb[0].mxu0
        %606 = vmatprep.mubr.f32.mxu0 %v494
        %607 = vmatmul.mubr.f32.gmra.mrb[0].mxu0 %v493
        %v608 = vpop.f32.mrb[0].mxu0
        %v609 = vadd.f32 0.0, %v608
        %v610 = vpop.f32.mrb[0].mxu0
        %611 = vmatprep.mubr.f32.mxu0 %v496
        %612 = vmatmul.mubr.f32.gmra.mrb[0].mxu0 %v495
        %v613 = vpop.f32.mrb[0].mxu0
        %v614 = vadd.f32 0.0, %v613
        %v615 = vpop.f32.mrb[0].mxu0
        %616 = vdwg.mxu0
        %vm617 = vcmask 31744
        %v619 = vsel %vm617, %v599, 0
        %v622 = vsel %vm617, %v604, 0
        %v625 = vsel %vm617, %v609, 0
        %v628 = vsel %vm617, %v614, 0
        %vm630 = vcmask 1043456
        %v632 = vsel %vm630, %v497, 0
        %634 = vmatprep.subr.mxu0 0.0
        %635 = vmatpush1.msra.mxu0 %v632
        %636 = vmatprep.subr.mxu0 0.0
        %637 = vmatpush1.msra.mxu0 0.0
        %638 = vmatprep.subr.mxu0 0.0
        %639 = vmatpush1.msra.mxu0 0.0
        %640 = vmatprep.subr.mxu0 0.0
        %641 = vmatpush1.msra.mxu0 0.0
        %642 = vmatprep.subr.mxu0 0.0
        %643 = vmatpush1.msra.mxu0 0.0
        %644 = vmatprep.subr.mxu0 0.0
        %645 = vmatpush1.msra.mxu0 0.0
        %646 = vmatprep.subr.mxu0 0.0
        %647 = vmatpush1.msra.mxu0 0.0
        %648 = vmatprep.subr.mxu0 0.0
        %649 = vmatpush1.msra.mxu0 0.0
        %650 = vmatprep.subr.mxu0 0.0
        %651 = vmatpush1.msra.mxu0 0.0
        %652 = vmatprep.subr.mxu0 0.0
        %653 = vmatpush1.msra.mxu0 0.0
        %654 = vmatprep.subr.mxu0 0.0
        %655 = vmatpush1.msra.mxu0 0.0
        %656 = vmatprep.subr.mxu0 0.0
        %657 = vmatpush1.msra.mxu0 0.0
        %658 = vmatprep.subr.mxu0 0.0
        %659 = vmatpush1.msra.mxu0 0.0
        %660 = vmatprep.subr.mxu0 0.0
        %661 = vmatpush1.msra.mxu0 0.0
        %662 = vmatprep.subr.mxu0 0.0
        %663 = vmatpush1.msra.mxu0 0.0
        %664 = vmatprep.subr.mxu0 0.0
        %665 = vmatpush1.msra.mxu0 0.0
        %666 = vmatprep.subr.mxu0 0.0
        %667 = vmatpush1.msra.mxu0 0.0
        %668 = vmatprep.subr.mxu0 0.0
        %669 = vmatpush1.msra.mxu0 0.0
        %670 = vmatprep.subr.mxu0 0.0
        %671 = vmatpush1.msra.mxu0 0.0
        %672 = vmatprep.subr.mxu0 0.0
        %673 = vmatpush1.msra.mxu0 0.0
        %674 = vmatprep.subr.mxu0 0.0
        %675 = vmatpush1.msra.mxu0 0.0
        %676 = vmatprep.subr.mxu0 0.0
        %677 = vmatpush1.msra.mxu0 0.0
        %678 = vmatprep.subr.mxu0 0.0
        %679 = vmatpush1.msra.mxu0 0.0
        %680 = vmatprep.subr.mxu0 0.0
        %681 = vmatpush1.msra.mxu0 0.0
        %682 = vmatprep.subr.mxu0 0.0
        %683 = vmatpush1.msra.mxu0 0.0
        %684 = vmatprep.subr.mxu0 0.0
        %685 = vmatpush1.msra.mxu0 0.0
        %686 = vmatprep.subr.mxu0 0.0
        %687 = vmatpush1.msra.mxu0 0.0
        %688 = vmatprep.subr.mxu0 0.0
        %689 = vmatpush1.msra.mxu0 0.0
        %690 = vmatprep.subr.mxu0 0.0
        %691 = vmatpush1.msra.mxu0 0.0
        %692 = vmatprep.subr.mxu0 0.0
        %693 = vmatpush1.msra.mxu0 0.0
        %694 = vmatprep.subr.mxu0 0.0
        %695 = vmatpush1.msra.mxu0 0.0
        %696 = vmatprep.subr.mxu0 0.0
        %697 = vmatpush1.msra.mxu0 0.0
        %698 = vmatprep.mubr.f32.mxu0 0.0
        %699 = vmatmul.mubr.f32.gmra.mrb[0].mxu0 %v619
        %v700 = vpop.f32.mrb[0].mxu0
        %v701 = vadd.f32 0.0, %v700
        %v702 = vpop.f32.mrb[0].mxu0
        %703 = vmatprep.mubr.f32.mxu0 0.0
        %704 = vmatmul.mubr.f32.gmra.mrb[0].mxu0 %v622
        %v705 = vpop.f32.mrb[0].mxu0
        %v706 = vadd.f32 0.0, %v705
        %v707 = vpop.f32.mrb[0].mxu0
        %708 = vmatprep.mubr.f32.mxu0 0.0
        %709 = vmatmul.mubr.f32.gmra.mrb[0].mxu0 %v625
        %v710 = vpop.f32.mrb[0].mxu0
        %v711 = vadd.f32 0.0, %v710
        %v712 = vpop.f32.mrb[0].mxu0
        %713 = vmatprep.mubr.f32.mxu0 0.0
        %714 = vmatmul.mubr.f32.gmra.mrb[0].mxu0 %v628
        %v715 = vpop.f32.mrb[0].mxu0
        %v716 = vadd.f32 0.0, %v715
        %v717 = vpop.f32.mrb[0].mxu0
        %718 = vdwg.mxu0
        %v720 = vlaneseq
        %v721 = vshrl.u32 %v720, 7
        %v722 = vsub.s32 0, %v721
        %v723 = vrot.slane %v498, %v722
        %v725 = vmul.f32 %v701, %v723
        %v726 = vmul.f32 %v706, %v723
        %v727 = vmul.f32 %v711, %v723
        %v728 = vmul.f32 %v716, %v723
        %v730 = vlaneseq
        %v731 = vshrl.u32 %v730, 7
        %v732 = vsub.s32 0, %v731
        %v733 = vrot.slane %v499, %v732
        %v735 = vadd.f32 %v725, %v733
        %v736 = vadd.f32 %v726, %v733
        %v737 = vadd.f32 %v727, %v733
        %v738 = vadd.f32 %v728, %v733
        %v739 = vmax.f32 %v735, 0.0
        %v740 = vmax.f32 %v736, 0.0
        %v741 = vmax.f32 %v737, 0.0
        %v742 = vmax.f32 %v738, 0.0
        %s743 = scalar_lea.vmem %s0, 256
        %v744 = vld [vmem:[%s743] sm:$0xff]
        %v745 = vld [vmem:[%s743 + $0x8] sm:$0xff]
        %v746 = vld [vmem:[%s743 + $0x10] sm:$0xff]
        %v747 = vld [vmem:[%s743 + $0x18] sm:$0xff]
        %v748 = vld [vmem:[%s743 + $0x20] sm:$0xff]
        %v749 = vld [vmem:[%s743 + $0x28] sm:$0xff]
        %v750 = vld [vmem:[%s743 + $0x30] sm:$0xff]
        %v751 = vld [vmem:[%s743 + $0x38] sm:$0xff]
        %v752 = vld [vmem:[%s743 + $0x40] sm:$0xff]
        %v753 = vld [vmem:[%s743 + $0x48] sm:$0xff]
        %v754 = vld [vmem:[%s743 + $0x50] sm:$0xff]
        %v755 = vld [vmem:[%s743 + $0x58] sm:$0xff]
        %v756 = vld [vmem:[%s743 + $0x60] sm:$0xff]
        %v757 = vld [vmem:[%s743 + $0x68] sm:$0xff]
        %v758 = vld [vmem:[%s743 + $0x70] sm:$0xff]
        %v759 = vld [vmem:[%s743 + $0x78] sm:$0xff]
        %v760 = vld [vmem:[%s743 + $0x80] sm:$0xff]
        %v761 = vld [vmem:[%s743 + $0x88] sm:$0xff]
        %v762 = vld [vmem:[%s743 + $0x90] sm:$0xff]
        %v763 = vld [vmem:[%s743 + $0x98] sm:$0xff]
        %v764 = vld [vmem:[%s743 + $0xa0] sm:$0xff]
        %v765 = vld [vmem:[%s743 + $0xa8] sm:$0xff]
        %v766 = vld [vmem:[%s743 + $0xb0] sm:$0xff]
        %v767 = vld [vmem:[%s743 + $0xb8] sm:$0xff]
        %v768 = vld [vmem:[%s743 + $0xc0] sm:$0xff]
        %v769 = vld [vmem:[%s743 + $0xc8] sm:$0xff]
        %v770 = vld [vmem:[%s743 + $0xd0] sm:$0xff]
        %v771 = vld [vmem:[%s743 + $0xd8] sm:$0xff]
        %v772 = vld [vmem:[%s743 + $0xe0] sm:$0xff]
        %v773 = vld [vmem:[%s743 + $0xe8] sm:$0xff]
        %v774 = vld [vmem:[%s743 + $0xf0] sm:$0xff]
        %v775 = vld [vmem:[%s743 + $0xf8] sm:$0xff]
        %776 = vmatprep.subr.mxu0 0.0
        %777 = vmatpush1.msra.mxu0 %v744
        %778 = vmatprep.subr.mxu0 0.0
        %779 = vmatpush1.msra.mxu0 %v745
        %780 = vmatprep.subr.mxu0 0.0
        %781 = vmatpush1.msra.mxu0 %v746
        %782 = vmatprep.subr.mxu0 0.0
        %783 = vmatpush1.msra.mxu0 %v747
        %784 = vmatprep.subr.mxu0 0.0
        %785 = vmatpush1.msra.mxu0 %v748
        %786 = vmatprep.subr.mxu0 0.0
        %787 = vmatpush1.msra.mxu0 %v749
        %788 = vmatprep.subr.mxu0 0.0
        %789 = vmatpush1.msra.mxu0 %v750
        %790 = vmatprep.subr.mxu0 0.0
        %791 = vmatpush1.msra.mxu0 %v751
        %792 = vmatprep.subr.mxu0 0.0
        %793 = vmatpush1.msra.mxu0 %v752
        %794 = vmatprep.subr.mxu0 0.0
        %795 = vmatpush1.msra.mxu0 %v753
        %796 = vmatprep.subr.mxu0 0.0
        %797 = vmatpush1.msra.mxu0 %v754
        %798 = vmatprep.subr.mxu0 0.0
        %799 = vmatpush1.msra.mxu0 %v755
        %800 = vmatprep.subr.mxu0 0.0
        %801 = vmatpush1.msra.mxu0 %v756
        %802 = vmatprep.subr.mxu0 0.0
        %803 = vmatpush1.msra.mxu0 %v757
        %804 = vmatprep.subr.mxu0 0.0
        %805 = vmatpush1.msra.mxu0 %v758
        %806 = vmatprep.subr.mxu0 0.0
        %807 = vmatpush1.msra.mxu0 %v759
        %808 = vmatprep.subr.mxu0 0.0
        %809 = vmatpush1.msra.mxu0 %v760
        %810 = vmatprep.subr.mxu0 0.0
        %811 = vmatpush1.msra.mxu0 %v761
        %812 = vmatprep.subr.mxu0 0.0
        %813 = vmatpush1.msra.mxu0 %v762
        %814 = vmatprep.subr.mxu0 0.0
        %815 = vmatpush1.msra.mxu0 %v763
        %816 = vmatprep.subr.mxu0 0.0
        %817 = vmatpush1.msra.mxu0 %v764
        %818 = vmatprep.subr.mxu0 0.0
        %819 = vmatpush1.msra.mxu0 %v765
        %820 = vmatprep.subr.mxu0 0.0
        %821 = vmatpush1.msra.mxu0 %v766
        %822 = vmatprep.subr.mxu0 0.0
        %823 = vmatpush1.msra.mxu0 %v767
        %824 = vmatprep.subr.mxu0 0.0
        %825 = vmatpush1.msra.mxu0 %v768
        %826 = vmatprep.subr.mxu0 0.0
        %827 = vmatpush1.msra.mxu0 %v769
        %828 = vmatprep.subr.mxu0 0.0
        %829 = vmatpush1.msra.mxu0 %v770
        %830 = vmatprep.subr.mxu0 0.0
        %831 = vmatpush1.msra.mxu0 %v771
        %832 = vmatprep.subr.mxu0 0.0
        %833 = vmatpush1.msra.mxu0 %v772
        %834 = vmatprep.subr.mxu0 0.0
        %835 = vmatpush1.msra.mxu0 %v773
        %836 = vmatprep.subr.mxu0 0.0
        %837 = vmatpush1.msra.mxu0 %v774
        %838 = vmatprep.subr.mxu0 0.0
        %839 = vmatpush1.msra.mxu0 %v775
        %840 = vmatprep.mubr.f32.mxu0 %v490
        %841 = vmatmul.mubr.f32.gmra.mrb[0].mxu0 %v489
        %v842 = vpop.f32.mrb[0].mxu0
        %v843 = vadd.f32 0.0, %v842
        %v844 = vpop.f32.mrb[0].mxu0
        %845 = vmatprep.mubr.f32.mxu0 %v492
        %846 = vmatmul.mubr.f32.gmra.mrb[0].mxu0 %v491
        %v847 = vpop.f32.mrb[0].mxu0
        %v848 = vadd.f32 0.0, %v847
        %v849 = vpop.f32.mrb[0].mxu0
        %850 = vmatprep.mubr.f32.mxu0 %v494
        %851 = vmatmul.mubr.f32.gmra.mrb[0].mxu0 %v493
        %v852 = vpop.f32.mrb[0].mxu0
        %v853 = vadd.f32 0.0, %v852
        %v854 = vpop.f32.mrb[0].mxu0
        %855 = vmatprep.mubr.f32.mxu0 %v496
        %856 = vmatmul.mubr.f32.gmra.mrb[0].mxu0 %v495
        %v857 = vpop.f32.mrb[0].mxu0
        %v858 = vadd.f32 0.0, %v857
        %v859 = vpop.f32.mrb[0].mxu0
        %860 = vdwg.mxu0
        %v862 = vsel %vm617, %v843, 0
        %v865 = vsel %vm617, %v848, 0
        %v868 = vsel %vm617, %v853, 0
        %v871 = vsel %vm617, %v858, 0
        %873 = vmatprep.subr.mxu0 0.0
        %874 = vmatpush1.msra.mxu0 %v632
        %875 = vmatprep.subr.mxu0 0.0
        %876 = vmatpush1.msra.mxu0 0.0
        %877 = vmatprep.subr.mxu0 0.0
        %878 = vmatpush1.msra.mxu0 0.0
        %879 = vmatprep.subr.mxu0 0.0
        %880 = vmatpush1.msra.mxu0 0.0
        %881 = vmatprep.subr.mxu0 0.0
        %882 = vmatpush1.msra.mxu0 0.0
        %883 = vmatprep.subr.mxu0 0.0
        %884 = vmatpush1.msra.mxu0 0.0
        %885 = vmatprep.subr.mxu0 0.0
        %886 = vmatpush1.msra.mxu0 0.0
        %887 = vmatprep.subr.mxu0 0.0
        %888 = vmatpush1.msra.mxu0 0.0
        %889 = vmatprep.subr.mxu0 0.0
        %890 = vmatpush1.msra.mxu0 0.0
        %891 = vmatprep.subr.mxu0 0.0
        %892 = vmatpush1.msra.mxu0 0.0
        %893 = vmatprep.subr.mxu0 0.0
        %894 = vmatpush1.msra.mxu0 0.0
        %895 = vmatprep.subr.mxu0 0.0
        %896 = vmatpush1.msra.mxu0 0.0
        %897 = vmatprep.subr.mxu0 0.0
        %898 = vmatpush1.msra.mxu0 0.0
        %899 = vmatprep.subr.mxu0 0.0
        %900 = vmatpush1.msra.mxu0 0.0
        %901 = vmatprep.subr.mxu0 0.0
        %902 = vmatpush1.msra.mxu0 0.0
        %903 = vmatprep.subr.mxu0 0.0
        %904 = vmatpush1.msra.mxu0 0.0
        %905 = vmatprep.subr.mxu0 0.0
        %906 = vmatpush1.msra.mxu0 0.0
        %907 = vmatprep.subr.mxu0 0.0
        %908 = vmatpush1.msra.mxu0 0.0
        %909 = vmatprep.subr.mxu0 0.0
        %910 = vmatpush1.msra.mxu0 0.0
        %911 = vmatprep.subr.mxu0 0.0
        %912 = vmatpush1.msra.mxu0 0.0
        %913 = vmatprep.subr.mxu0 0.0
        %914 = vmatpush1.msra.mxu0 0.0
        %915 = vmatprep.subr.mxu0 0.0
        %916 = vmatpush1.msra.mxu0 0.0
        %917 = vmatprep.subr.mxu0 0.0
        %918 = vmatpush1.msra.mxu0 0.0
        %919 = vmatprep.subr.mxu0 0.0
        %920 = vmatpush1.msra.mxu0 0.0
        %921 = vmatprep.subr.mxu0 0.0
        %922 = vmatpush1.msra.mxu0 0.0
        %923 = vmatprep.subr.mxu0 0.0
        %924 = vmatpush1.msra.mxu0 0.0
        %925 = vmatprep.subr.mxu0 0.0
        %926 = vmatpush1.msra.mxu0 0.0
        %927 = vmatprep.subr.mxu0 0.0
        %928 = vmatpush1.msra.mxu0 0.0
        %929 = vmatprep.subr.mxu0 0.0
        %930 = vmatpush1.msra.mxu0 0.0
        %931 = vmatprep.subr.mxu0 0.0
        %932 = vmatpush1.msra.mxu0 0.0
        %933 = vmatprep.subr.mxu0 0.0
        %934 = vmatpush1.msra.mxu0 0.0
        %935 = vmatprep.subr.mxu0 0.0
        %936 = vmatpush1.msra.mxu0 0.0
        %937 = vmatprep.mubr.f32.mxu0 0.0
        %938 = vmatmul.mubr.f32.gmra.mrb[0].mxu0 %v862
        %v939 = vpop.f32.mrb[0].mxu0
        %v940 = vadd.f32 0.0, %v939
        %v941 = vpop.f32.mrb[0].mxu0
        %942 = vmatprep.mubr.f32.mxu0 0.0
        %943 = vmatmul.mubr.f32.gmra.mrb[0].mxu0 %v865
        %v944 = vpop.f32.mrb[0].mxu0
        %v945 = vadd.f32 0.0, %v944
        %v946 = vpop.f32.mrb[0].mxu0
        %947 = vmatprep.mubr.f32.mxu0 0.0
        %948 = vmatmul.mubr.f32.gmra.mrb[0].mxu0 %v868
        %v949 = vpop.f32.mrb[0].mxu0
        %v950 = vadd.f32 0.0, %v949
        %v951 = vpop.f32.mrb[0].mxu0
        %952 = vmatprep.mubr.f32.mxu0 0.0
        %953 = vmatmul.mubr.f32.gmra.mrb[0].mxu0 %v871
        %v954 = vpop.f32.mrb[0].mxu0
        %v955 = vadd.f32 0.0, %v954
        %v956 = vpop.f32.mrb[0].mxu0
        %957 = vdwg.mxu0
        %v958 = vmul.f32 %v940, %v723
        %v959 = vmul.f32 %v945, %v723
        %v960 = vmul.f32 %v950, %v723
        %v961 = vmul.f32 %v955, %v723
        %v962 = vadd.f32 %v958, %v733
        %v963 = vadd.f32 %v959, %v733
        %v964 = vadd.f32 %v960, %v733
        %v965 = vadd.f32 %v961, %v733
        %v966 = vmax.f32 %v962, 0.0
        %v967 = vmax.f32 %v963, 0.0
        %v968 = vmax.f32 %v964, 0.0
        %v969 = vmax.f32 %v965, 0.0
        %v974 = vlaneseq
        %v975 = vshrl.u32 %v974, 7
        %v976 = vsub.s32 0, %v975
        %v977 = vrot.slane %v739, %v976
        %v978 = vlaneseq
        %v979 = vshrl.u32 %v978, 7
        %v980 = vsub.s32 1, %v979
        %v981 = vrot.slane %v739, %v980
        %v982 = vlaneseq
        %v983 = vshrl.u32 %v982, 7
        %v984 = vsub.s32 2, %v983
        %v985 = vrot.slane %v739, %v984
        %v986 = vlaneseq
        %v987 = vshrl.u32 %v986, 7
        %v988 = vsub.s32 3, %v987
        %v989 = vrot.slane %v739, %v988
        %v990 = vlaneseq
        %v991 = vshrl.u32 %v990, 7
        %v992 = vsub.s32 4, %v991
        %v993 = vrot.slane %v739, %v992
        %v994 = vlaneseq
        %v995 = vshrl.u32 %v994, 7
        %v996 = vsub.s32 5, %v995
        %v997 = vrot.slane %v739, %v996
        %v998 = vlaneseq
        %v999 = vshrl.u32 %v998, 7
        %v1000 = vsub.s32 6, %v999
        %v1001 = vrot.slane %v739, %v1000
        %v1002 = vlaneseq
        %v1003 = vshrl.u32 %v1002, 7
        %v1004 = vsub.s32 7, %v1003
        %v1005 = vrot.slane %v739, %v1004
        %v1006 = vlaneseq
        %v1007 = vshrl.u32 %v1006, 7
        %v1008 = vsub.s32 0, %v1007
        %v1009 = vrot.slane %v740, %v1008
        %v1010 = vlaneseq
        %v1011 = vshrl.u32 %v1010, 7
        %v1012 = vsub.s32 1, %v1011
        %v1013 = vrot.slane %v740, %v1012
        %v1014 = vlaneseq
        %v1015 = vshrl.u32 %v1014, 7
        %v1016 = vsub.s32 2, %v1015
        %v1017 = vrot.slane %v740, %v1016
        %v1018 = vlaneseq
        %v1019 = vshrl.u32 %v1018, 7
        %v1020 = vsub.s32 3, %v1019
        %v1021 = vrot.slane %v740, %v1020
        %v1022 = vlaneseq
        %v1023 = vshrl.u32 %v1022, 7
        %v1024 = vsub.s32 4, %v1023
        %v1025 = vrot.slane %v740, %v1024
        %v1026 = vlaneseq
        %v1027 = vshrl.u32 %v1026, 7
        %v1028 = vsub.s32 5, %v1027
        %v1029 = vrot.slane %v740, %v1028
        %v1030 = vlaneseq
        %v1031 = vshrl.u32 %v1030, 7
        %v1032 = vsub.s32 6, %v1031
        %v1033 = vrot.slane %v740, %v1032
        %v1034 = vlaneseq
        %v1035 = vshrl.u32 %v1034, 7
        %v1036 = vsub.s32 7, %v1035
        %v1037 = vrot.slane %v740, %v1036
        %v1038 = vlaneseq
        %v1039 = vshrl.u32 %v1038, 7
        %v1040 = vsub.s32 0, %v1039
        %v1041 = vrot.slane %v741, %v1040
        %v1042 = vlaneseq
        %v1043 = vshrl.u32 %v1042, 7
        %v1044 = vsub.s32 1, %v1043
        %v1045 = vrot.slane %v741, %v1044
        %v1046 = vlaneseq
        %v1047 = vshrl.u32 %v1046, 7
        %v1048 = vsub.s32 2, %v1047
        %v1049 = vrot.slane %v741, %v1048
        %v1050 = vlaneseq
        %v1051 = vshrl.u32 %v1050, 7
        %v1052 = vsub.s32 3, %v1051
        %v1053 = vrot.slane %v741, %v1052
        %v1054 = vlaneseq
        %v1055 = vshrl.u32 %v1054, 7
        %v1056 = vsub.s32 4, %v1055
        %v1057 = vrot.slane %v741, %v1056
        %v1058 = vlaneseq
        %v1059 = vshrl.u32 %v1058, 7
        %v1060 = vsub.s32 5, %v1059
        %v1061 = vrot.slane %v741, %v1060
        %v1062 = vlaneseq
        %v1063 = vshrl.u32 %v1062, 7
        %v1064 = vsub.s32 6, %v1063
        %v1065 = vrot.slane %v741, %v1064
        %v1066 = vlaneseq
        %v1067 = vshrl.u32 %v1066, 7
        %v1068 = vsub.s32 7, %v1067
        %v1069 = vrot.slane %v741, %v1068
        %v1070 = vlaneseq
        %v1071 = vshrl.u32 %v1070, 7
        %v1072 = vsub.s32 0, %v1071
        %v1073 = vrot.slane %v742, %v1072
        %v1103 = vlaneseq
        %v1104 = vshrl.u32 %v1103, 7
        %v1105 = vsub.s32 0, %v1104
        %v1106 = vrot.slane %v966, %v1105
        %v1107 = vlaneseq
        %v1108 = vshrl.u32 %v1107, 7
        %v1109 = vsub.s32 1, %v1108
        %v1110 = vrot.slane %v966, %v1109
        %v1111 = vlaneseq
        %v1112 = vshrl.u32 %v1111, 7
        %v1113 = vsub.s32 2, %v1112
        %v1114 = vrot.slane %v966, %v1113
        %v1115 = vlaneseq
        %v1116 = vshrl.u32 %v1115, 7
        %v1117 = vsub.s32 3, %v1116
        %v1118 = vrot.slane %v966, %v1117
        %v1119 = vlaneseq
        %v1120 = vshrl.u32 %v1119, 7
        %v1121 = vsub.s32 4, %v1120
        %v1122 = vrot.slane %v966, %v1121
        %v1123 = vlaneseq
        %v1124 = vshrl.u32 %v1123, 7
        %v1125 = vsub.s32 5, %v1124
        %v1126 = vrot.slane %v966, %v1125
        %v1127 = vlaneseq
        %v1128 = vshrl.u32 %v1127, 7
        %v1129 = vsub.s32 6, %v1128
        %v1130 = vrot.slane %v966, %v1129
        %v1131 = vlaneseq
        %v1132 = vshrl.u32 %v1131, 7
        %v1133 = vsub.s32 7, %v1132
        %v1134 = vrot.slane %v966, %v1133
        %v1135 = vlaneseq
        %v1136 = vshrl.u32 %v1135, 7
        %v1137 = vsub.s32 0, %v1136
        %v1138 = vrot.slane %v967, %v1137
        %v1139 = vlaneseq
        %v1140 = vshrl.u32 %v1139, 7
        %v1141 = vsub.s32 1, %v1140
        %v1142 = vrot.slane %v967, %v1141
        %v1143 = vlaneseq
        %v1144 = vshrl.u32 %v1143, 7
        %v1145 = vsub.s32 2, %v1144
        %v1146 = vrot.slane %v967, %v1145
        %v1147 = vlaneseq
        %v1148 = vshrl.u32 %v1147, 7
        %v1149 = vsub.s32 3, %v1148
        %v1150 = vrot.slane %v967, %v1149
        %v1151 = vlaneseq
        %v1152 = vshrl.u32 %v1151, 7
        %v1153 = vsub.s32 4, %v1152
        %v1154 = vrot.slane %v967, %v1153
        %v1155 = vlaneseq
        %v1156 = vshrl.u32 %v1155, 7
        %v1157 = vsub.s32 5, %v1156
        %v1158 = vrot.slane %v967, %v1157
        %v1159 = vlaneseq
        %v1160 = vshrl.u32 %v1159, 7
        %v1161 = vsub.s32 6, %v1160
        %v1162 = vrot.slane %v967, %v1161
        %v1163 = vlaneseq
        %v1164 = vshrl.u32 %v1163, 7
        %v1165 = vsub.s32 7, %v1164
        %v1166 = vrot.slane %v967, %v1165
        %v1167 = vlaneseq
        %v1168 = vshrl.u32 %v1167, 7
        %v1169 = vsub.s32 0, %v1168
        %v1170 = vrot.slane %v968, %v1169
        %v1171 = vlaneseq
        %v1172 = vshrl.u32 %v1171, 7
        %v1173 = vsub.s32 1, %v1172
        %v1174 = vrot.slane %v968, %v1173
        %v1175 = vlaneseq
        %v1176 = vshrl.u32 %v1175, 7
        %v1177 = vsub.s32 2, %v1176
        %v1178 = vrot.slane %v968, %v1177
        %v1179 = vlaneseq
        %v1180 = vshrl.u32 %v1179, 7
        %v1181 = vsub.s32 3, %v1180
        %v1182 = vrot.slane %v968, %v1181
        %v1183 = vlaneseq
        %v1184 = vshrl.u32 %v1183, 7
        %v1185 = vsub.s32 4, %v1184
        %v1186 = vrot.slane %v968, %v1185
        %v1187 = vlaneseq
        %v1188 = vshrl.u32 %v1187, 7
        %v1189 = vsub.s32 5, %v1188
        %v1190 = vrot.slane %v968, %v1189
        %v1191 = vlaneseq
        %v1192 = vshrl.u32 %v1191, 7
        %v1193 = vsub.s32 6, %v1192
        %v1194 = vrot.slane %v968, %v1193
        %v1195 = vlaneseq
        %v1196 = vshrl.u32 %v1195, 7
        %v1197 = vsub.s32 7, %v1196
        %v1198 = vrot.slane %v968, %v1197
        %v1199 = vlaneseq
        %v1200 = vshrl.u32 %v1199, 7
        %v1201 = vsub.s32 0, %v1200
        %v1202 = vrot.slane %v969, %v1201
        %vm1228 = vcmask 1040384
        %v1229 = vsel %vm1228, %v977, %v1106
        %v1230 = vsel %vm1228, %v981, %v1110
        %v1231 = vsel %vm1228, %v985, %v1114
        %v1232 = vsel %vm1228, %v989, %v1118
        %v1233 = vsel %vm1228, %v993, %v1122
        %v1234 = vsel %vm1228, %v997, %v1126
        %v1235 = vsel %vm1228, %v1001, %v1130
        %v1236 = vsel %vm1228, %v1005, %v1134
        %v1237 = vsel %vm1228, %v1009, %v1138
        %v1238 = vsel %vm1228, %v1013, %v1142
        %v1239 = vsel %vm1228, %v1017, %v1146
        %v1240 = vsel %vm1228, %v1021, %v1150
        %v1241 = vsel %vm1228, %v1025, %v1154
        %v1242 = vsel %vm1228, %v1029, %v1158
        %v1243 = vsel %vm1228, %v1033, %v1162
        %v1244 = vsel %vm1228, %v1037, %v1166
        %v1245 = vsel %vm1228, %v1041, %v1170
        %v1246 = vsel %vm1228, %v1045, %v1174
        %v1247 = vsel %vm1228, %v1049, %v1178
        %v1248 = vsel %vm1228, %v1053, %v1182
        %v1249 = vsel %vm1228, %v1057, %v1186
        %v1250 = vsel %vm1228, %v1061, %v1190
        %v1251 = vsel %vm1228, %v1065, %v1194
        %v1252 = vsel %vm1228, %v1069, %v1198
        %v1253 = vsel %vm1228, %v1073, %v1202
        %v1254 = vpack.c.bf16 %v1229, %v1229
        %v1255 = vpack.c.bf16 %v1230, %v1230
        %v1256 = vpack.c.bf16 %v1231, %v1231
        %v1257 = vpack.c.bf16 %v1232, %v1232
        %v1258 = vpack.c.bf16 %v1233, %v1233
        %v1259 = vpack.c.bf16 %v1234, %v1234
        %v1260 = vpack.c.bf16 %v1235, %v1235
        %v1261 = vpack.c.bf16 %v1236, %v1236
        %v1262 = vpack.c.bf16 %v1237, %v1237
        %v1263 = vpack.c.bf16 %v1238, %v1238
        %v1264 = vpack.c.bf16 %v1239, %v1239
        %v1265 = vpack.c.bf16 %v1240, %v1240
        %v1266 = vpack.c.bf16 %v1241, %v1241
        %v1267 = vpack.c.bf16 %v1242, %v1242
        %v1268 = vpack.c.bf16 %v1243, %v1243
        %v1269 = vpack.c.bf16 %v1244, %v1244
        %v1270 = vpack.c.bf16 %v1245, %v1245
        %v1271 = vpack.c.bf16 %v1246, %v1246
        %v1272 = vpack.c.bf16 %v1247, %v1247
        %v1273 = vpack.c.bf16 %v1248, %v1248
        %v1274 = vpack.c.bf16 %v1249, %v1249
        %v1275 = vpack.c.bf16 %v1250, %v1250
        %v1276 = vpack.c.bf16 %v1251, %v1251
        %v1277 = vpack.c.bf16 %v1252, %v1252
        %v1278 = vpack.c.bf16 %v1253, %v1253
        %v1279 = vld [vmem:[%s418] sm:$0xff]
        %v1280 = vld [vmem:[%s418 + $0x8] sm:$0xff]
        %v1281 = vld [vmem:[%s418 + $0x10] sm:$0xff]
        %v1282 = vld [vmem:[%s418 + $0x18] sm:$0xff]
        %v1283 = vld [vmem:[%s418 + $0x20] sm:$0xff]
        %v1284 = vld [vmem:[%s418 + $0x28] sm:$0xff]
        %v1285 = vld [vmem:[%s418 + $0x30] sm:$0xff]
        %v1286 = vld [vmem:[%s418 + $0x38] sm:$0xff]
        %v1287 = vld [vmem:[%s418 + $0x40] sm:$0xff]
        %v1288 = vld [vmem:[%s418 + $0x48] sm:$0xff]
        %v1289 = vld [vmem:[%s418 + $0x50] sm:$0xff]
        %v1290 = vld [vmem:[%s418 + $0x58] sm:$0xff]
        %v1291 = vld [vmem:[%s418 + $0x60] sm:$0xff]
        %v1292 = vld [vmem:[%s418 + $0x68] sm:$0xff]
        %v1293 = vld [vmem:[%s418 + $0x70] sm:$0xff]
        %v1294 = vld [vmem:[%s418 + $0x78] sm:$0xff]
        %v1295 = vld [vmem:[%s418 + $0x80] sm:$0xff]
        %v1296 = vld [vmem:[%s418 + $0x88] sm:$0xff]
        %v1297 = vld [vmem:[%s418 + $0x90] sm:$0xff]
        %v1298 = vld [vmem:[%s418 + $0x98] sm:$0xff]
        %v1299 = vld [vmem:[%s418 + $0xa0] sm:$0xff]
        %v1300 = vld [vmem:[%s418 + $0xa8] sm:$0xff]
        %v1301 = vld [vmem:[%s418 + $0xb0] sm:$0xff]
        %v1302 = vld [vmem:[%s418 + $0xb8] sm:$0xff]
        %v1303 = vld [vmem:[%s418 + $0xc0] sm:$0xff]
        %v1304 = vld [vmem:[%s418 + $0xc8] sm:$0xff]
        %v1305 = vld [vmem:[%s418 + $0xd0] sm:$0xff]
        %v1306 = vld [vmem:[%s418 + $0xd8] sm:$0xff]
        %v1307 = vld [vmem:[%s418 + $0xe0] sm:$0xff]
        %v1308 = vld [vmem:[%s418 + $0xe8] sm:$0xff]
        %v1309 = vld [vmem:[%s418 + $0xf0] sm:$0xff]
        %v1310 = vld [vmem:[%s418 + $0xf8] sm:$0xff]
        %v1311 = vld [vmem:[%s418 + $0x100] sm:$0xff]
        %v1312 = vld [vmem:[%s418 + $0x108] sm:$0xff]
        %v1313 = vld [vmem:[%s418 + $0x110] sm:$0xff]
        %v1314 = vld [vmem:[%s418 + $0x118] sm:$0xff]
        %v1315 = vld [vmem:[%s418 + $0x120] sm:$0xff]
        %v1316 = vld [vmem:[%s418 + $0x128] sm:$0xff]
        %v1317 = vld [vmem:[%s418 + $0x130] sm:$0xff]
        %v1318 = vld [vmem:[%s418 + $0x138] sm:$0xff]
        %v1319 = vld [vmem:[%s418 + $0x140] sm:$0xff]
        %v1320 = vld [vmem:[%s418 + $0x148] sm:$0xff]
        %v1321 = vld [vmem:[%s418 + $0x150] sm:$0xff]
        %v1322 = vld [vmem:[%s418 + $0x158] sm:$0xff]
        %v1323 = vld [vmem:[%s418 + $0x160] sm:$0xff]
        %v1324 = vld [vmem:[%s418 + $0x168] sm:$0xff]
        %v1325 = vld [vmem:[%s418 + $0x170] sm:$0xff]
        %v1326 = vld [vmem:[%s418 + $0x178] sm:$0xff]
        %v1327 = vld [vmem:[%s418 + $0x180] sm:$0xff]
        %v1328 = vld [vmem:[%s418 + $0x188] sm:$0xff]
        %v1329 = vld [vmem:[%s418 + $0x190] sm:$0xff]
        %v1330 = vld [vmem:[%s418 + $0x198] sm:$0xff]
        %v1331 = vld [vmem:[%s418 + $0x1a0] sm:$0xff]
        %v1332 = vld [vmem:[%s418 + $0x1a8] sm:$0xff]
        %v1333 = vld [vmem:[%s418 + $0x1b0] sm:$0xff]
        %v1334 = vld [vmem:[%s418 + $0x1b8] sm:$0xff]
        %v1335 = vld [vmem:[%s418 + $0x1c0] sm:$0xff]
        %v1336 = vld [vmem:[%s418 + $0x1c8] sm:$0xff]
        %v1337 = vld [vmem:[%s418 + $0x1d0] sm:$0xff]
        %v1338 = vld [vmem:[%s418 + $0x1d8] sm:$0xff]
        %v1339 = vld [vmem:[%s418 + $0x1e0] sm:$0xff]
        %v1340 = vld [vmem:[%s418 + $0x1e8] sm:$0xff]
        %v1341 = vld [vmem:[%s418 + $0x1f0] sm:$0xff]
        %v1342 = vld [vmem:[%s418 + $0x1f8] sm:$0xff]
        %v1343 = vld [vmem:[%s418 + $0x200] sm:$0xff]
        %v1344 = vld [vmem:[%s418 + $0x208] sm:$0xff]
        %v1345 = vld [vmem:[%s418 + $0x210] sm:$0xff]
        %v1346 = vld [vmem:[%s418 + $0x218] sm:$0xff]
        %v1347 = vld [vmem:[%s418 + $0x220] sm:$0xff]
        %v1348 = vld [vmem:[%s418 + $0x228] sm:$0xff]
        %v1349 = vld [vmem:[%s418 + $0x230] sm:$0xff]
        %v1350 = vld [vmem:[%s418 + $0x238] sm:$0xff]
        %v1351 = vld [vmem:[%s418 + $0x240] sm:$0xff]
        %v1352 = vld [vmem:[%s418 + $0x248] sm:$0xff]
        %v1353 = vld [vmem:[%s418 + $0x250] sm:$0xff]
        %v1354 = vld [vmem:[%s418 + $0x258] sm:$0xff]
        %v1355 = vld [vmem:[%s418 + $0x260] sm:$0xff]
        %v1356 = vld [vmem:[%s418 + $0x268] sm:$0xff]
        %v1357 = vld [vmem:[%s418 + $0x270] sm:$0xff]
        %v1358 = vld [vmem:[%s418 + $0x278] sm:$0xff]
        %v1359 = vld [vmem:[%s418 + $0x280] sm:$0xff]
        %v1360 = vld [vmem:[%s418 + $0x288] sm:$0xff]
        %v1361 = vld [vmem:[%s418 + $0x290] sm:$0xff]
        %v1362 = vld [vmem:[%s418 + $0x298] sm:$0xff]
        %v1363 = vld [vmem:[%s418 + $0x2a0] sm:$0xff]
        %v1364 = vld [vmem:[%s418 + $0x2a8] sm:$0xff]
        %v1365 = vld [vmem:[%s418 + $0x2b0] sm:$0xff]
        %v1366 = vld [vmem:[%s418 + $0x2b8] sm:$0xff]
        %v1367 = vld [vmem:[%s418 + $0x2c0] sm:$0xff]
        %v1368 = vld [vmem:[%s418 + $0x2c8] sm:$0xff]
        %v1369 = vld [vmem:[%s418 + $0x2d0] sm:$0xff]
        %v1370 = vld [vmem:[%s418 + $0x2d8] sm:$0xff]
        %v1371 = vld [vmem:[%s418 + $0x2e0] sm:$0xff]
        %v1372 = vld [vmem:[%s418 + $0x2e8] sm:$0xff]
        %v1373 = vld [vmem:[%s418 + $0x2f0] sm:$0xff]
        %v1374 = vld [vmem:[%s418 + $0x2f8] sm:$0xff]
        %v1375 = vld [vmem:[%s418 + $0x300] sm:$0xff]
        %v1376 = vld [vmem:[%s418 + $0x308] sm:$0xff]
        %v1377 = vld [vmem:[%s418 + $0x310] sm:$0xff]
        %v1378 = vld [vmem:[%s418 + $0x318] sm:$0xff]
        %v1379 = vld [vmem:[%s418 + $0x320] sm:$0xff]
        %v1380 = vld [vmem:[%s418 + $0x328] sm:$0xff]
        %v1381 = vld [vmem:[%s418 + $0x330] sm:$0xff]
        %v1382 = vld [vmem:[%s418 + $0x338] sm:$0xff]
        %v1383 = vld [vmem:[%s418 + $0x340] sm:$0xff]
        %v1384 = vld [vmem:[%s418 + $0x348] sm:$0xff]
        %v1385 = vld [vmem:[%s418 + $0x350] sm:$0xff]
        %v1386 = vld [vmem:[%s418 + $0x358] sm:$0xff]
        %v1387 = vld [vmem:[%s418 + $0x360] sm:$0xff]
        %v1388 = vld [vmem:[%s418 + $0x368] sm:$0xff]
        %v1389 = vld [vmem:[%s418 + $0x370] sm:$0xff]
        %v1390 = vld [vmem:[%s418 + $0x378] sm:$0xff]
        %v1391 = vld [vmem:[%s418 + $0x380] sm:$0xff]
        %v1392 = vld [vmem:[%s418 + $0x388] sm:$0xff]
        %v1393 = vld [vmem:[%s418 + $0x390] sm:$0xff]
        %v1394 = vld [vmem:[%s418 + $0x398] sm:$0xff]
        %v1395 = vld [vmem:[%s418 + $0x3a0] sm:$0xff]
        %v1396 = vld [vmem:[%s418 + $0x3a8] sm:$0xff]
        %v1397 = vld [vmem:[%s418 + $0x3b0] sm:$0xff]
        %v1398 = vld [vmem:[%s418 + $0x3b8] sm:$0xff]
        %v1399 = vld [vmem:[%s418 + $0x3c0] sm:$0xff]
        %v1400 = vld [vmem:[%s418 + $0x3c8] sm:$0xff]
        %v1401 = vld [vmem:[%s418 + $0x3d0] sm:$0xff]
        %v1402 = vld [vmem:[%s418 + $0x3d8] sm:$0xff]
        %v1403 = vld [vmem:[%s418 + $0x3e0] sm:$0xff]
        %v1404 = vld [vmem:[%s418 + $0x3e8] sm:$0xff]
        %v1405 = vld [vmem:[%s418 + $0x3f0] sm:$0xff]
        %v1406 = vld [vmem:[%s418 + $0x3f8] sm:$0xff]
        %v1407 = vld [vmem:[%s418 + $0x400] sm:$0xff]
        %v1408 = vld [vmem:[%s418 + $0x408] sm:$0xff]
        %v1409 = vld [vmem:[%s418 + $0x410] sm:$0xff]
        %v1410 = vld [vmem:[%s418 + $0x418] sm:$0xff]
        %v1411 = vld [vmem:[%s418 + $0x420] sm:$0xff]
        %v1412 = vld [vmem:[%s418 + $0x428] sm:$0xff]
        %v1413 = vld [vmem:[%s418 + $0x430] sm:$0xff]
        %v1414 = vld [vmem:[%s418 + $0x438] sm:$0xff]
        %v1415 = vld [vmem:[%s418 + $0x440] sm:$0xff]
        %v1416 = vld [vmem:[%s418 + $0x448] sm:$0xff]
        %v1417 = vld [vmem:[%s418 + $0x450] sm:$0xff]
        %v1418 = vld [vmem:[%s418 + $0x458] sm:$0xff]
        %v1419 = vld [vmem:[%s418 + $0x460] sm:$0xff]
        %v1420 = vld [vmem:[%s418 + $0x468] sm:$0xff]
        %v1421 = vld [vmem:[%s418 + $0x470] sm:$0xff]
        %v1422 = vld [vmem:[%s418 + $0x478] sm:$0xff]
        %v1423 = vld [vmem:[%s418 + $0x480] sm:$0xff]
        %v1424 = vld [vmem:[%s418 + $0x488] sm:$0xff]
        %v1425 = vld [vmem:[%s418 + $0x490] sm:$0xff]
        %v1426 = vld [vmem:[%s418 + $0x498] sm:$0xff]
        %v1427 = vld [vmem:[%s418 + $0x4a0] sm:$0xff]
        %v1428 = vld [vmem:[%s418 + $0x4a8] sm:$0xff]
        %v1429 = vld [vmem:[%s418 + $0x4b0] sm:$0xff]
        %v1430 = vld [vmem:[%s418 + $0x4b8] sm:$0xff]
        %v1431 = vld [vmem:[%s418 + $0x4c0] sm:$0xff]
        %v1432 = vld [vmem:[%s418 + $0x4c8] sm:$0xff]
        %v1433 = vld [vmem:[%s418 + $0x4d0] sm:$0xff]
        %v1434 = vld [vmem:[%s418 + $0x4d8] sm:$0xff]
        %v1435 = vld [vmem:[%s418 + $0x4e0] sm:$0xff]
        %v1436 = vld [vmem:[%s418 + $0x4e8] sm:$0xff]
        %v1437 = vld [vmem:[%s418 + $0x4f0] sm:$0xff]
        %v1438 = vld [vmem:[%s418 + $0x4f8] sm:$0xff]
        %v1439 = vld [vmem:[%s418 + $0x500] sm:$0xff]
        %v1440 = vld [vmem:[%s418 + $0x508] sm:$0xff]
        %v1441 = vld [vmem:[%s418 + $0x510] sm:$0xff]
        %v1442 = vld [vmem:[%s418 + $0x518] sm:$0xff]
        %v1443 = vld [vmem:[%s418 + $0x520] sm:$0xff]
        %v1444 = vld [vmem:[%s418 + $0x528] sm:$0xff]
        %v1445 = vld [vmem:[%s418 + $0x530] sm:$0xff]
        %v1446 = vld [vmem:[%s418 + $0x538] sm:$0xff]
        %v1447 = vld [vmem:[%s418 + $0x540] sm:$0xff]
        %v1448 = vld [vmem:[%s418 + $0x548] sm:$0xff]
        %v1449 = vld [vmem:[%s418 + $0x550] sm:$0xff]
        %v1450 = vld [vmem:[%s418 + $0x558] sm:$0xff]
        %v1451 = vld [vmem:[%s418 + $0x560] sm:$0xff]
        %v1452 = vld [vmem:[%s418 + $0x568] sm:$0xff]
        %v1453 = vld [vmem:[%s418 + $0x570] sm:$0xff]
        %v1454 = vld [vmem:[%s418 + $0x578] sm:$0xff]
        %v1455 = vld [vmem:[%s418 + $0x580] sm:$0xff]
        %v1456 = vld [vmem:[%s418 + $0x588] sm:$0xff]
        %v1457 = vld [vmem:[%s418 + $0x590] sm:$0xff]
        %v1458 = vld [vmem:[%s418 + $0x598] sm:$0xff]
        %v1459 = vld [vmem:[%s418 + $0x5a0] sm:$0xff]
        %v1460 = vld [vmem:[%s418 + $0x5a8] sm:$0xff]
        %v1461 = vld [vmem:[%s418 + $0x5b0] sm:$0xff]
        %v1462 = vld [vmem:[%s418 + $0x5b8] sm:$0xff]
        %v1463 = vld [vmem:[%s418 + $0x5c0] sm:$0xff]
        %v1464 = vld [vmem:[%s418 + $0x5c8] sm:$0xff]
        %v1465 = vld [vmem:[%s418 + $0x5d0] sm:$0xff]
        %v1466 = vld [vmem:[%s418 + $0x5d8] sm:$0xff]
        %v1467 = vld [vmem:[%s418 + $0x5e0] sm:$0xff]
        %v1468 = vld [vmem:[%s418 + $0x5e8] sm:$0xff]
        %v1469 = vld [vmem:[%s418 + $0x5f0] sm:$0xff]
        %v1470 = vld [vmem:[%s418 + $0x5f8] sm:$0xff]
        %v1471 = vld [vmem:[%s418 + $0x600] sm:$0xff]
        %v1472 = vld [vmem:[%s418 + $0x608] sm:$0xff]
        %v1473 = vld [vmem:[%s418 + $0x610] sm:$0xff]
        %v1474 = vld [vmem:[%s418 + $0x618] sm:$0xff]
        %v1475 = vld [vmem:[%s418 + $0x620] sm:$0xff]
        %v1476 = vld [vmem:[%s418 + $0x628] sm:$0xff]
        %v1477 = vld [vmem:[%s418 + $0x630] sm:$0xff]
        %v1478 = vld [vmem:[%s418 + $0x638] sm:$0xff]
        %v1479 = vld [vmem:[%s418 + $0x640] sm:$0xff]
        %v1480 = vld [vmem:[%s418 + $0x648] sm:$0xff]
        %v1481 = vld [vmem:[%s418 + $0x650] sm:$0xff]
        %v1482 = vld [vmem:[%s418 + $0x658] sm:$0xff]
        %v1483 = vld [vmem:[%s418 + $0x660] sm:$0xff]
        %v1484 = vld [vmem:[%s418 + $0x668] sm:$0xff]
        %v1485 = vld [vmem:[%s418 + $0x670] sm:$0xff]
        %v1486 = vld [vmem:[%s418 + $0x678] sm:$0xff]
        %v1487 = vld [vmem:[%s418 + $0x680] sm:$0xff]
        %v1488 = vld [vmem:[%s418 + $0x688] sm:$0xff]
        %v1489 = vld [vmem:[%s418 + $0x690] sm:$0xff]
        %v1490 = vld [vmem:[%s418 + $0x698] sm:$0xff]
        %v1491 = vld [vmem:[%s418 + $0x6a0] sm:$0xff]
        %v1492 = vld [vmem:[%s418 + $0x6a8] sm:$0xff]
        %v1493 = vld [vmem:[%s418 + $0x6b0] sm:$0xff]
        %v1494 = vld [vmem:[%s418 + $0x6b8] sm:$0xff]
        %v1495 = vld [vmem:[%s418 + $0x6c0] sm:$0xff]
        %v1496 = vld [vmem:[%s418 + $0x6c8] sm:$0xff]
        %v1497 = vld [vmem:[%s418 + $0x6d0] sm:$0xff]
        %v1498 = vld [vmem:[%s418 + $0x6d8] sm:$0xff]
        %v1499 = vld [vmem:[%s418 + $0x6e0] sm:$0xff]
        %v1500 = vld [vmem:[%s418 + $0x6e8] sm:$0xff]
        %v1501 = vld [vmem:[%s418 + $0x6f0] sm:$0xff]
        %v1502 = vld [vmem:[%s418 + $0x6f8] sm:$0xff]
        %v1503 = vld [vmem:[%s418 + $0x700] sm:$0xff]
        %v1504 = vld [vmem:[%s418 + $0x708] sm:$0xff]
        %v1505 = vld [vmem:[%s418 + $0x710] sm:$0xff]
        %v1506 = vld [vmem:[%s418 + $0x718] sm:$0xff]
        %v1507 = vld [vmem:[%s418 + $0x720] sm:$0xff]
        %v1508 = vld [vmem:[%s418 + $0x728] sm:$0xff]
        %v1509 = vld [vmem:[%s418 + $0x730] sm:$0xff]
        %v1510 = vld [vmem:[%s418 + $0x738] sm:$0xff]
        %v1511 = vld [vmem:[%s418 + $0x740] sm:$0xff]
        %v1512 = vld [vmem:[%s418 + $0x748] sm:$0xff]
        %v1513 = vld [vmem:[%s418 + $0x750] sm:$0xff]
        %v1514 = vld [vmem:[%s418 + $0x758] sm:$0xff]
        %v1515 = vld [vmem:[%s418 + $0x760] sm:$0xff]
        %v1516 = vld [vmem:[%s418 + $0x768] sm:$0xff]
        %v1517 = vld [vmem:[%s418 + $0x770] sm:$0xff]
        %v1518 = vld [vmem:[%s418 + $0x778] sm:$0xff]
        %v1519 = vld [vmem:[%s418 + $0x780] sm:$0xff]
        %v1520 = vld [vmem:[%s418 + $0x788] sm:$0xff]
        %v1521 = vld [vmem:[%s418 + $0x790] sm:$0xff]
        %v1522 = vld [vmem:[%s418 + $0x798] sm:$0xff]
        %v1523 = vld [vmem:[%s418 + $0x7a0] sm:$0xff]
        %v1524 = vld [vmem:[%s418 + $0x7a8] sm:$0xff]
        %v1525 = vld [vmem:[%s418 + $0x7b0] sm:$0xff]
        %v1526 = vld [vmem:[%s418 + $0x7b8] sm:$0xff]
        %v1527 = vld [vmem:[%s418 + $0x7c0] sm:$0xff]
        %v1528 = vld [vmem:[%s418 + $0x7c8] sm:$0xff]
        %v1529 = vld [vmem:[%s418 + $0x7d0] sm:$0xff]
        %v1530 = vld [vmem:[%s418 + $0x7d8] sm:$0xff]
        %v1531 = vld [vmem:[%s418 + $0x7e0] sm:$0xff]
        %v1532 = vld [vmem:[%s418 + $0x7e8] sm:$0xff]
        %v1533 = vld [vmem:[%s418 + $0x7f0] sm:$0xff]
        %v1534 = vld [vmem:[%s418 + $0x7f8] sm:$0xff]
        %v1535 = vld [vmem:[%s418 + $0x800] sm:$0xff]
        %v1536 = vld [vmem:[%s418 + $0x808] sm:$0xff]
        %v1537 = vld [vmem:[%s418 + $0x810] sm:$0xff]
        %v1538 = vld [vmem:[%s418 + $0x818] sm:$0xff]
        %v1539 = vld [vmem:[%s418 + $0x820] sm:$0xff]
        %v1540 = vld [vmem:[%s418 + $0x828] sm:$0xff]
        %v1541 = vld [vmem:[%s418 + $0x830] sm:$0xff]
        %v1542 = vld [vmem:[%s418 + $0x838] sm:$0xff]
        %v1543 = vld [vmem:[%s418 + $0x840] sm:$0xff]
        %v1544 = vld [vmem:[%s418 + $0x848] sm:$0xff]
        %v1545 = vld [vmem:[%s418 + $0x850] sm:$0xff]
        %v1546 = vld [vmem:[%s418 + $0x858] sm:$0xff]
        %v1547 = vld [vmem:[%s418 + $0x860] sm:$0xff]
        %v1548 = vld [vmem:[%s418 + $0x868] sm:$0xff]
        %v1549 = vld [vmem:[%s418 + $0x870] sm:$0xff]
        %v1550 = vld [vmem:[%s418 + $0x878] sm:$0xff]
        %v1551 = vld [vmem:[%s418 + $0x880] sm:$0xff]
        %v1552 = vld [vmem:[%s418 + $0x888] sm:$0xff]
        %v1553 = vld [vmem:[%s418 + $0x890] sm:$0xff]
        %v1554 = vld [vmem:[%s418 + $0x898] sm:$0xff]
        %v1555 = vld [vmem:[%s418 + $0x8a0] sm:$0xff]
        %v1556 = vld [vmem:[%s418 + $0x8a8] sm:$0xff]
        %v1557 = vld [vmem:[%s418 + $0x8b0] sm:$0xff]
        %v1558 = vld [vmem:[%s418 + $0x8b8] sm:$0xff]
        %v1559 = vld [vmem:[%s418 + $0x8c0] sm:$0xff]
        %v1560 = vld [vmem:[%s418 + $0x8c8] sm:$0xff]
        %v1561 = vld [vmem:[%s418 + $0x8d0] sm:$0xff]
        %v1562 = vld [vmem:[%s418 + $0x8d8] sm:$0xff]
        %v1563 = vld [vmem:[%s418 + $0x8e0] sm:$0xff]
        %v1564 = vld [vmem:[%s418 + $0x8e8] sm:$0xff]
        %v1565 = vld [vmem:[%s418 + $0x8f0] sm:$0xff]
        %v1566 = vld [vmem:[%s418 + $0x8f8] sm:$0xff]
        %v1567 = vld [vmem:[%s418 + $0x900] sm:$0xff]
        %v1568 = vld [vmem:[%s418 + $0x908] sm:$0xff]
        %v1569 = vld [vmem:[%s418 + $0x910] sm:$0xff]
        %v1570 = vld [vmem:[%s418 + $0x918] sm:$0xff]
        %v1571 = vld [vmem:[%s418 + $0x920] sm:$0xff]
        %v1572 = vld [vmem:[%s418 + $0x928] sm:$0xff]
        %v1573 = vld [vmem:[%s418 + $0x930] sm:$0xff]
        %v1574 = vld [vmem:[%s418 + $0x938] sm:$0xff]
        %v1575 = vld [vmem:[%s418 + $0x940] sm:$0xff]
        %v1576 = vld [vmem:[%s418 + $0x948] sm:$0xff]
        %v1577 = vld [vmem:[%s418 + $0x950] sm:$0xff]
        %v1578 = vld [vmem:[%s418 + $0x958] sm:$0xff]
        %v1579 = vld [vmem:[%s418 + $0x960] sm:$0xff]
        %v1580 = vld [vmem:[%s418 + $0x968] sm:$0xff]
        %v1581 = vld [vmem:[%s418 + $0x970] sm:$0xff]
        %v1582 = vld [vmem:[%s418 + $0x978] sm:$0xff]
        %v1583 = vld [vmem:[%s418 + $0x980] sm:$0xff]
        %v1584 = vld [vmem:[%s418 + $0x988] sm:$0xff]
        %v1585 = vld [vmem:[%s418 + $0x990] sm:$0xff]
        %v1586 = vld [vmem:[%s418 + $0x998] sm:$0xff]
        %v1587 = vld [vmem:[%s418 + $0x9a0] sm:$0xff]
        %v1588 = vld [vmem:[%s418 + $0x9a8] sm:$0xff]
        %v1589 = vld [vmem:[%s418 + $0x9b0] sm:$0xff]
        %v1590 = vld [vmem:[%s418 + $0x9b8] sm:$0xff]
        %v1591 = vld [vmem:[%s418 + $0x9c0] sm:$0xff]
        %v1592 = vld [vmem:[%s418 + $0x9c8] sm:$0xff]
        %v1593 = vld [vmem:[%s418 + $0x9d0] sm:$0xff]
        %v1594 = vld [vmem:[%s418 + $0x9d8] sm:$0xff]
        %v1595 = vld [vmem:[%s418 + $0x9e0] sm:$0xff]
        %v1596 = vld [vmem:[%s418 + $0x9e8] sm:$0xff]
        %v1597 = vld [vmem:[%s418 + $0x9f0] sm:$0xff]
        %v1598 = vld [vmem:[%s418 + $0x9f8] sm:$0xff]
        %v1599 = vld [vmem:[%s418 + $0xa00] sm:$0xff]
        %v1600 = vld [vmem:[%s418 + $0xa08] sm:$0xff]
        %v1601 = vld [vmem:[%s418 + $0xa10] sm:$0xff]
        %v1602 = vld [vmem:[%s418 + $0xa18] sm:$0xff]
        %v1603 = vld [vmem:[%s418 + $0xa20] sm:$0xff]
        %v1604 = vld [vmem:[%s418 + $0xa28] sm:$0xff]
        %v1605 = vld [vmem:[%s418 + $0xa30] sm:$0xff]
        %v1606 = vld [vmem:[%s418 + $0xa38] sm:$0xff]
        %v1607 = vld [vmem:[%s418 + $0xa40] sm:$0xff]
        %v1608 = vld [vmem:[%s418 + $0xa48] sm:$0xff]
        %v1609 = vld [vmem:[%s418 + $0xa50] sm:$0xff]
        %v1610 = vld [vmem:[%s418 + $0xa58] sm:$0xff]
        %v1611 = vld [vmem:[%s418 + $0xa60] sm:$0xff]
        %v1612 = vld [vmem:[%s418 + $0xa68] sm:$0xff]
        %v1613 = vld [vmem:[%s418 + $0xa70] sm:$0xff]
        %v1614 = vld [vmem:[%s418 + $0xa78] sm:$0xff]
        %v1615 = vld [vmem:[%s418 + $0xa80] sm:$0xff]
        %v1616 = vld [vmem:[%s418 + $0xa88] sm:$0xff]
        %v1617 = vld [vmem:[%s418 + $0xa90] sm:$0xff]
        %v1618 = vld [vmem:[%s418 + $0xa98] sm:$0xff]
        %v1619 = vld [vmem:[%s418 + $0xaa0] sm:$0xff]
        %v1620 = vld [vmem:[%s418 + $0xaa8] sm:$0xff]
        %v1621 = vld [vmem:[%s418 + $0xab0] sm:$0xff]
        %v1622 = vld [vmem:[%s418 + $0xab8] sm:$0xff]
        %v1623 = vld [vmem:[%s418 + $0xac0] sm:$0xff]
        %v1624 = vld [vmem:[%s418 + $0xac8] sm:$0xff]
        %v1625 = vld [vmem:[%s418 + $0xad0] sm:$0xff]
        %v1626 = vld [vmem:[%s418 + $0xad8] sm:$0xff]
        %v1627 = vld [vmem:[%s418 + $0xae0] sm:$0xff]
        %v1628 = vld [vmem:[%s418 + $0xae8] sm:$0xff]
        %v1629 = vld [vmem:[%s418 + $0xaf0] sm:$0xff]
        %v1630 = vld [vmem:[%s418 + $0xaf8] sm:$0xff]
        %v1631 = vld [vmem:[%s418 + $0xb00] sm:$0xff]
        %v1632 = vld [vmem:[%s418 + $0xb08] sm:$0xff]
        %v1633 = vld [vmem:[%s418 + $0xb10] sm:$0xff]
        %v1634 = vld [vmem:[%s418 + $0xb18] sm:$0xff]
        %v1635 = vld [vmem:[%s418 + $0xb20] sm:$0xff]
        %v1636 = vld [vmem:[%s418 + $0xb28] sm:$0xff]
        %v1637 = vld [vmem:[%s418 + $0xb30] sm:$0xff]
        %v1638 = vld [vmem:[%s418 + $0xb38] sm:$0xff]
        %v1639 = vld [vmem:[%s418 + $0xb40] sm:$0xff]
        %v1640 = vld [vmem:[%s418 + $0xb48] sm:$0xff]
        %v1641 = vld [vmem:[%s418 + $0xb50] sm:$0xff]
        %v1642 = vld [vmem:[%s418 + $0xb58] sm:$0xff]
        %v1643 = vld [vmem:[%s418 + $0xb60] sm:$0xff]
        %v1644 = vld [vmem:[%s418 + $0xb68] sm:$0xff]
        %v1645 = vld [vmem:[%s418 + $0xb70] sm:$0xff]
        %v1646 = vld [vmem:[%s418 + $0xb78] sm:$0xff]
        %v1647 = vld [vmem:[%s418 + $0xb80] sm:$0xff]
        %v1648 = vld [vmem:[%s418 + $0xb88] sm:$0xff]
        %v1649 = vld [vmem:[%s418 + $0xb90] sm:$0xff]
        %v1650 = vld [vmem:[%s418 + $0xb98] sm:$0xff]
        %v1651 = vld [vmem:[%s418 + $0xba0] sm:$0xff]
        %v1652 = vld [vmem:[%s418 + $0xba8] sm:$0xff]
        %v1653 = vld [vmem:[%s418 + $0xbb0] sm:$0xff]
        %v1654 = vld [vmem:[%s418 + $0xbb8] sm:$0xff]
        %v1655 = vld [vmem:[%s418 + $0xbc0] sm:$0xff]
        %v1656 = vld [vmem:[%s418 + $0xbc8] sm:$0xff]
        %v1657 = vld [vmem:[%s418 + $0xbd0] sm:$0xff]
        %v1658 = vld [vmem:[%s418 + $0xbd8] sm:$0xff]
        %v1659 = vld [vmem:[%s418 + $0xbe0] sm:$0xff]
        %v1660 = vld [vmem:[%s418 + $0xbe8] sm:$0xff]
        %v1661 = vld [vmem:[%s418 + $0xbf0] sm:$0xff]
        %v1662 = vld [vmem:[%s418 + $0xbf8] sm:$0xff]
        %v1663 = vld [vmem:[%s418 + $0xc00] sm:$0xff]
        %v1664 = vld [vmem:[%s418 + $0xc08] sm:$0xff]
        %v1665 = vld [vmem:[%s418 + $0xc10] sm:$0xff]
        %v1666 = vld [vmem:[%s418 + $0xc18] sm:$0xff]
        %v1667 = vld [vmem:[%s418 + $0xc20] sm:$0xff]
        %v1668 = vld [vmem:[%s418 + $0xc28] sm:$0xff]
        %v1669 = vld [vmem:[%s418 + $0xc30] sm:$0xff]
        %v1670 = vld [vmem:[%s418 + $0xc38] sm:$0xff]
        %v1671 = vld [vmem:[%s418 + $0xc40] sm:$0xff]
        %v1672 = vld [vmem:[%s418 + $0xc48] sm:$0xff]
        %v1673 = vld [vmem:[%s418 + $0xc50] sm:$0xff]
        %v1674 = vld [vmem:[%s418 + $0xc58] sm:$0xff]
        %v1675 = vld [vmem:[%s418 + $0xc60] sm:$0xff]
        %v1676 = vld [vmem:[%s418 + $0xc68] sm:$0xff]
        %v1677 = vld [vmem:[%s418 + $0xc70] sm:$0xff]
        %v1678 = vld [vmem:[%s418 + $0xc78] sm:$0xff]
        %v1679 = vld [vmem:[%s427] sm:$0x3]
        %v1681 = vlaneseq
        %v1682 = vshrl.u32 %v1681, 7
        %v1683 = vsub.s32 0, %v1682
        %v1684 = vrot.slane %v1679, %v1683
        %v1685 = vlaneseq
        %v1686 = vshrl.u32 %v1685, 7
        %v1687 = vsub.s32 1, %v1686
        %v1688 = vrot.slane %v1679, %v1687
        %v2091 = vunpack.c.l.b16 %v1279
        %v2092 = vunpack.c.h.b16 %v1279
        %v2093 = vunpack.c.l.b16 %v1280
        %v2094 = vunpack.c.h.b16 %v1280
        %v2095 = vunpack.c.l.b16 %v1281
        %v2096 = vunpack.c.h.b16 %v1281
        %v2097 = vunpack.c.l.b16 %v1282
        %v2098 = vunpack.c.h.b16 %v1282
        %v2099 = vunpack.c.l.b16 %v1283
        %v2100 = vunpack.c.h.b16 %v1283
        %v2101 = vunpack.c.l.b16 %v1284
        %v2102 = vunpack.c.h.b16 %v1284
        %v2103 = vunpack.c.l.b16 %v1285
        %v2104 = vunpack.c.h.b16 %v1285
        %v2105 = vunpack.c.l.b16 %v1286
        %v2106 = vunpack.c.h.b16 %v1286
        %v2107 = vunpack.c.l.b16 %v1287
        %v2108 = vunpack.c.h.b16 %v1287
        %v2109 = vunpack.c.l.b16 %v1288
        %v2110 = vunpack.c.h.b16 %v1288
        %v2111 = vunpack.c.l.b16 %v1289
        %v2112 = vunpack.c.h.b16 %v1289
        %v2113 = vunpack.c.l.b16 %v1290
        %v2114 = vunpack.c.h.b16 %v1290
        %v2115 = vunpack.c.l.b16 %v1291
        %v2116 = vunpack.c.h.b16 %v1291
        %v2117 = vunpack.c.l.b16 %v1292
        %v2118 = vunpack.c.h.b16 %v1292
        %v2119 = vunpack.c.l.b16 %v1293
        %v2120 = vunpack.c.h.b16 %v1293
        %v2121 = vunpack.c.l.b16 %v1294
        %v2122 = vunpack.c.h.b16 %v1294
        %v2123 = vunpack.c.l.b16 %v1295
        %v2124 = vunpack.c.h.b16 %v1295
        %v2125 = vunpack.c.l.b16 %v1296
        %v2126 = vunpack.c.h.b16 %v1296
        %v2127 = vunpack.c.l.b16 %v1297
        %v2128 = vunpack.c.h.b16 %v1297
        %v2129 = vunpack.c.l.b16 %v1298
        %v2130 = vunpack.c.h.b16 %v1298
        %v2131 = vunpack.c.l.b16 %v1299
        %v2132 = vunpack.c.h.b16 %v1299
        %v2133 = vunpack.c.l.b16 %v1300
        %v2134 = vunpack.c.h.b16 %v1300
        %v2135 = vunpack.c.l.b16 %v1301
        %v2136 = vunpack.c.h.b16 %v1301
        %v2137 = vunpack.c.l.b16 %v1302
        %v2138 = vunpack.c.h.b16 %v1302
        %v2139 = vunpack.c.l.b16 %v1303
        %v2140 = vunpack.c.h.b16 %v1303
        %v2141 = vunpack.c.l.b16 %v1304
        %v2142 = vunpack.c.h.b16 %v1304
        %v2143 = vunpack.c.l.b16 %v1305
        %v2144 = vunpack.c.h.b16 %v1305
        %v2145 = vunpack.c.l.b16 %v1306
        %v2146 = vunpack.c.h.b16 %v1306
        %v2147 = vunpack.c.l.b16 %v1307
        %v2148 = vunpack.c.h.b16 %v1307
        %v2149 = vunpack.c.l.b16 %v1308
        %v2150 = vunpack.c.h.b16 %v1308
        %v2151 = vunpack.c.l.b16 %v1309
        %v2152 = vunpack.c.h.b16 %v1309
        %v2153 = vunpack.c.l.b16 %v1310
        %v2154 = vunpack.c.h.b16 %v1310
        %v2155 = vunpack.c.l.b16 %v1311
        %v2156 = vunpack.c.h.b16 %v1311
        %v2157 = vunpack.c.l.b16 %v1312
        %v2158 = vunpack.c.h.b16 %v1312
        %v2159 = vunpack.c.l.b16 %v1313
        %v2160 = vunpack.c.h.b16 %v1313
        %v2161 = vunpack.c.l.b16 %v1314
        %v2162 = vunpack.c.h.b16 %v1314
        %v2163 = vunpack.c.l.b16 %v1315
        %v2164 = vunpack.c.h.b16 %v1315
        %v2165 = vunpack.c.l.b16 %v1316
        %v2166 = vunpack.c.h.b16 %v1316
        %v2167 = vunpack.c.l.b16 %v1317
        %v2168 = vunpack.c.h.b16 %v1317
        %v2169 = vunpack.c.l.b16 %v1318
        %v2170 = vunpack.c.h.b16 %v1318
        %v2171 = vunpack.c.l.b16 %v1319
        %v2172 = vunpack.c.h.b16 %v1319
        %v2173 = vunpack.c.l.b16 %v1320
        %v2174 = vunpack.c.h.b16 %v1320
        %v2175 = vunpack.c.l.b16 %v1321
        %v2176 = vunpack.c.h.b16 %v1321
        %v2177 = vunpack.c.l.b16 %v1322
        %v2178 = vunpack.c.h.b16 %v1322
        %v2179 = vunpack.c.l.b16 %v1323
        %v2180 = vunpack.c.h.b16 %v1323
        %v2181 = vunpack.c.l.b16 %v1324
        %v2182 = vunpack.c.h.b16 %v1324
        %v2183 = vunpack.c.l.b16 %v1325
        %v2184 = vunpack.c.h.b16 %v1325
        %v2185 = vunpack.c.l.b16 %v1326
        %v2186 = vunpack.c.h.b16 %v1326
        %v2187 = vunpack.c.l.b16 %v1327
        %v2188 = vunpack.c.h.b16 %v1327
        %v2189 = vunpack.c.l.b16 %v1328
        %v2190 = vunpack.c.h.b16 %v1328
        %v2191 = vunpack.c.l.b16 %v1329
        %v2192 = vunpack.c.h.b16 %v1329
        %v2193 = vunpack.c.l.b16 %v1330
        %v2194 = vunpack.c.h.b16 %v1330
        %v2195 = vunpack.c.l.b16 %v1331
        %v2196 = vunpack.c.h.b16 %v1331
        %v2197 = vunpack.c.l.b16 %v1332
        %v2198 = vunpack.c.h.b16 %v1332
        %v2199 = vunpack.c.l.b16 %v1333
        %v2200 = vunpack.c.h.b16 %v1333
        %v2201 = vunpack.c.l.b16 %v1334
        %v2202 = vunpack.c.h.b16 %v1334
        %v2203 = vunpack.c.l.b16 %v1335
        %v2204 = vunpack.c.h.b16 %v1335
        %v2205 = vunpack.c.l.b16 %v1336
        %v2206 = vunpack.c.h.b16 %v1336
        %v2207 = vunpack.c.l.b16 %v1337
        %v2208 = vunpack.c.h.b16 %v1337
        %v2209 = vunpack.c.l.b16 %v1338
        %v2210 = vunpack.c.h.b16 %v1338
        %v2211 = vunpack.c.l.b16 %v1339
        %v2212 = vunpack.c.h.b16 %v1339
        %v2213 = vunpack.c.l.b16 %v1340
        %v2214 = vunpack.c.h.b16 %v1340
        %v2215 = vunpack.c.l.b16 %v1341
        %v2216 = vunpack.c.h.b16 %v1341
        %v2217 = vunpack.c.l.b16 %v1342
        %v2218 = vunpack.c.h.b16 %v1342
        %v2219 = vunpack.c.l.b16 %v1343
        %v2220 = vunpack.c.h.b16 %v1343
        %v2221 = vunpack.c.l.b16 %v1344
        %v2222 = vunpack.c.h.b16 %v1344
        %v2223 = vunpack.c.l.b16 %v1345
        %v2224 = vunpack.c.h.b16 %v1345
        %v2225 = vunpack.c.l.b16 %v1346
        %v2226 = vunpack.c.h.b16 %v1346
        %v2227 = vunpack.c.l.b16 %v1347
        %v2228 = vunpack.c.h.b16 %v1347
        %v2229 = vunpack.c.l.b16 %v1348
        %v2230 = vunpack.c.h.b16 %v1348
        %v2231 = vunpack.c.l.b16 %v1349
        %v2232 = vunpack.c.h.b16 %v1349
        %v2233 = vunpack.c.l.b16 %v1350
        %v2234 = vunpack.c.h.b16 %v1350
        %v2235 = vunpack.c.l.b16 %v1351
        %v2236 = vunpack.c.h.b16 %v1351
        %v2237 = vunpack.c.l.b16 %v1352
        %v2238 = vunpack.c.h.b16 %v1352
        %v2239 = vunpack.c.l.b16 %v1353
        %v2240 = vunpack.c.h.b16 %v1353
        %v2241 = vunpack.c.l.b16 %v1354
        %v2242 = vunpack.c.h.b16 %v1354
        %v2243 = vunpack.c.l.b16 %v1355
        %v2244 = vunpack.c.h.b16 %v1355
        %v2245 = vunpack.c.l.b16 %v1356
        %v2246 = vunpack.c.h.b16 %v1356
        %v2247 = vunpack.c.l.b16 %v1357
        %v2248 = vunpack.c.h.b16 %v1357
        %v2249 = vunpack.c.l.b16 %v1358
        %v2250 = vunpack.c.h.b16 %v1358
        %v2251 = vunpack.c.l.b16 %v1359
        %v2252 = vunpack.c.h.b16 %v1359
        %v2253 = vunpack.c.l.b16 %v1360
        %v2254 = vunpack.c.h.b16 %v1360
        %v2255 = vunpack.c.l.b16 %v1361
        %v2256 = vunpack.c.h.b16 %v1361
        %v2257 = vunpack.c.l.b16 %v1362
        %v2258 = vunpack.c.h.b16 %v1362
        %v2259 = vunpack.c.l.b16 %v1363
        %v2260 = vunpack.c.h.b16 %v1363
        %v2261 = vunpack.c.l.b16 %v1364
        %v2262 = vunpack.c.h.b16 %v1364
        %v2263 = vunpack.c.l.b16 %v1365
        %v2264 = vunpack.c.h.b16 %v1365
        %v2265 = vunpack.c.l.b16 %v1366
        %v2266 = vunpack.c.h.b16 %v1366
        %v2267 = vunpack.c.l.b16 %v1367
        %v2268 = vunpack.c.h.b16 %v1367
        %v2269 = vunpack.c.l.b16 %v1368
        %v2270 = vunpack.c.h.b16 %v1368
        %v2271 = vunpack.c.l.b16 %v1369
        %v2272 = vunpack.c.h.b16 %v1369
        %v2273 = vunpack.c.l.b16 %v1370
        %v2274 = vunpack.c.h.b16 %v1370
        %v2275 = vunpack.c.l.b16 %v1371
        %v2276 = vunpack.c.h.b16 %v1371
        %v2277 = vunpack.c.l.b16 %v1372
        %v2278 = vunpack.c.h.b16 %v1372
        %v2279 = vunpack.c.l.b16 %v1373
        %v2280 = vunpack.c.h.b16 %v1373
        %v2281 = vunpack.c.l.b16 %v1374
        %v2282 = vunpack.c.h.b16 %v1374
        %v2283 = vunpack.c.l.b16 %v1375
        %v2284 = vunpack.c.h.b16 %v1375
        %v2285 = vunpack.c.l.b16 %v1376
        %v2286 = vunpack.c.h.b16 %v1376
        %v2287 = vunpack.c.l.b16 %v1377
        %v2288 = vunpack.c.h.b16 %v1377
        %v2289 = vunpack.c.l.b16 %v1378
        %v2290 = vunpack.c.h.b16 %v1378
        %v2291 = vunpack.c.l.b16 %v1379
        %v2292 = vunpack.c.h.b16 %v1379
        %v2293 = vunpack.c.l.b16 %v1380
        %v2294 = vunpack.c.h.b16 %v1380
        %v2295 = vunpack.c.l.b16 %v1381
        %v2296 = vunpack.c.h.b16 %v1381
        %v2297 = vunpack.c.l.b16 %v1382
        %v2298 = vunpack.c.h.b16 %v1382
        %v2299 = vunpack.c.l.b16 %v1383
        %v2300 = vunpack.c.h.b16 %v1383
        %v2301 = vunpack.c.l.b16 %v1384
        %v2302 = vunpack.c.h.b16 %v1384
        %v2303 = vunpack.c.l.b16 %v1385
        %v2304 = vunpack.c.h.b16 %v1385
        %v2305 = vunpack.c.l.b16 %v1386
        %v2306 = vunpack.c.h.b16 %v1386
        %v2307 = vunpack.c.l.b16 %v1387
        %v2308 = vunpack.c.h.b16 %v1387
        %v2309 = vunpack.c.l.b16 %v1388
        %v2310 = vunpack.c.h.b16 %v1388
        %v2311 = vunpack.c.l.b16 %v1389
        %v2312 = vunpack.c.h.b16 %v1389
        %v2313 = vunpack.c.l.b16 %v1390
        %v2314 = vunpack.c.h.b16 %v1390
        %v2315 = vunpack.c.l.b16 %v1391
        %v2316 = vunpack.c.h.b16 %v1391
        %v2317 = vunpack.c.l.b16 %v1392
        %v2318 = vunpack.c.h.b16 %v1392
        %v2319 = vunpack.c.l.b16 %v1393
        %v2320 = vunpack.c.h.b16 %v1393
        %v2321 = vunpack.c.l.b16 %v1394
        %v2322 = vunpack.c.h.b16 %v1394
        %v2323 = vunpack.c.l.b16 %v1395
        %v2324 = vunpack.c.h.b16 %v1395
        %v2325 = vunpack.c.l.b16 %v1396
        %v2326 = vunpack.c.h.b16 %v1396
        %v2327 = vunpack.c.l.b16 %v1397
        %v2328 = vunpack.c.h.b16 %v1397
        %v2329 = vunpack.c.l.b16 %v1398
        %v2330 = vunpack.c.h.b16 %v1398
        %v2331 = vunpack.c.l.b16 %v1399
        %v2332 = vunpack.c.h.b16 %v1399
        %v2333 = vunpack.c.l.b16 %v1400
        %v2334 = vunpack.c.h.b16 %v1400
        %v2335 = vunpack.c.l.b16 %v1401
        %v2336 = vunpack.c.h.b16 %v1401
        %v2337 = vunpack.c.l.b16 %v1402
        %v2338 = vunpack.c.h.b16 %v1402
        %v2339 = vunpack.c.l.b16 %v1403
        %v2340 = vunpack.c.h.b16 %v1403
        %v2341 = vunpack.c.l.b16 %v1404
        %v2342 = vunpack.c.h.b16 %v1404
        %v2343 = vunpack.c.l.b16 %v1405
        %v2344 = vunpack.c.h.b16 %v1405
        %v2345 = vunpack.c.l.b16 %v1406
        %v2346 = vunpack.c.h.b16 %v1406
        %v2347 = vunpack.c.l.b16 %v1407
        %v2348 = vunpack.c.h.b16 %v1407
        %v2349 = vunpack.c.l.b16 %v1408
        %v2350 = vunpack.c.h.b16 %v1408
        %v2351 = vunpack.c.l.b16 %v1409
        %v2352 = vunpack.c.h.b16 %v1409
        %v2353 = vunpack.c.l.b16 %v1410
        %v2354 = vunpack.c.h.b16 %v1410
        %v2355 = vunpack.c.l.b16 %v1411
        %v2356 = vunpack.c.h.b16 %v1411
        %v2357 = vunpack.c.l.b16 %v1412
        %v2358 = vunpack.c.h.b16 %v1412
        %v2359 = vunpack.c.l.b16 %v1413
        %v2360 = vunpack.c.h.b16 %v1413
        %v2361 = vunpack.c.l.b16 %v1414
        %v2362 = vunpack.c.h.b16 %v1414
        %v2363 = vunpack.c.l.b16 %v1415
        %v2364 = vunpack.c.h.b16 %v1415
        %v2365 = vunpack.c.l.b16 %v1416
        %v2366 = vunpack.c.h.b16 %v1416
        %v2367 = vunpack.c.l.b16 %v1417
        %v2368 = vunpack.c.h.b16 %v1417
        %v2369 = vunpack.c.l.b16 %v1418
        %v2370 = vunpack.c.h.b16 %v1418
        %v2371 = vunpack.c.l.b16 %v1419
        %v2372 = vunpack.c.h.b16 %v1419
        %v2373 = vunpack.c.l.b16 %v1420
        %v2374 = vunpack.c.h.b16 %v1420
        %v2375 = vunpack.c.l.b16 %v1421
        %v2376 = vunpack.c.h.b16 %v1421
        %v2377 = vunpack.c.l.b16 %v1422
        %v2378 = vunpack.c.h.b16 %v1422
        %v2379 = vunpack.c.l.b16 %v1423
        %v2380 = vunpack.c.h.b16 %v1423
        %v2381 = vunpack.c.l.b16 %v1424
        %v2382 = vunpack.c.h.b16 %v1424
        %v2383 = vunpack.c.l.b16 %v1425
        %v2384 = vunpack.c.h.b16 %v1425
        %v2385 = vunpack.c.l.b16 %v1426
        %v2386 = vunpack.c.h.b16 %v1426
        %v2387 = vunpack.c.l.b16 %v1427
        %v2388 = vunpack.c.h.b16 %v1427
        %v2389 = vunpack.c.l.b16 %v1428
        %v2390 = vunpack.c.h.b16 %v1428
        %v2391 = vunpack.c.l.b16 %v1429
        %v2392 = vunpack.c.h.b16 %v1429
        %v2393 = vunpack.c.l.b16 %v1430
        %v2394 = vunpack.c.h.b16 %v1430
        %v2395 = vunpack.c.l.b16 %v1431
        %v2396 = vunpack.c.h.b16 %v1431
        %v2397 = vunpack.c.l.b16 %v1432
        %v2398 = vunpack.c.h.b16 %v1432
        %v2399 = vunpack.c.l.b16 %v1433
        %v2400 = vunpack.c.h.b16 %v1433
        %v2401 = vunpack.c.l.b16 %v1434
        %v2402 = vunpack.c.h.b16 %v1434
        %v2403 = vunpack.c.l.b16 %v1435
        %v2404 = vunpack.c.h.b16 %v1435
        %v2405 = vunpack.c.l.b16 %v1436
        %v2406 = vunpack.c.h.b16 %v1436
        %v2407 = vunpack.c.l.b16 %v1437
        %v2408 = vunpack.c.h.b16 %v1437
        %v2409 = vunpack.c.l.b16 %v1438
        %v2410 = vunpack.c.h.b16 %v1438
        %v2411 = vunpack.c.l.b16 %v1439
        %v2412 = vunpack.c.h.b16 %v1439
        %v2413 = vunpack.c.l.b16 %v1440
        %v2414 = vunpack.c.h.b16 %v1440
        %v2415 = vunpack.c.l.b16 %v1441
        %v2416 = vunpack.c.h.b16 %v1441
        %v2417 = vunpack.c.l.b16 %v1442
        %v2418 = vunpack.c.h.b16 %v1442
        %v2419 = vunpack.c.l.b16 %v1443
        %v2420 = vunpack.c.h.b16 %v1443
        %v2421 = vunpack.c.l.b16 %v1444
        %v2422 = vunpack.c.h.b16 %v1444
        %v2423 = vunpack.c.l.b16 %v1445
        %v2424 = vunpack.c.h.b16 %v1445
        %v2425 = vunpack.c.l.b16 %v1446
        %v2426 = vunpack.c.h.b16 %v1446
        %v2427 = vunpack.c.l.b16 %v1447
        %v2428 = vunpack.c.h.b16 %v1447
        %v2429 = vunpack.c.l.b16 %v1448
        %v2430 = vunpack.c.h.b16 %v1448
        %v2431 = vunpack.c.l.b16 %v1449
        %v2432 = vunpack.c.h.b16 %v1449
        %v2433 = vunpack.c.l.b16 %v1450
        %v2434 = vunpack.c.h.b16 %v1450
        %v2435 = vunpack.c.l.b16 %v1451
        %v2436 = vunpack.c.h.b16 %v1451
        %v2437 = vunpack.c.l.b16 %v1452
        %v2438 = vunpack.c.h.b16 %v1452
        %v2439 = vunpack.c.l.b16 %v1453
        %v2440 = vunpack.c.h.b16 %v1453
        %v2441 = vunpack.c.l.b16 %v1454
        %v2442 = vunpack.c.h.b16 %v1454
        %v2443 = vunpack.c.l.b16 %v1455
        %v2444 = vunpack.c.h.b16 %v1455
        %v2445 = vunpack.c.l.b16 %v1456
        %v2446 = vunpack.c.h.b16 %v1456
        %v2447 = vunpack.c.l.b16 %v1457
        %v2448 = vunpack.c.h.b16 %v1457
        %v2449 = vunpack.c.l.b16 %v1458
        %v2450 = vunpack.c.h.b16 %v1458
        %v2451 = vunpack.c.l.b16 %v1459
        %v2452 = vunpack.c.h.b16 %v1459
        %v2453 = vunpack.c.l.b16 %v1460
        %v2454 = vunpack.c.h.b16 %v1460
        %v2455 = vunpack.c.l.b16 %v1461
        %v2456 = vunpack.c.h.b16 %v1461
        %v2457 = vunpack.c.l.b16 %v1462
        %v2458 = vunpack.c.h.b16 %v1462
        %v2459 = vunpack.c.l.b16 %v1463
        %v2460 = vunpack.c.h.b16 %v1463
        %v2461 = vunpack.c.l.b16 %v1464
        %v2462 = vunpack.c.h.b16 %v1464
        %v2463 = vunpack.c.l.b16 %v1465
        %v2464 = vunpack.c.h.b16 %v1465
        %v2465 = vunpack.c.l.b16 %v1466
        %v2466 = vunpack.c.h.b16 %v1466
        %v2467 = vunpack.c.l.b16 %v1467
        %v2468 = vunpack.c.h.b16 %v1467
        %v2469 = vunpack.c.l.b16 %v1468
        %v2470 = vunpack.c.h.b16 %v1468
        %v2471 = vunpack.c.l.b16 %v1469
        %v2472 = vunpack.c.h.b16 %v1469
        %v2473 = vunpack.c.l.b16 %v1470
        %v2474 = vunpack.c.h.b16 %v1470
        %v2475 = vunpack.c.l.b16 %v1471
        %v2476 = vunpack.c.h.b16 %v1471
        %v2477 = vunpack.c.l.b16 %v1472
        %v2478 = vunpack.c.h.b16 %v1472
        %v2479 = vunpack.c.l.b16 %v1473
        %v2480 = vunpack.c.h.b16 %v1473
        %v2481 = vunpack.c.l.b16 %v1474
        %v2482 = vunpack.c.h.b16 %v1474
        %v2483 = vunpack.c.l.b16 %v1475
        %v2484 = vunpack.c.h.b16 %v1475
        %v2485 = vunpack.c.l.b16 %v1476
        %v2486 = vunpack.c.h.b16 %v1476
        %v2487 = vunpack.c.l.b16 %v1477
        %v2488 = vunpack.c.h.b16 %v1477
        %v2489 = vunpack.c.l.b16 %v1478
        %v2490 = vunpack.c.h.b16 %v1478
        %v2491 = vunpack.c.l.b16 %v1479
        %v2492 = vunpack.c.h.b16 %v1479
        %v2493 = vunpack.c.l.b16 %v1480
        %v2494 = vunpack.c.h.b16 %v1480
        %v2495 = vunpack.c.l.b16 %v1481
        %v2496 = vunpack.c.h.b16 %v1481
        %v2497 = vunpack.c.l.b16 %v1482
        %v2498 = vunpack.c.h.b16 %v1482
        %v2499 = vunpack.c.l.b16 %v1483
        %v2500 = vunpack.c.h.b16 %v1483
        %v2501 = vunpack.c.l.b16 %v1484
        %v2502 = vunpack.c.h.b16 %v1484
        %v2503 = vunpack.c.l.b16 %v1485
        %v2504 = vunpack.c.h.b16 %v1485
        %v2505 = vunpack.c.l.b16 %v1486
        %v2506 = vunpack.c.h.b16 %v1486
        %v2507 = vunpack.c.l.b16 %v1487
        %v2508 = vunpack.c.h.b16 %v1487
        %v2509 = vunpack.c.l.b16 %v1488
        %v2510 = vunpack.c.h.b16 %v1488
        %v2511 = vunpack.c.l.b16 %v1489
        %v2512 = vunpack.c.h.b16 %v1489
        %v2513 = vunpack.c.l.b16 %v1490
        %v2514 = vunpack.c.h.b16 %v1490
        %v2515 = vunpack.c.l.b16 %v1491
        %v2516 = vunpack.c.h.b16 %v1491
        %v2517 = vunpack.c.l.b16 %v1492
        %v2518 = vunpack.c.h.b16 %v1492
        %v2519 = vunpack.c.l.b16 %v1493
        %v2520 = vunpack.c.h.b16 %v1493
        %v2521 = vunpack.c.l.b16 %v1494
        %v2522 = vunpack.c.h.b16 %v1494
        %v2523 = vunpack.c.l.b16 %v1495
        %v2524 = vunpack.c.h.b16 %v1495
        %v2525 = vunpack.c.l.b16 %v1496
        %v2526 = vunpack.c.h.b16 %v1496
        %v2527 = vunpack.c.l.b16 %v1497
        %v2528 = vunpack.c.h.b16 %v1497
        %v2529 = vunpack.c.l.b16 %v1498
        %v2530 = vunpack.c.h.b16 %v1498
        %v2531 = vunpack.c.l.b16 %v1499
        %v2532 = vunpack.c.h.b16 %v1499
        %v2533 = vunpack.c.l.b16 %v1500
        %v2534 = vunpack.c.h.b16 %v1500
        %v2535 = vunpack.c.l.b16 %v1501
        %v2536 = vunpack.c.h.b16 %v1501
        %v2537 = vunpack.c.l.b16 %v1502
        %v2538 = vunpack.c.h.b16 %v1502
        %v2539 = vunpack.c.l.b16 %v1503
        %v2540 = vunpack.c.h.b16 %v1503
        %v2541 = vunpack.c.l.b16 %v1504
        %v2542 = vunpack.c.h.b16 %v1504
        %v2543 = vunpack.c.l.b16 %v1505
        %v2544 = vunpack.c.h.b16 %v1505
        %v2545 = vunpack.c.l.b16 %v1506
        %v2546 = vunpack.c.h.b16 %v1506
        %v2547 = vunpack.c.l.b16 %v1507
        %v2548 = vunpack.c.h.b16 %v1507
        %v2549 = vunpack.c.l.b16 %v1508
        %v2550 = vunpack.c.h.b16 %v1508
        %v2551 = vunpack.c.l.b16 %v1509
        %v2552 = vunpack.c.h.b16 %v1509
        %v2553 = vunpack.c.l.b16 %v1510
        %v2554 = vunpack.c.h.b16 %v1510
        %v2555 = vunpack.c.l.b16 %v1511
        %v2556 = vunpack.c.h.b16 %v1511
        %v2557 = vunpack.c.l.b16 %v1512
        %v2558 = vunpack.c.h.b16 %v1512
        %v2559 = vunpack.c.l.b16 %v1513
        %v2560 = vunpack.c.h.b16 %v1513
        %v2561 = vunpack.c.l.b16 %v1514
        %v2562 = vunpack.c.h.b16 %v1514
        %v2563 = vunpack.c.l.b16 %v1515
        %v2564 = vunpack.c.h.b16 %v1515
        %v2565 = vunpack.c.l.b16 %v1516
        %v2566 = vunpack.c.h.b16 %v1516
        %v2567 = vunpack.c.l.b16 %v1517
        %v2568 = vunpack.c.h.b16 %v1517
        %v2569 = vunpack.c.l.b16 %v1518
        %v2570 = vunpack.c.h.b16 %v1518
        %v2571 = vunpack.c.l.b16 %v1519
        %v2572 = vunpack.c.h.b16 %v1519
        %v2573 = vunpack.c.l.b16 %v1520
        %v2574 = vunpack.c.h.b16 %v1520
        %v2575 = vunpack.c.l.b16 %v1521
        %v2576 = vunpack.c.h.b16 %v1521
        %v2577 = vunpack.c.l.b16 %v1522
        %v2578 = vunpack.c.h.b16 %v1522
        %v2579 = vunpack.c.l.b16 %v1523
        %v2580 = vunpack.c.h.b16 %v1523
        %v2581 = vunpack.c.l.b16 %v1524
        %v2582 = vunpack.c.h.b16 %v1524
        %v2583 = vunpack.c.l.b16 %v1525
        %v2584 = vunpack.c.h.b16 %v1525
        %v2585 = vunpack.c.l.b16 %v1526
        %v2586 = vunpack.c.h.b16 %v1526
        %v2587 = vunpack.c.l.b16 %v1527
        %v2588 = vunpack.c.h.b16 %v1527
        %v2589 = vunpack.c.l.b16 %v1528
        %v2590 = vunpack.c.h.b16 %v1528
        %v2591 = vunpack.c.l.b16 %v1529
        %v2592 = vunpack.c.h.b16 %v1529
        %v2593 = vunpack.c.l.b16 %v1530
        %v2594 = vunpack.c.h.b16 %v1530
        %v2595 = vunpack.c.l.b16 %v1531
        %v2596 = vunpack.c.h.b16 %v1531
        %v2597 = vunpack.c.l.b16 %v1532
        %v2598 = vunpack.c.h.b16 %v1532
        %v2599 = vunpack.c.l.b16 %v1533
        %v2600 = vunpack.c.h.b16 %v1533
        %v2601 = vunpack.c.l.b16 %v1534
        %v2602 = vunpack.c.h.b16 %v1534
        %v2603 = vunpack.c.l.b16 %v1535
        %v2604 = vunpack.c.h.b16 %v1535
        %v2605 = vunpack.c.l.b16 %v1536
        %v2606 = vunpack.c.h.b16 %v1536
        %v2607 = vunpack.c.l.b16 %v1537
        %v2608 = vunpack.c.h.b16 %v1537
        %v2609 = vunpack.c.l.b16 %v1538
        %v2610 = vunpack.c.h.b16 %v1538
        %v2611 = vunpack.c.l.b16 %v1539
        %v2612 = vunpack.c.h.b16 %v1539
        %v2613 = vunpack.c.l.b16 %v1540
        %v2614 = vunpack.c.h.b16 %v1540
        %v2615 = vunpack.c.l.b16 %v1541
        %v2616 = vunpack.c.h.b16 %v1541
        %v2617 = vunpack.c.l.b16 %v1542
        %v2618 = vunpack.c.h.b16 %v1542
        %v2619 = vunpack.c.l.b16 %v1543
        %v2620 = vunpack.c.h.b16 %v1543
        %v2621 = vunpack.c.l.b16 %v1544
        %v2622 = vunpack.c.h.b16 %v1544
        %v2623 = vunpack.c.l.b16 %v1545
        %v2624 = vunpack.c.h.b16 %v1545
        %v2625 = vunpack.c.l.b16 %v1546
        %v2626 = vunpack.c.h.b16 %v1546
        %v2627 = vunpack.c.l.b16 %v1547
        %v2628 = vunpack.c.h.b16 %v1547
        %v2629 = vunpack.c.l.b16 %v1548
        %v2630 = vunpack.c.h.b16 %v1548
        %v2631 = vunpack.c.l.b16 %v1549
        %v2632 = vunpack.c.h.b16 %v1549
        %v2633 = vunpack.c.l.b16 %v1550
        %v2634 = vunpack.c.h.b16 %v1550
        %v2635 = vunpack.c.l.b16 %v1551
        %v2636 = vunpack.c.h.b16 %v1551
        %v2637 = vunpack.c.l.b16 %v1552
        %v2638 = vunpack.c.h.b16 %v1552
        %v2639 = vunpack.c.l.b16 %v1553
        %v2640 = vunpack.c.h.b16 %v1553
        %v2641 = vunpack.c.l.b16 %v1554
        %v2642 = vunpack.c.h.b16 %v1554
        %v2643 = vunpack.c.l.b16 %v1555
        %v2644 = vunpack.c.h.b16 %v1555
        %v2645 = vunpack.c.l.b16 %v1556
        %v2646 = vunpack.c.h.b16 %v1556
        %v2647 = vunpack.c.l.b16 %v1557
        %v2648 = vunpack.c.h.b16 %v1557
        %v2649 = vunpack.c.l.b16 %v1558
        %v2650 = vunpack.c.h.b16 %v1558
        %v2651 = vunpack.c.l.b16 %v1559
        %v2652 = vunpack.c.h.b16 %v1559
        %v2653 = vunpack.c.l.b16 %v1560
        %v2654 = vunpack.c.h.b16 %v1560
        %v2655 = vunpack.c.l.b16 %v1561
        %v2656 = vunpack.c.h.b16 %v1561
        %v2657 = vunpack.c.l.b16 %v1562
        %v2658 = vunpack.c.h.b16 %v1562
        %v2659 = vunpack.c.l.b16 %v1563
        %v2660 = vunpack.c.h.b16 %v1563
        %v2661 = vunpack.c.l.b16 %v1564
        %v2662 = vunpack.c.h.b16 %v1564
        %v2663 = vunpack.c.l.b16 %v1565
        %v2664 = vunpack.c.h.b16 %v1565
        %v2665 = vunpack.c.l.b16 %v1566
        %v2666 = vunpack.c.h.b16 %v1566
        %v2667 = vunpack.c.l.b16 %v1567
        %v2668 = vunpack.c.h.b16 %v1567
        %v2669 = vunpack.c.l.b16 %v1568
        %v2670 = vunpack.c.h.b16 %v1568
        %v2671 = vunpack.c.l.b16 %v1569
        %v2672 = vunpack.c.h.b16 %v1569
        %v2673 = vunpack.c.l.b16 %v1570
        %v2674 = vunpack.c.h.b16 %v1570
        %v2675 = vunpack.c.l.b16 %v1571
        %v2676 = vunpack.c.h.b16 %v1571
        %v2677 = vunpack.c.l.b16 %v1572
        %v2678 = vunpack.c.h.b16 %v1572
        %v2679 = vunpack.c.l.b16 %v1573
        %v2680 = vunpack.c.h.b16 %v1573
        %v2681 = vunpack.c.l.b16 %v1574
        %v2682 = vunpack.c.h.b16 %v1574
        %v2683 = vunpack.c.l.b16 %v1575
        %v2684 = vunpack.c.h.b16 %v1575
        %v2685 = vunpack.c.l.b16 %v1576
        %v2686 = vunpack.c.h.b16 %v1576
        %v2687 = vunpack.c.l.b16 %v1577
        %v2688 = vunpack.c.h.b16 %v1577
        %v2689 = vunpack.c.l.b16 %v1578
        %v2690 = vunpack.c.h.b16 %v1578
        %v2691 = vunpack.c.l.b16 %v1579
        %v2692 = vunpack.c.h.b16 %v1579
        %v2693 = vunpack.c.l.b16 %v1580
        %v2694 = vunpack.c.h.b16 %v1580
        %v2695 = vunpack.c.l.b16 %v1581
        %v2696 = vunpack.c.h.b16 %v1581
        %v2697 = vunpack.c.l.b16 %v1582
        %v2698 = vunpack.c.h.b16 %v1582
        %v2699 = vunpack.c.l.b16 %v1583
        %v2700 = vunpack.c.h.b16 %v1583
        %v2701 = vunpack.c.l.b16 %v1584
        %v2702 = vunpack.c.h.b16 %v1584
        %v2703 = vunpack.c.l.b16 %v1585
        %v2704 = vunpack.c.h.b16 %v1585
        %v2705 = vunpack.c.l.b16 %v1586
        %v2706 = vunpack.c.h.b16 %v1586
        %v2707 = vunpack.c.l.b16 %v1587
        %v2708 = vunpack.c.h.b16 %v1587
        %v2709 = vunpack.c.l.b16 %v1588
        %v2710 = vunpack.c.h.b16 %v1588
        %v2711 = vunpack.c.l.b16 %v1589
        %v2712 = vunpack.c.h.b16 %v1589
        %v2713 = vunpack.c.l.b16 %v1590
        %v2714 = vunpack.c.h.b16 %v1590
        %v2715 = vunpack.c.l.b16 %v1591
        %v2716 = vunpack.c.h.b16 %v1591
        %v2717 = vunpack.c.l.b16 %v1592
        %v2718 = vunpack.c.h.b16 %v1592
        %v2719 = vunpack.c.l.b16 %v1593
        %v2720 = vunpack.c.h.b16 %v1593
        %v2721 = vunpack.c.l.b16 %v1594
        %v2722 = vunpack.c.h.b16 %v1594
        %v2723 = vunpack.c.l.b16 %v1595
        %v2724 = vunpack.c.h.b16 %v1595
        %v2725 = vunpack.c.l.b16 %v1596
        %v2726 = vunpack.c.h.b16 %v1596
        %v2727 = vunpack.c.l.b16 %v1597
        %v2728 = vunpack.c.h.b16 %v1597
        %v2729 = vunpack.c.l.b16 %v1598
        %v2730 = vunpack.c.h.b16 %v1598
        %v2731 = vunpack.c.l.b16 %v1599
        %v2732 = vunpack.c.h.b16 %v1599
        %v2733 = vunpack.c.l.b16 %v1600
        %v2734 = vunpack.c.h.b16 %v1600
        %v2735 = vunpack.c.l.b16 %v1601
        %v2736 = vunpack.c.h.b16 %v1601
        %v2737 = vunpack.c.l.b16 %v1602
        %v2738 = vunpack.c.h.b16 %v1602
        %v2739 = vunpack.c.l.b16 %v1603
        %v2740 = vunpack.c.h.b16 %v1603
        %v2741 = vunpack.c.l.b16 %v1604
        %v2742 = vunpack.c.h.b16 %v1604
        %v2743 = vunpack.c.l.b16 %v1605
        %v2744 = vunpack.c.h.b16 %v1605
        %v2745 = vunpack.c.l.b16 %v1606
        %v2746 = vunpack.c.h.b16 %v1606
        %v2747 = vunpack.c.l.b16 %v1607
        %v2748 = vunpack.c.h.b16 %v1607
        %v2749 = vunpack.c.l.b16 %v1608
        %v2750 = vunpack.c.h.b16 %v1608
        %v2751 = vunpack.c.l.b16 %v1609
        %v2752 = vunpack.c.h.b16 %v1609
        %v2753 = vunpack.c.l.b16 %v1610
        %v2754 = vunpack.c.h.b16 %v1610
        %v2755 = vunpack.c.l.b16 %v1611
        %v2756 = vunpack.c.h.b16 %v1611
        %v2757 = vunpack.c.l.b16 %v1612
        %v2758 = vunpack.c.h.b16 %v1612
        %v2759 = vunpack.c.l.b16 %v1613
        %v2760 = vunpack.c.h.b16 %v1613
        %v2761 = vunpack.c.l.b16 %v1614
        %v2762 = vunpack.c.h.b16 %v1614
        %v2763 = vunpack.c.l.b16 %v1615
        %v2764 = vunpack.c.h.b16 %v1615
        %v2765 = vunpack.c.l.b16 %v1616
        %v2766 = vunpack.c.h.b16 %v1616
        %v2767 = vunpack.c.l.b16 %v1617
        %v2768 = vunpack.c.h.b16 %v1617
        %v2769 = vunpack.c.l.b16 %v1618
        %v2770 = vunpack.c.h.b16 %v1618
        %v2771 = vunpack.c.l.b16 %v1619
        %v2772 = vunpack.c.h.b16 %v1619
        %v2773 = vunpack.c.l.b16 %v1620
        %v2774 = vunpack.c.h.b16 %v1620
        %v2775 = vunpack.c.l.b16 %v1621
        %v2776 = vunpack.c.h.b16 %v1621
        %v2777 = vunpack.c.l.b16 %v1622
        %v2778 = vunpack.c.h.b16 %v1622
        %v2779 = vunpack.c.l.b16 %v1623
        %v2780 = vunpack.c.h.b16 %v1623
        %v2781 = vunpack.c.l.b16 %v1624
        %v2782 = vunpack.c.h.b16 %v1624
        %v2783 = vunpack.c.l.b16 %v1625
        %v2784 = vunpack.c.h.b16 %v1625
        %v2785 = vunpack.c.l.b16 %v1626
        %v2786 = vunpack.c.h.b16 %v1626
        %v2787 = vunpack.c.l.b16 %v1627
        %v2788 = vunpack.c.h.b16 %v1627
        %v2789 = vunpack.c.l.b16 %v1628
        %v2790 = vunpack.c.h.b16 %v1628
        %v2791 = vunpack.c.l.b16 %v1629
        %v2792 = vunpack.c.h.b16 %v1629
        %v2793 = vunpack.c.l.b16 %v1630
        %v2794 = vunpack.c.h.b16 %v1630
        %v2795 = vunpack.c.l.b16 %v1631
        %v2796 = vunpack.c.h.b16 %v1631
        %v2797 = vunpack.c.l.b16 %v1632
        %v2798 = vunpack.c.h.b16 %v1632
        %v2799 = vunpack.c.l.b16 %v1633
        %v2800 = vunpack.c.h.b16 %v1633
        %v2801 = vunpack.c.l.b16 %v1634
        %v2802 = vunpack.c.h.b16 %v1634
        %v2803 = vunpack.c.l.b16 %v1635
        %v2804 = vunpack.c.h.b16 %v1635
        %v2805 = vunpack.c.l.b16 %v1636
        %v2806 = vunpack.c.h.b16 %v1636
        %v2807 = vunpack.c.l.b16 %v1637
        %v2808 = vunpack.c.h.b16 %v1637
        %v2809 = vunpack.c.l.b16 %v1638
        %v2810 = vunpack.c.h.b16 %v1638
        %v2811 = vunpack.c.l.b16 %v1639
        %v2812 = vunpack.c.h.b16 %v1639
        %v2813 = vunpack.c.l.b16 %v1640
        %v2814 = vunpack.c.h.b16 %v1640
        %v2815 = vunpack.c.l.b16 %v1641
        %v2816 = vunpack.c.h.b16 %v1641
        %v2817 = vunpack.c.l.b16 %v1642
        %v2818 = vunpack.c.h.b16 %v1642
        %v2819 = vunpack.c.l.b16 %v1643
        %v2820 = vunpack.c.h.b16 %v1643
        %v2821 = vunpack.c.l.b16 %v1644
        %v2822 = vunpack.c.h.b16 %v1644
        %v2823 = vunpack.c.l.b16 %v1645
        %v2824 = vunpack.c.h.b16 %v1645
        %v2825 = vunpack.c.l.b16 %v1646
        %v2826 = vunpack.c.h.b16 %v1646
        %v2827 = vunpack.c.l.b16 %v1647
        %v2828 = vunpack.c.h.b16 %v1647
        %v2829 = vunpack.c.l.b16 %v1648
        %v2830 = vunpack.c.h.b16 %v1648
        %v2831 = vunpack.c.l.b16 %v1649
        %v2832 = vunpack.c.h.b16 %v1649
        %v2833 = vunpack.c.l.b16 %v1650
        %v2834 = vunpack.c.h.b16 %v1650
        %v2835 = vunpack.c.l.b16 %v1651
        %v2836 = vunpack.c.h.b16 %v1651
        %v2837 = vunpack.c.l.b16 %v1652
        %v2838 = vunpack.c.h.b16 %v1652
        %v2839 = vunpack.c.l.b16 %v1653
        %v2840 = vunpack.c.h.b16 %v1653
        %v2841 = vunpack.c.l.b16 %v1654
        %v2842 = vunpack.c.h.b16 %v1654
        %v2843 = vunpack.c.l.b16 %v1655
        %v2844 = vunpack.c.h.b16 %v1655
        %v2845 = vunpack.c.l.b16 %v1656
        %v2846 = vunpack.c.h.b16 %v1656
        %v2847 = vunpack.c.l.b16 %v1657
        %v2848 = vunpack.c.h.b16 %v1657
        %v2849 = vunpack.c.l.b16 %v1658
        %v2850 = vunpack.c.h.b16 %v1658
        %v2851 = vunpack.c.l.b16 %v1659
        %v2852 = vunpack.c.h.b16 %v1659
        %v2853 = vunpack.c.l.b16 %v1660
        %v2854 = vunpack.c.h.b16 %v1660
        %v2855 = vunpack.c.l.b16 %v1661
        %v2856 = vunpack.c.h.b16 %v1661
        %v2857 = vunpack.c.l.b16 %v1662
        %v2858 = vunpack.c.h.b16 %v1662
        %v2859 = vunpack.c.l.b16 %v1663
        %v2860 = vunpack.c.h.b16 %v1663
        %v2861 = vunpack.c.l.b16 %v1664
        %v2862 = vunpack.c.h.b16 %v1664
        %v2863 = vunpack.c.l.b16 %v1665
        %v2864 = vunpack.c.h.b16 %v1665
        %v2865 = vunpack.c.l.b16 %v1666
        %v2866 = vunpack.c.h.b16 %v1666
        %v2867 = vunpack.c.l.b16 %v1667
        %v2868 = vunpack.c.h.b16 %v1667
        %v2869 = vunpack.c.l.b16 %v1668
        %v2870 = vunpack.c.h.b16 %v1668
        %v2871 = vunpack.c.l.b16 %v1669
        %v2872 = vunpack.c.h.b16 %v1669
        %v2873 = vunpack.c.l.b16 %v1670
        %v2874 = vunpack.c.h.b16 %v1670
        %v2875 = vunpack.c.l.b16 %v1671
        %v2876 = vunpack.c.h.b16 %v1671
        %v2877 = vunpack.c.l.b16 %v1672
        %v2878 = vunpack.c.h.b16 %v1672
        %v2879 = vunpack.c.l.b16 %v1673
        %v2880 = vunpack.c.h.b16 %v1673
        %v2881 = vunpack.c.l.b16 %v1674
        %v2882 = vunpack.c.h.b16 %v1674
        %v2883 = vunpack.c.l.b16 %v1675
        %v2884 = vunpack.c.h.b16 %v1675
        %v2885 = vunpack.c.l.b16 %v1676
        %v2886 = vunpack.c.h.b16 %v1676
        %v2887 = vunpack.c.l.b16 %v1677
        %v2888 = vunpack.c.h.b16 %v1677
        %v2889 = vunpack.c.l.b16 %v1678
        %v2890 = vunpack.c.h.b16 %v1678
        %v2891 = vpack.c.b16 %v2093, %v2091
        %v2892 = vpack.c.b16 %v2094, %v2092
        %v2893 = vpack.c.b16 %v2097, %v2095
        %v2894 = vpack.c.b16 %v2098, %v2096
        %v2895 = vpack.c.b16 %v2101, %v2099
        %v2896 = vpack.c.b16 %v2102, %v2100
        %v2897 = vpack.c.b16 %v2105, %v2103
        %v2898 = vpack.c.b16 %v2106, %v2104
        %v2899 = vpack.c.b16 %v2109, %v2107
        %v2900 = vpack.c.b16 %v2110, %v2108
        %v2901 = vpack.c.b16 %v2113, %v2111
        %v2902 = vpack.c.b16 %v2114, %v2112
        %v2903 = vpack.c.b16 %v2117, %v2115
        %v2904 = vpack.c.b16 %v2118, %v2116
        %v2905 = vpack.c.b16 %v2121, %v2119
        %v2906 = vpack.c.b16 %v2122, %v2120
        %v2907 = vpack.c.b16 %v2125, %v2123
        %v2908 = vpack.c.b16 %v2126, %v2124
        %v2909 = vpack.c.b16 %v2129, %v2127
        %v2910 = vpack.c.b16 %v2130, %v2128
        %v2911 = vpack.c.b16 %v2133, %v2131
        %v2912 = vpack.c.b16 %v2134, %v2132
        %v2913 = vpack.c.b16 %v2137, %v2135
        %v2914 = vpack.c.b16 %v2138, %v2136
        %v2915 = vpack.c.b16 %v2141, %v2139
        %v2916 = vpack.c.b16 %v2142, %v2140
        %v2917 = vpack.c.b16 %v2145, %v2143
        %v2918 = vpack.c.b16 %v2146, %v2144
        %v2919 = vpack.c.b16 %v2149, %v2147
        %v2920 = vpack.c.b16 %v2150, %v2148
        %v2921 = vpack.c.b16 %v2153, %v2151
        %v2922 = vpack.c.b16 %v2154, %v2152
        %v2923 = vpack.c.b16 %v2157, %v2155
        %v2924 = vpack.c.b16 %v2158, %v2156
        %v2925 = vpack.c.b16 %v2161, %v2159
        %v2926 = vpack.c.b16 %v2162, %v2160
        %v2927 = vpack.c.b16 %v2165, %v2163
        %v2928 = vpack.c.b16 %v2166, %v2164
        %v2929 = vpack.c.b16 %v2169, %v2167
        %v2930 = vpack.c.b16 %v2170, %v2168
        %v2931 = vpack.c.b16 %v2173, %v2171
        %v2932 = vpack.c.b16 %v2174, %v2172
        %v2933 = vpack.c.b16 %v2177, %v2175
        %v2934 = vpack.c.b16 %v2178, %v2176
        %v2935 = vpack.c.b16 %v2181, %v2179
        %v2936 = vpack.c.b16 %v2182, %v2180
        %v2937 = vpack.c.b16 %v2185, %v2183
        %v2938 = vpack.c.b16 %v2186, %v2184
        %v2939 = vpack.c.b16 %v2189, %v2187
        %v2940 = vpack.c.b16 %v2190, %v2188
        %v2941 = vpack.c.b16 %v2193, %v2191
        %v2942 = vpack.c.b16 %v2194, %v2192
        %v2943 = vpack.c.b16 %v2197, %v2195
        %v2944 = vpack.c.b16 %v2198, %v2196
        %v2945 = vpack.c.b16 %v2201, %v2199
        %v2946 = vpack.c.b16 %v2202, %v2200
        %v2947 = vpack.c.b16 %v2205, %v2203
        %v2948 = vpack.c.b16 %v2206, %v2204
        %v2949 = vpack.c.b16 %v2209, %v2207
        %v2950 = vpack.c.b16 %v2210, %v2208
        %v2951 = vpack.c.b16 %v2213, %v2211
        %v2952 = vpack.c.b16 %v2214, %v2212
        %v2953 = vpack.c.b16 %v2217, %v2215
        %v2954 = vpack.c.b16 %v2218, %v2216
        %v2955 = vpack.c.b16 %v2221, %v2219
        %v2956 = vpack.c.b16 %v2222, %v2220
        %v2957 = vpack.c.b16 %v2225, %v2223
        %v2958 = vpack.c.b16 %v2226, %v2224
        %v2959 = vpack.c.b16 %v2229, %v2227
        %v2960 = vpack.c.b16 %v2230, %v2228
        %v2961 = vpack.c.b16 %v2233, %v2231
        %v2962 = vpack.c.b16 %v2234, %v2232
        %v2963 = vpack.c.b16 %v2237, %v2235
        %v2964 = vpack.c.b16 %v2238, %v2236
        %v2965 = vpack.c.b16 %v2241, %v2239
        %v2966 = vpack.c.b16 %v2242, %v2240
        %v2967 = vpack.c.b16 %v2245, %v2243
        %v2968 = vpack.c.b16 %v2246, %v2244
        %v2969 = vpack.c.b16 %v2249, %v2247
        %v2970 = vpack.c.b16 %v2250, %v2248
        %v2971 = vpack.c.b16 %v2253, %v2251
        %v2972 = vpack.c.b16 %v2254, %v2252
        %v2973 = vpack.c.b16 %v2257, %v2255
        %v2974 = vpack.c.b16 %v2258, %v2256
        %v2975 = vpack.c.b16 %v2261, %v2259
        %v2976 = vpack.c.b16 %v2262, %v2260
        %v2977 = vpack.c.b16 %v2265, %v2263
        %v2978 = vpack.c.b16 %v2266, %v2264
        %v2979 = vpack.c.b16 %v2269, %v2267
        %v2980 = vpack.c.b16 %v2270, %v2268
        %v2981 = vpack.c.b16 %v2273, %v2271
        %v2982 = vpack.c.b16 %v2274, %v2272
        %v2983 = vpack.c.b16 %v2277, %v2275
        %v2984 = vpack.c.b16 %v2278, %v2276
        %v2985 = vpack.c.b16 %v2281, %v2279
        %v2986 = vpack.c.b16 %v2282, %v2280
        %v2987 = vpack.c.b16 %v2285, %v2283
        %v2988 = vpack.c.b16 %v2286, %v2284
        %v2989 = vpack.c.b16 %v2289, %v2287
        %v2990 = vpack.c.b16 %v2290, %v2288
        %v2991 = vpack.c.b16 %v2293, %v2291
        %v2992 = vpack.c.b16 %v2294, %v2292
        %v2993 = vpack.c.b16 %v2297, %v2295
        %v2994 = vpack.c.b16 %v2298, %v2296
        %v2995 = vpack.c.b16 %v2301, %v2299
        %v2996 = vpack.c.b16 %v2302, %v2300
        %v2997 = vpack.c.b16 %v2305, %v2303
        %v2998 = vpack.c.b16 %v2306, %v2304
        %v2999 = vpack.c.b16 %v2309, %v2307
        %v3000 = vpack.c.b16 %v2310, %v2308
        %v3001 = vpack.c.b16 %v2313, %v2311
        %v3002 = vpack.c.b16 %v2314, %v2312
        %v3003 = vpack.c.b16 %v2317, %v2315
        %v3004 = vpack.c.b16 %v2318, %v2316
        %v3005 = vpack.c.b16 %v2321, %v2319
        %v3006 = vpack.c.b16 %v2322, %v2320
        %v3007 = vpack.c.b16 %v2325, %v2323
        %v3008 = vpack.c.b16 %v2326, %v2324
        %v3009 = vpack.c.b16 %v2329, %v2327
        %v3010 = vpack.c.b16 %v2330, %v2328
        %v3011 = vpack.c.b16 %v2333, %v2331
        %v3012 = vpack.c.b16 %v2334, %v2332
        %v3013 = vpack.c.b16 %v2337, %v2335
        %v3014 = vpack.c.b16 %v2338, %v2336
        %v3015 = vpack.c.b16 %v2341, %v2339
        %v3016 = vpack.c.b16 %v2342, %v2340
        %v3017 = vpack.c.b16 %v2345, %v2343
        %v3018 = vpack.c.b16 %v2346, %v2344
        %v3019 = vpack.c.b16 %v2349, %v2347
        %v3020 = vpack.c.b16 %v2350, %v2348
        %v3021 = vpack.c.b16 %v2353, %v2351
        %v3022 = vpack.c.b16 %v2354, %v2352
        %v3023 = vpack.c.b16 %v2357, %v2355
        %v3024 = vpack.c.b16 %v2358, %v2356
        %v3025 = vpack.c.b16 %v2361, %v2359
        %v3026 = vpack.c.b16 %v2362, %v2360
        %v3027 = vpack.c.b16 %v2365, %v2363
        %v3028 = vpack.c.b16 %v2366, %v2364
        %v3029 = vpack.c.b16 %v2369, %v2367
        %v3030 = vpack.c.b16 %v2370, %v2368
        %v3031 = vpack.c.b16 %v2373, %v2371
        %v3032 = vpack.c.b16 %v2374, %v2372
        %v3033 = vpack.c.b16 %v2377, %v2375
        %v3034 = vpack.c.b16 %v2378, %v2376
        %v3035 = vpack.c.b16 %v2381, %v2379
        %v3036 = vpack.c.b16 %v2382, %v2380
        %v3037 = vpack.c.b16 %v2385, %v2383
        %v3038 = vpack.c.b16 %v2386, %v2384
        %v3039 = vpack.c.b16 %v2389, %v2387
        %v3040 = vpack.c.b16 %v2390, %v2388
        %v3041 = vpack.c.b16 %v2393, %v2391
        %v3042 = vpack.c.b16 %v2394, %v2392
        %v3043 = vpack.c.b16 %v2397, %v2395
        %v3044 = vpack.c.b16 %v2398, %v2396
        %v3045 = vpack.c.b16 %v2401, %v2399
        %v3046 = vpack.c.b16 %v2402, %v2400
        %v3047 = vpack.c.b16 %v2405, %v2403
        %v3048 = vpack.c.b16 %v2406, %v2404
        %v3049 = vpack.c.b16 %v2409, %v2407
        %v3050 = vpack.c.b16 %v2410, %v2408
        %v3051 = vpack.c.b16 %v2413, %v2411
        %v3052 = vpack.c.b16 %v2414, %v2412
        %v3053 = vpack.c.b16 %v2417, %v2415
        %v3054 = vpack.c.b16 %v2418, %v2416
        %v3055 = vpack.c.b16 %v2421, %v2419
        %v3056 = vpack.c.b16 %v2422, %v2420
        %v3057 = vpack.c.b16 %v2425, %v2423
        %v3058 = vpack.c.b16 %v2426, %v2424
        %v3059 = vpack.c.b16 %v2429, %v2427
        %v3060 = vpack.c.b16 %v2430, %v2428
        %v3061 = vpack.c.b16 %v2433, %v2431
        %v3062 = vpack.c.b16 %v2434, %v2432
        %v3063 = vpack.c.b16 %v2437, %v2435
        %v3064 = vpack.c.b16 %v2438, %v2436
        %v3065 = vpack.c.b16 %v2441, %v2439
        %v3066 = vpack.c.b16 %v2442, %v2440
        %v3067 = vpack.c.b16 %v2445, %v2443
        %v3068 = vpack.c.b16 %v2446, %v2444
        %v3069 = vpack.c.b16 %v2449, %v2447
        %v3070 = vpack.c.b16 %v2450, %v2448
        %v3071 = vpack.c.b16 %v2453, %v2451
        %v3072 = vpack.c.b16 %v2454, %v2452
        %v3073 = vpack.c.b16 %v2457, %v2455
        %v3074 = vpack.c.b16 %v2458, %v2456
        %v3075 = vpack.c.b16 %v2461, %v2459
        %v3076 = vpack.c.b16 %v2462, %v2460
        %v3077 = vpack.c.b16 %v2465, %v2463
        %v3078 = vpack.c.b16 %v2466, %v2464
        %v3079 = vpack.c.b16 %v2469, %v2467
        %v3080 = vpack.c.b16 %v2470, %v2468
        %v3081 = vpack.c.b16 %v2473, %v2471
        %v3082 = vpack.c.b16 %v2474, %v2472
        %v3083 = vpack.c.b16 %v2477, %v2475
        %v3084 = vpack.c.b16 %v2478, %v2476
        %v3085 = vpack.c.b16 %v2481, %v2479
        %v3086 = vpack.c.b16 %v2482, %v2480
        %v3087 = vpack.c.b16 %v2485, %v2483
        %v3088 = vpack.c.b16 %v2486, %v2484
        %v3089 = vpack.c.b16 %v2489, %v2487
        %v3090 = vpack.c.b16 %v2490, %v2488
        %v3091 = vpack.c.b16 %v2493, %v2491
        %v3092 = vpack.c.b16 %v2494, %v2492
        %v3093 = vpack.c.b16 %v2497, %v2495
        %v3094 = vpack.c.b16 %v2498, %v2496
        %v3095 = vpack.c.b16 %v2501, %v2499
        %v3096 = vpack.c.b16 %v2502, %v2500
        %v3097 = vpack.c.b16 %v2505, %v2503
        %v3098 = vpack.c.b16 %v2506, %v2504
        %v3099 = vpack.c.b16 %v2509, %v2507
        %v3100 = vpack.c.b16 %v2510, %v2508
        %v3101 = vpack.c.b16 %v2513, %v2511
        %v3102 = vpack.c.b16 %v2514, %v2512
        %v3103 = vpack.c.b16 %v2517, %v2515
        %v3104 = vpack.c.b16 %v2518, %v2516
        %v3105 = vpack.c.b16 %v2521, %v2519
        %v3106 = vpack.c.b16 %v2522, %v2520
        %v3107 = vpack.c.b16 %v2525, %v2523
        %v3108 = vpack.c.b16 %v2526, %v2524
        %v3109 = vpack.c.b16 %v2529, %v2527
        %v3110 = vpack.c.b16 %v2530, %v2528
        %v3111 = vpack.c.b16 %v2533, %v2531
        %v3112 = vpack.c.b16 %v2534, %v2532
        %v3113 = vpack.c.b16 %v2537, %v2535
        %v3114 = vpack.c.b16 %v2538, %v2536
        %v3115 = vpack.c.b16 %v2541, %v2539
        %v3116 = vpack.c.b16 %v2542, %v2540
        %v3117 = vpack.c.b16 %v2545, %v2543
        %v3118 = vpack.c.b16 %v2546, %v2544
        %v3119 = vpack.c.b16 %v2549, %v2547
        %v3120 = vpack.c.b16 %v2550, %v2548
        %v3121 = vpack.c.b16 %v2553, %v2551
        %v3122 = vpack.c.b16 %v2554, %v2552
        %v3123 = vpack.c.b16 %v2557, %v2555
        %v3124 = vpack.c.b16 %v2558, %v2556
        %v3125 = vpack.c.b16 %v2561, %v2559
        %v3126 = vpack.c.b16 %v2562, %v2560
        %v3127 = vpack.c.b16 %v2565, %v2563
        %v3128 = vpack.c.b16 %v2566, %v2564
        %v3129 = vpack.c.b16 %v2569, %v2567
        %v3130 = vpack.c.b16 %v2570, %v2568
        %v3131 = vpack.c.b16 %v2573, %v2571
        %v3132 = vpack.c.b16 %v2574, %v2572
        %v3133 = vpack.c.b16 %v2577, %v2575
        %v3134 = vpack.c.b16 %v2578, %v2576
        %v3135 = vpack.c.b16 %v2581, %v2579
        %v3136 = vpack.c.b16 %v2582, %v2580
        %v3137 = vpack.c.b16 %v2585, %v2583
        %v3138 = vpack.c.b16 %v2586, %v2584
        %v3139 = vpack.c.b16 %v2589, %v2587
        %v3140 = vpack.c.b16 %v2590, %v2588
        %v3141 = vpack.c.b16 %v2593, %v2591
        %v3142 = vpack.c.b16 %v2594, %v2592
        %v3143 = vpack.c.b16 %v2597, %v2595
        %v3144 = vpack.c.b16 %v2598, %v2596
        %v3145 = vpack.c.b16 %v2601, %v2599
        %v3146 = vpack.c.b16 %v2602, %v2600
        %v3147 = vpack.c.b16 %v2605, %v2603
        %v3148 = vpack.c.b16 %v2606, %v2604
        %v3149 = vpack.c.b16 %v2609, %v2607
        %v3150 = vpack.c.b16 %v2610, %v2608
        %v3151 = vpack.c.b16 %v2613, %v2611
        %v3152 = vpack.c.b16 %v2614, %v2612
        %v3153 = vpack.c.b16 %v2617, %v2615
        %v3154 = vpack.c.b16 %v2618, %v2616
        %v3155 = vpack.c.b16 %v2621, %v2619
        %v3156 = vpack.c.b16 %v2622, %v2620
        %v3157 = vpack.c.b16 %v2625, %v2623
        %v3158 = vpack.c.b16 %v2626, %v2624
        %v3159 = vpack.c.b16 %v2629, %v2627
        %v3160 = vpack.c.b16 %v2630, %v2628
        %v3161 = vpack.c.b16 %v2633, %v2631
        %v3162 = vpack.c.b16 %v2634, %v2632
        %v3163 = vpack.c.b16 %v2637, %v2635
        %v3164 = vpack.c.b16 %v2638, %v2636
        %v3165 = vpack.c.b16 %v2641, %v2639
        %v3166 = vpack.c.b16 %v2642, %v2640
        %v3167 = vpack.c.b16 %v2645, %v2643
        %v3168 = vpack.c.b16 %v2646, %v2644
        %v3169 = vpack.c.b16 %v2649, %v2647
        %v3170 = vpack.c.b16 %v2650, %v2648
        %v3171 = vpack.c.b16 %v2653, %v2651
        %v3172 = vpack.c.b16 %v2654, %v2652
        %v3173 = vpack.c.b16 %v2657, %v2655
        %v3174 = vpack.c.b16 %v2658, %v2656
        %v3175 = vpack.c.b16 %v2661, %v2659
        %v3176 = vpack.c.b16 %v2662, %v2660
        %v3177 = vpack.c.b16 %v2665, %v2663
        %v3178 = vpack.c.b16 %v2666, %v2664
        %v3179 = vpack.c.b16 %v2669, %v2667
        %v3180 = vpack.c.b16 %v2670, %v2668
        %v3181 = vpack.c.b16 %v2673, %v2671
        %v3182 = vpack.c.b16 %v2674, %v2672
        %v3183 = vpack.c.b16 %v2677, %v2675
        %v3184 = vpack.c.b16 %v2678, %v2676
        %v3185 = vpack.c.b16 %v2681, %v2679
        %v3186 = vpack.c.b16 %v2682, %v2680
        %v3187 = vpack.c.b16 %v2685, %v2683
        %v3188 = vpack.c.b16 %v2686, %v2684
        %v3189 = vpack.c.b16 %v2689, %v2687
        %v3190 = vpack.c.b16 %v2690, %v2688
        %v3191 = vpack.c.b16 %v2693, %v2691
        %v3192 = vpack.c.b16 %v2694, %v2692
        %v3193 = vpack.c.b16 %v2697, %v2695
        %v3194 = vpack.c.b16 %v2698, %v2696
        %v3195 = vpack.c.b16 %v2701, %v2699
        %v3196 = vpack.c.b16 %v2702, %v2700
        %v3197 = vpack.c.b16 %v2705, %v2703
        %v3198 = vpack.c.b16 %v2706, %v2704
        %v3199 = vpack.c.b16 %v2709, %v2707
        %v3200 = vpack.c.b16 %v2710, %v2708
        %v3201 = vpack.c.b16 %v2713, %v2711
        %v3202 = vpack.c.b16 %v2714, %v2712
        %v3203 = vpack.c.b16 %v2717, %v2715
        %v3204 = vpack.c.b16 %v2718, %v2716
        %v3205 = vpack.c.b16 %v2721, %v2719
        %v3206 = vpack.c.b16 %v2722, %v2720
        %v3207 = vpack.c.b16 %v2725, %v2723
        %v3208 = vpack.c.b16 %v2726, %v2724
        %v3209 = vpack.c.b16 %v2729, %v2727
        %v3210 = vpack.c.b16 %v2730, %v2728
        %v3211 = vpack.c.b16 %v2733, %v2731
        %v3212 = vpack.c.b16 %v2734, %v2732
        %v3213 = vpack.c.b16 %v2737, %v2735
        %v3214 = vpack.c.b16 %v2738, %v2736
        %v3215 = vpack.c.b16 %v2741, %v2739
        %v3216 = vpack.c.b16 %v2742, %v2740
        %v3217 = vpack.c.b16 %v2745, %v2743
        %v3218 = vpack.c.b16 %v2746, %v2744
        %v3219 = vpack.c.b16 %v2749, %v2747
        %v3220 = vpack.c.b16 %v2750, %v2748
        %v3221 = vpack.c.b16 %v2753, %v2751
        %v3222 = vpack.c.b16 %v2754, %v2752
        %v3223 = vpack.c.b16 %v2757, %v2755
        %v3224 = vpack.c.b16 %v2758, %v2756
        %v3225 = vpack.c.b16 %v2761, %v2759
        %v3226 = vpack.c.b16 %v2762, %v2760
        %v3227 = vpack.c.b16 %v2765, %v2763
        %v3228 = vpack.c.b16 %v2766, %v2764
        %v3229 = vpack.c.b16 %v2769, %v2767
        %v3230 = vpack.c.b16 %v2770, %v2768
        %v3231 = vpack.c.b16 %v2773, %v2771
        %v3232 = vpack.c.b16 %v2774, %v2772
        %v3233 = vpack.c.b16 %v2777, %v2775
        %v3234 = vpack.c.b16 %v2778, %v2776
        %v3235 = vpack.c.b16 %v2781, %v2779
        %v3236 = vpack.c.b16 %v2782, %v2780
        %v3237 = vpack.c.b16 %v2785, %v2783
        %v3238 = vpack.c.b16 %v2786, %v2784
        %v3239 = vpack.c.b16 %v2789, %v2787
        %v3240 = vpack.c.b16 %v2790, %v2788
        %v3241 = vpack.c.b16 %v2793, %v2791
        %v3242 = vpack.c.b16 %v2794, %v2792
        %v3243 = vpack.c.b16 %v2797, %v2795
        %v3244 = vpack.c.b16 %v2798, %v2796
        %v3245 = vpack.c.b16 %v2801, %v2799
        %v3246 = vpack.c.b16 %v2802, %v2800
        %v3247 = vpack.c.b16 %v2805, %v2803
        %v3248 = vpack.c.b16 %v2806, %v2804
        %v3249 = vpack.c.b16 %v2809, %v2807
        %v3250 = vpack.c.b16 %v2810, %v2808
        %v3251 = vpack.c.b16 %v2813, %v2811
        %v3252 = vpack.c.b16 %v2814, %v2812
        %v3253 = vpack.c.b16 %v2817, %v2815
        %v3254 = vpack.c.b16 %v2818, %v2816
        %v3255 = vpack.c.b16 %v2821, %v2819
        %v3256 = vpack.c.b16 %v2822, %v2820
        %v3257 = vpack.c.b16 %v2825, %v2823
        %v3258 = vpack.c.b16 %v2826, %v2824
        %v3259 = vpack.c.b16 %v2829, %v2827
        %v3260 = vpack.c.b16 %v2830, %v2828
        %v3261 = vpack.c.b16 %v2833, %v2831
        %v3262 = vpack.c.b16 %v2834, %v2832
        %v3263 = vpack.c.b16 %v2837, %v2835
        %v3264 = vpack.c.b16 %v2838, %v2836
        %v3265 = vpack.c.b16 %v2841, %v2839
        %v3266 = vpack.c.b16 %v2842, %v2840
        %v3267 = vpack.c.b16 %v2845, %v2843
        %v3268 = vpack.c.b16 %v2846, %v2844
        %v3269 = vpack.c.b16 %v2849, %v2847
        %v3270 = vpack.c.b16 %v2850, %v2848
        %v3271 = vpack.c.b16 %v2853, %v2851
        %v3272 = vpack.c.b16 %v2854, %v2852
        %v3273 = vpack.c.b16 %v2857, %v2855
        %v3274 = vpack.c.b16 %v2858, %v2856
        %v3275 = vpack.c.b16 %v2861, %v2859
        %v3276 = vpack.c.b16 %v2862, %v2860
        %v3277 = vpack.c.b16 %v2865, %v2863
        %v3278 = vpack.c.b16 %v2866, %v2864
        %v3279 = vpack.c.b16 %v2869, %v2867
        %v3280 = vpack.c.b16 %v2870, %v2868
        %v3281 = vpack.c.b16 %v2873, %v2871
        %v3282 = vpack.c.b16 %v2874, %v2872
        %v3283 = vpack.c.b16 %v2877, %v2875
        %v3284 = vpack.c.b16 %v2878, %v2876
        %v3285 = vpack.c.b16 %v2881, %v2879
        %v3286 = vpack.c.b16 %v2882, %v2880
        %v3287 = vpack.c.b16 %v2885, %v2883
        %v3288 = vpack.c.b16 %v2886, %v2884
        %v3289 = vpack.c.b16 %v2889, %v2887
        %v3290 = vpack.c.b16 %v2890, %v2888
        %3691 = vmatprep.subr.bf16.mxu0 %v2892
        %3692 = vmatpush1.bf16.msra.mxu0 %v2891
        %3693 = vmatprep.subr.bf16.mxu0 %v2894
        %3694 = vmatpush1.bf16.msra.mxu0 %v2893
        %3695 = vmatprep.subr.bf16.mxu0 %v2896
        %3696 = vmatpush1.bf16.msra.mxu0 %v2895
        %3697 = vmatprep.subr.bf16.mxu0 %v2898
        %3698 = vmatpush1.bf16.msra.mxu0 %v2897
        %3699 = vmatprep.subr.bf16.mxu0 %v2900
        %3700 = vmatpush1.bf16.msra.mxu0 %v2899
        %3701 = vmatprep.subr.bf16.mxu0 %v2902
        %3702 = vmatpush1.bf16.msra.mxu0 %v2901
        %3703 = vmatprep.subr.bf16.mxu0 %v2904
        %3704 = vmatpush1.bf16.msra.mxu0 %v2903
        %3705 = vmatprep.subr.bf16.mxu0 %v2906
        %3706 = vmatpush1.bf16.msra.mxu0 %v2905
        %3707 = vmatprep.subr.bf16.mxu0 %v2908
        %3708 = vmatpush1.bf16.msra.mxu0 %v2907
        %3709 = vmatprep.subr.bf16.mxu0 %v2910
        %3710 = vmatpush1.bf16.msra.mxu0 %v2909
        %3711 = vmatprep.subr.bf16.mxu0 %v2912
        %3712 = vmatpush1.bf16.msra.mxu0 %v2911
        %3713 = vmatprep.subr.bf16.mxu0 %v2914
        %3714 = vmatpush1.bf16.msra.mxu0 %v2913
        %3715 = vmatprep.subr.bf16.mxu0 %v2916
        %3716 = vmatpush1.bf16.msra.mxu0 %v2915
        %3717 = vmatprep.subr.bf16.mxu0 %v2918
        %3718 = vmatpush1.bf16.msra.mxu0 %v2917
        %3719 = vmatprep.subr.bf16.mxu0 %v2920
        %3720 = vmatpush1.bf16.msra.mxu0 %v2919
        %3721 = vmatprep.subr.bf16.mxu0 %v2922
        %3722 = vmatpush1.bf16.msra.mxu0 %v2921
        %3723 = vmatprep.mubr.bf16.mxu0 %v1255
        %3724 = vmatmul.mubr.bf16.gmra.mrb[0].mxu0 %v1254
        %v3725 = vpop.f32.mrb[0].mxu0
        %v3726 = vadd.f32 %v1684, %v3725
        %v3727 = vpop.f32.mrb[0].mxu0
        %v3728 = vadd.f32 %v1688, %v3727
        %v3729 = vpop.f32.mrb[0].mxu0
        %v3730 = vpop.f32.mrb[0].mxu0
        %3731 = vdwg.mxu0
        %3732 = vmatprep.subr.bf16.mxu0 %v2924
        %3733 = vmatpush1.bf16.msra.mxu0 %v2923
        %3734 = vmatprep.subr.bf16.mxu0 %v2926
        %3735 = vmatpush1.bf16.msra.mxu0 %v2925
        %3736 = vmatprep.subr.bf16.mxu0 %v2928
        %3737 = vmatpush1.bf16.msra.mxu0 %v2927
        %3738 = vmatprep.subr.bf16.mxu0 %v2930
        %3739 = vmatpush1.bf16.msra.mxu0 %v2929
        %3740 = vmatprep.subr.bf16.mxu0 %v2932
        %3741 = vmatpush1.bf16.msra.mxu0 %v2931
        %3742 = vmatprep.subr.bf16.mxu0 %v2934
        %3743 = vmatpush1.bf16.msra.mxu0 %v2933
        %3744 = vmatprep.subr.bf16.mxu0 %v2936
        %3745 = vmatpush1.bf16.msra.mxu0 %v2935
        %3746 = vmatprep.subr.bf16.mxu0 %v2938
        %3747 = vmatpush1.bf16.msra.mxu0 %v2937
        %3748 = vmatprep.subr.bf16.mxu0 %v2940
        %3749 = vmatpush1.bf16.msra.mxu0 %v2939
        %3750 = vmatprep.subr.bf16.mxu0 %v2942
        %3751 = vmatpush1.bf16.msra.mxu0 %v2941
        %3752 = vmatprep.subr.bf16.mxu0 %v2944
        %3753 = vmatpush1.bf16.msra.mxu0 %v2943
        %3754 = vmatprep.subr.bf16.mxu0 %v2946
        %3755 = vmatpush1.bf16.msra.mxu0 %v2945
        %3756 = vmatprep.subr.bf16.mxu0 %v2948
        %3757 = vmatpush1.bf16.msra.mxu0 %v2947
        %3758 = vmatprep.subr.bf16.mxu0 %v2950
        %3759 = vmatpush1.bf16.msra.mxu0 %v2949
        %3760 = vmatprep.subr.bf16.mxu0 %v2952
        %3761 = vmatpush1.bf16.msra.mxu0 %v2951
        %3762 = vmatprep.subr.bf16.mxu0 %v2954
        %3763 = vmatpush1.bf16.msra.mxu0 %v2953
        %3764 = vmatprep.mubr.bf16.mxu0 %v1257
        %3765 = vmatmul.mubr.bf16.gmra.mrb[0].mxu0 %v1256
        %v3766 = vpop.f32.mrb[0].mxu0
        %v3767 = vadd.f32 %v3726, %v3766
        %v3768 = vpop.f32.mrb[0].mxu0
        %v3769 = vadd.f32 %v3728, %v3768
        %v3770 = vpop.f32.mrb[0].mxu0
        %v3771 = vpop.f32.mrb[0].mxu0
        %3772 = vdwg.mxu0
        %3773 = vmatprep.subr.bf16.mxu0 %v2956
        %3774 = vmatpush1.bf16.msra.mxu0 %v2955
        %3775 = vmatprep.subr.bf16.mxu0 %v2958
        %3776 = vmatpush1.bf16.msra.mxu0 %v2957
        %3777 = vmatprep.subr.bf16.mxu0 %v2960
        %3778 = vmatpush1.bf16.msra.mxu0 %v2959
        %3779 = vmatprep.subr.bf16.mxu0 %v2962
        %3780 = vmatpush1.bf16.msra.mxu0 %v2961
        %3781 = vmatprep.subr.bf16.mxu0 %v2964
        %3782 = vmatpush1.bf16.msra.mxu0 %v2963
        %3783 = vmatprep.subr.bf16.mxu0 %v2966
        %3784 = vmatpush1.bf16.msra.mxu0 %v2965
        %3785 = vmatprep.subr.bf16.mxu0 %v2968
        %3786 = vmatpush1.bf16.msra.mxu0 %v2967
        %3787 = vmatprep.subr.bf16.mxu0 %v2970
        %3788 = vmatpush1.bf16.msra.mxu0 %v2969
        %3789 = vmatprep.subr.bf16.mxu0 %v2972
        %3790 = vmatpush1.bf16.msra.mxu0 %v2971
        %3791 = vmatprep.subr.bf16.mxu0 %v2974
        %3792 = vmatpush1.bf16.msra.mxu0 %v2973
        %3793 = vmatprep.subr.bf16.mxu0 %v2976
        %3794 = vmatpush1.bf16.msra.mxu0 %v2975
        %3795 = vmatprep.subr.bf16.mxu0 %v2978
        %3796 = vmatpush1.bf16.msra.mxu0 %v2977
        %3797 = vmatprep.subr.bf16.mxu0 %v2980
        %3798 = vmatpush1.bf16.msra.mxu0 %v2979
        %3799 = vmatprep.subr.bf16.mxu0 %v2982
        %3800 = vmatpush1.bf16.msra.mxu0 %v2981
        %3801 = vmatprep.subr.bf16.mxu0 %v2984
        %3802 = vmatpush1.bf16.msra.mxu0 %v2983
        %3803 = vmatprep.subr.bf16.mxu0 %v2986
        %3804 = vmatpush1.bf16.msra.mxu0 %v2985
        %3805 = vmatprep.mubr.bf16.mxu0 %v1259
        %3806 = vmatmul.mubr.bf16.gmra.mrb[0].mxu0 %v1258
        %v3807 = vpop.f32.mrb[0].mxu0
        %v3808 = vadd.f32 %v3767, %v3807
        %v3809 = vpop.f32.mrb[0].mxu0
        %v3810 = vadd.f32 %v3769, %v3809
        %v3811 = vpop.f32.mrb[0].mxu0
        %v3812 = vpop.f32.mrb[0].mxu0
        %3813 = vdwg.mxu0
        %3814 = vmatprep.subr.bf16.mxu0 %v2988
        %3815 = vmatpush1.bf16.msra.mxu0 %v2987
        %3816 = vmatprep.subr.bf16.mxu0 %v2990
        %3817 = vmatpush1.bf16.msra.mxu0 %v2989
        %3818 = vmatprep.subr.bf16.mxu0 %v2992
        %3819 = vmatpush1.bf16.msra.mxu0 %v2991
        %3820 = vmatprep.subr.bf16.mxu0 %v2994
        %3821 = vmatpush1.bf16.msra.mxu0 %v2993
        %3822 = vmatprep.subr.bf16.mxu0 %v2996
        %3823 = vmatpush1.bf16.msra.mxu0 %v2995
        %3824 = vmatprep.subr.bf16.mxu0 %v2998
        %3825 = vmatpush1.bf16.msra.mxu0 %v2997
        %3826 = vmatprep.subr.bf16.mxu0 %v3000
        %3827 = vmatpush1.bf16.msra.mxu0 %v2999
        %3828 = vmatprep.subr.bf16.mxu0 %v3002
        %3829 = vmatpush1.bf16.msra.mxu0 %v3001
        %3830 = vmatprep.subr.bf16.mxu0 %v3004
        %3831 = vmatpush1.bf16.msra.mxu0 %v3003
        %3832 = vmatprep.subr.bf16.mxu0 %v3006
        %3833 = vmatpush1.bf16.msra.mxu0 %v3005
        %3834 = vmatprep.subr.bf16.mxu0 %v3008
        %3835 = vmatpush1.bf16.msra.mxu0 %v3007
        %3836 = vmatprep.subr.bf16.mxu0 %v3010
        %3837 = vmatpush1.bf16.msra.mxu0 %v3009
        %3838 = vmatprep.subr.bf16.mxu0 %v3012
        %3839 = vmatpush1.bf16.msra.mxu0 %v3011
        %3840 = vmatprep.subr.bf16.mxu0 %v3014
        %3841 = vmatpush1.bf16.msra.mxu0 %v3013
        %3842 = vmatprep.subr.bf16.mxu0 %v3016
        %3843 = vmatpush1.bf16.msra.mxu0 %v3015
        %3844 = vmatprep.subr.bf16.mxu0 %v3018
        %3845 = vmatpush1.bf16.msra.mxu0 %v3017
        %3846 = vmatprep.mubr.bf16.mxu0 %v1261
        %3847 = vmatmul.mubr.bf16.gmra.mrb[0].mxu0 %v1260
        %v3848 = vpop.f32.mrb[0].mxu0
        %v3849 = vadd.f32 %v3808, %v3848
        %v3850 = vpop.f32.mrb[0].mxu0
        %v3851 = vadd.f32 %v3810, %v3850
        %v3852 = vpop.f32.mrb[0].mxu0
        %v3853 = vpop.f32.mrb[0].mxu0
        %3854 = vdwg.mxu0
        %3855 = vmatprep.subr.bf16.mxu0 %v3020
        %3856 = vmatpush1.bf16.msra.mxu0 %v3019
        %3857 = vmatprep.subr.bf16.mxu0 %v3022
        %3858 = vmatpush1.bf16.msra.mxu0 %v3021
        %3859 = vmatprep.subr.bf16.mxu0 %v3024
        %3860 = vmatpush1.bf16.msra.mxu0 %v3023
        %3861 = vmatprep.subr.bf16.mxu0 %v3026
        %3862 = vmatpush1.bf16.msra.mxu0 %v3025
        %3863 = vmatprep.subr.bf16.mxu0 %v3028
        %3864 = vmatpush1.bf16.msra.mxu0 %v3027
        %3865 = vmatprep.subr.bf16.mxu0 %v3030
        %3866 = vmatpush1.bf16.msra.mxu0 %v3029
        %3867 = vmatprep.subr.bf16.mxu0 %v3032
        %3868 = vmatpush1.bf16.msra.mxu0 %v3031
        %3869 = vmatprep.subr.bf16.mxu0 %v3034
        %3870 = vmatpush1.bf16.msra.mxu0 %v3033
        %3871 = vmatprep.subr.bf16.mxu0 %v3036
        %3872 = vmatpush1.bf16.msra.mxu0 %v3035
        %3873 = vmatprep.subr.bf16.mxu0 %v3038
        %3874 = vmatpush1.bf16.msra.mxu0 %v3037
        %3875 = vmatprep.subr.bf16.mxu0 %v3040
        %3876 = vmatpush1.bf16.msra.mxu0 %v3039
        %3877 = vmatprep.subr.bf16.mxu0 %v3042
        %3878 = vmatpush1.bf16.msra.mxu0 %v3041
        %3879 = vmatprep.subr.bf16.mxu0 %v3044
        %3880 = vmatpush1.bf16.msra.mxu0 %v3043
        %3881 = vmatprep.subr.bf16.mxu0 %v3046
        %3882 = vmatpush1.bf16.msra.mxu0 %v3045
        %3883 = vmatprep.subr.bf16.mxu0 %v3048
        %3884 = vmatpush1.bf16.msra.mxu0 %v3047
        %3885 = vmatprep.subr.bf16.mxu0 %v3050
        %3886 = vmatpush1.bf16.msra.mxu0 %v3049
        %3887 = vmatprep.mubr.bf16.mxu0 %v1263
        %3888 = vmatmul.mubr.bf16.gmra.mrb[0].mxu0 %v1262
        %v3889 = vpop.f32.mrb[0].mxu0
        %v3890 = vadd.f32 %v3849, %v3889
        %v3891 = vpop.f32.mrb[0].mxu0
        %v3892 = vadd.f32 %v3851, %v3891
        %v3893 = vpop.f32.mrb[0].mxu0
        %v3894 = vpop.f32.mrb[0].mxu0
        %3895 = vdwg.mxu0
        %3896 = vmatprep.subr.bf16.mxu0 %v3052
        %3897 = vmatpush1.bf16.msra.mxu0 %v3051
        %3898 = vmatprep.subr.bf16.mxu0 %v3054
        %3899 = vmatpush1.bf16.msra.mxu0 %v3053
        %3900 = vmatprep.subr.bf16.mxu0 %v3056
        %3901 = vmatpush1.bf16.msra.mxu0 %v3055
        %3902 = vmatprep.subr.bf16.mxu0 %v3058
        %3903 = vmatpush1.bf16.msra.mxu0 %v3057
        %3904 = vmatprep.subr.bf16.mxu0 %v3060
        %3905 = vmatpush1.bf16.msra.mxu0 %v3059
        %3906 = vmatprep.subr.bf16.mxu0 %v3062
        %3907 = vmatpush1.bf16.msra.mxu0 %v3061
        %3908 = vmatprep.subr.bf16.mxu0 %v3064
        %3909 = vmatpush1.bf16.msra.mxu0 %v3063
        %3910 = vmatprep.subr.bf16.mxu0 %v3066
        %3911 = vmatpush1.bf16.msra.mxu0 %v3065
        %3912 = vmatprep.subr.bf16.mxu0 %v3068
        %3913 = vmatpush1.bf16.msra.mxu0 %v3067
        %3914 = vmatprep.subr.bf16.mxu0 %v3070
        %3915 = vmatpush1.bf16.msra.mxu0 %v3069
        %3916 = vmatprep.subr.bf16.mxu0 %v3072
        %3917 = vmatpush1.bf16.msra.mxu0 %v3071
        %3918 = vmatprep.subr.bf16.mxu0 %v3074
        %3919 = vmatpush1.bf16.msra.mxu0 %v3073
        %3920 = vmatprep.subr.bf16.mxu0 %v3076
        %3921 = vmatpush1.bf16.msra.mxu0 %v3075
        %3922 = vmatprep.subr.bf16.mxu0 %v3078
        %3923 = vmatpush1.bf16.msra.mxu0 %v3077
        %3924 = vmatprep.subr.bf16.mxu0 %v3080
        %3925 = vmatpush1.bf16.msra.mxu0 %v3079
        %3926 = vmatprep.subr.bf16.mxu0 %v3082
        %3927 = vmatpush1.bf16.msra.mxu0 %v3081
        %3928 = vmatprep.mubr.bf16.mxu0 %v1265
        %3929 = vmatmul.mubr.bf16.gmra.mrb[0].mxu0 %v1264
        %v3930 = vpop.f32.mrb[0].mxu0
        %v3931 = vadd.f32 %v3890, %v3930
        %v3932 = vpop.f32.mrb[0].mxu0
        %v3933 = vadd.f32 %v3892, %v3932
        %v3934 = vpop.f32.mrb[0].mxu0
        %v3935 = vpop.f32.mrb[0].mxu0
        %3936 = vdwg.mxu0
        %3937 = vmatprep.subr.bf16.mxu0 %v3084
        %3938 = vmatpush1.bf16.msra.mxu0 %v3083
        %3939 = vmatprep.subr.bf16.mxu0 %v3086
        %3940 = vmatpush1.bf16.msra.mxu0 %v3085
        %3941 = vmatprep.subr.bf16.mxu0 %v3088
        %3942 = vmatpush1.bf16.msra.mxu0 %v3087
        %3943 = vmatprep.subr.bf16.mxu0 %v3090
        %3944 = vmatpush1.bf16.msra.mxu0 %v3089
        %3945 = vmatprep.subr.bf16.mxu0 %v3092
        %3946 = vmatpush1.bf16.msra.mxu0 %v3091
        %3947 = vmatprep.subr.bf16.mxu0 %v3094
        %3948 = vmatpush1.bf16.msra.mxu0 %v3093
        %3949 = vmatprep.subr.bf16.mxu0 %v3096
        %3950 = vmatpush1.bf16.msra.mxu0 %v3095
        %3951 = vmatprep.subr.bf16.mxu0 %v3098
        %3952 = vmatpush1.bf16.msra.mxu0 %v3097
        %3953 = vmatprep.subr.bf16.mxu0 %v3100
        %3954 = vmatpush1.bf16.msra.mxu0 %v3099
        %3955 = vmatprep.subr.bf16.mxu0 %v3102
        %3956 = vmatpush1.bf16.msra.mxu0 %v3101
        %3957 = vmatprep.subr.bf16.mxu0 %v3104
        %3958 = vmatpush1.bf16.msra.mxu0 %v3103
        %3959 = vmatprep.subr.bf16.mxu0 %v3106
        %3960 = vmatpush1.bf16.msra.mxu0 %v3105
        %3961 = vmatprep.subr.bf16.mxu0 %v3108
        %3962 = vmatpush1.bf16.msra.mxu0 %v3107
        %3963 = vmatprep.subr.bf16.mxu0 %v3110
        %3964 = vmatpush1.bf16.msra.mxu0 %v3109
        %3965 = vmatprep.subr.bf16.mxu0 %v3112
        %3966 = vmatpush1.bf16.msra.mxu0 %v3111
        %3967 = vmatprep.subr.bf16.mxu0 %v3114
        %3968 = vmatpush1.bf16.msra.mxu0 %v3113
        %3969 = vmatprep.mubr.bf16.mxu0 %v1267
        %3970 = vmatmul.mubr.bf16.gmra.mrb[0].mxu0 %v1266
        %v3971 = vpop.f32.mrb[0].mxu0
        %v3972 = vadd.f32 %v3931, %v3971
        %v3973 = vpop.f32.mrb[0].mxu0
        %v3974 = vadd.f32 %v3933, %v3973
        %v3975 = vpop.f32.mrb[0].mxu0
        %v3976 = vpop.f32.mrb[0].mxu0
        %3977 = vdwg.mxu0
        %3978 = vmatprep.subr.bf16.mxu0 %v3116
        %3979 = vmatpush1.bf16.msra.mxu0 %v3115
        %3980 = vmatprep.subr.bf16.mxu0 %v3118
        %3981 = vmatpush1.bf16.msra.mxu0 %v3117
        %3982 = vmatprep.subr.bf16.mxu0 %v3120
        %3983 = vmatpush1.bf16.msra.mxu0 %v3119
        %3984 = vmatprep.subr.bf16.mxu0 %v3122
        %3985 = vmatpush1.bf16.msra.mxu0 %v3121
        %3986 = vmatprep.subr.bf16.mxu0 %v3124
        %3987 = vmatpush1.bf16.msra.mxu0 %v3123
        %3988 = vmatprep.subr.bf16.mxu0 %v3126
        %3989 = vmatpush1.bf16.msra.mxu0 %v3125
        %3990 = vmatprep.subr.bf16.mxu0 %v3128
        %3991 = vmatpush1.bf16.msra.mxu0 %v3127
        %3992 = vmatprep.subr.bf16.mxu0 %v3130
        %3993 = vmatpush1.bf16.msra.mxu0 %v3129
        %3994 = vmatprep.subr.bf16.mxu0 %v3132
        %3995 = vmatpush1.bf16.msra.mxu0 %v3131
        %3996 = vmatprep.subr.bf16.mxu0 %v3134
        %3997 = vmatpush1.bf16.msra.mxu0 %v3133
        %3998 = vmatprep.subr.bf16.mxu0 %v3136
        %3999 = vmatpush1.bf16.msra.mxu0 %v3135
        %4000 = vmatprep.subr.bf16.mxu0 %v3138
        %4001 = vmatpush1.bf16.msra.mxu0 %v3137
        %4002 = vmatprep.subr.bf16.mxu0 %v3140
        %4003 = vmatpush1.bf16.msra.mxu0 %v3139
        %4004 = vmatprep.subr.bf16.mxu0 %v3142
        %4005 = vmatpush1.bf16.msra.mxu0 %v3141
        %4006 = vmatprep.subr.bf16.mxu0 %v3144
        %4007 = vmatpush1.bf16.msra.mxu0 %v3143
        %4008 = vmatprep.subr.bf16.mxu0 %v3146
        %4009 = vmatpush1.bf16.msra.mxu0 %v3145
        %4010 = vmatprep.mubr.bf16.mxu0 %v1269
        %4011 = vmatmul.mubr.bf16.gmra.mrb[0].mxu0 %v1268
        %v4012 = vpop.f32.mrb[0].mxu0
        %v4013 = vadd.f32 %v3972, %v4012
        %v4014 = vpop.f32.mrb[0].mxu0
        %v4015 = vadd.f32 %v3974, %v4014
        %v4016 = vpop.f32.mrb[0].mxu0
        %v4017 = vpop.f32.mrb[0].mxu0
        %4018 = vdwg.mxu0
        %4019 = vmatprep.subr.bf16.mxu0 %v3148
        %4020 = vmatpush1.bf16.msra.mxu0 %v3147
        %4021 = vmatprep.subr.bf16.mxu0 %v3150
        %4022 = vmatpush1.bf16.msra.mxu0 %v3149
        %4023 = vmatprep.subr.bf16.mxu0 %v3152
        %4024 = vmatpush1.bf16.msra.mxu0 %v3151
        %4025 = vmatprep.subr.bf16.mxu0 %v3154
        %4026 = vmatpush1.bf16.msra.mxu0 %v3153
        %4027 = vmatprep.subr.bf16.mxu0 %v3156
        %4028 = vmatpush1.bf16.msra.mxu0 %v3155
        %4029 = vmatprep.subr.bf16.mxu0 %v3158
        %4030 = vmatpush1.bf16.msra.mxu0 %v3157
        %4031 = vmatprep.subr.bf16.mxu0 %v3160
        %4032 = vmatpush1.bf16.msra.mxu0 %v3159
        %4033 = vmatprep.subr.bf16.mxu0 %v3162
        %4034 = vmatpush1.bf16.msra.mxu0 %v3161
        %4035 = vmatprep.subr.bf16.mxu0 %v3164
        %4036 = vmatpush1.bf16.msra.mxu0 %v3163
        %4037 = vmatprep.subr.bf16.mxu0 %v3166
        %4038 = vmatpush1.bf16.msra.mxu0 %v3165
        %4039 = vmatprep.subr.bf16.mxu0 %v3168
        %4040 = vmatpush1.bf16.msra.mxu0 %v3167
        %4041 = vmatprep.subr.bf16.mxu0 %v3170
        %4042 = vmatpush1.bf16.msra.mxu0 %v3169
        %4043 = vmatprep.subr.bf16.mxu0 %v3172
        %4044 = vmatpush1.bf16.msra.mxu0 %v3171
        %4045 = vmatprep.subr.bf16.mxu0 %v3174
        %4046 = vmatpush1.bf16.msra.mxu0 %v3173
        %4047 = vmatprep.subr.bf16.mxu0 %v3176
        %4048 = vmatpush1.bf16.msra.mxu0 %v3175
        %4049 = vmatprep.subr.bf16.mxu0 %v3178
        %4050 = vmatpush1.bf16.msra.mxu0 %v3177
        %4051 = vmatprep.mubr.bf16.mxu0 %v1271
        %4052 = vmatmul.mubr.bf16.gmra.mrb[0].mxu0 %v1270
        %v4053 = vpop.f32.mrb[0].mxu0
        %v4054 = vadd.f32 %v4013, %v4053
        %v4055 = vpop.f32.mrb[0].mxu0
        %v4056 = vadd.f32 %v4015, %v4055
        %v4057 = vpop.f32.mrb[0].mxu0
        %v4058 = vpop.f32.mrb[0].mxu0
        %4059 = vdwg.mxu0
        %4060 = vmatprep.subr.bf16.mxu0 %v3180
        %4061 = vmatpush1.bf16.msra.mxu0 %v3179
        %4062 = vmatprep.subr.bf16.mxu0 %v3182
        %4063 = vmatpush1.bf16.msra.mxu0 %v3181
        %4064 = vmatprep.subr.bf16.mxu0 %v3184
        %4065 = vmatpush1.bf16.msra.mxu0 %v3183
        %4066 = vmatprep.subr.bf16.mxu0 %v3186
        %4067 = vmatpush1.bf16.msra.mxu0 %v3185
        %4068 = vmatprep.subr.bf16.mxu0 %v3188
        %4069 = vmatpush1.bf16.msra.mxu0 %v3187
        %4070 = vmatprep.subr.bf16.mxu0 %v3190
        %4071 = vmatpush1.bf16.msra.mxu0 %v3189
        %4072 = vmatprep.subr.bf16.mxu0 %v3192
        %4073 = vmatpush1.bf16.msra.mxu0 %v3191
        %4074 = vmatprep.subr.bf16.mxu0 %v3194
        %4075 = vmatpush1.bf16.msra.mxu0 %v3193
        %4076 = vmatprep.subr.bf16.mxu0 %v3196
        %4077 = vmatpush1.bf16.msra.mxu0 %v3195
        %4078 = vmatprep.subr.bf16.mxu0 %v3198
        %4079 = vmatpush1.bf16.msra.mxu0 %v3197
        %4080 = vmatprep.subr.bf16.mxu0 %v3200
        %4081 = vmatpush1.bf16.msra.mxu0 %v3199
        %4082 = vmatprep.subr.bf16.mxu0 %v3202
        %4083 = vmatpush1.bf16.msra.mxu0 %v3201
        %4084 = vmatprep.subr.bf16.mxu0 %v3204
        %4085 = vmatpush1.bf16.msra.mxu0 %v3203
        %4086 = vmatprep.subr.bf16.mxu0 %v3206
        %4087 = vmatpush1.bf16.msra.mxu0 %v3205
        %4088 = vmatprep.subr.bf16.mxu0 %v3208
        %4089 = vmatpush1.bf16.msra.mxu0 %v3207
        %4090 = vmatprep.subr.bf16.mxu0 %v3210
        %4091 = vmatpush1.bf16.msra.mxu0 %v3209
        %4092 = vmatprep.mubr.bf16.mxu0 %v1273
        %4093 = vmatmul.mubr.bf16.gmra.mrb[0].mxu0 %v1272
        %v4094 = vpop.f32.mrb[0].mxu0
        %v4095 = vadd.f32 %v4054, %v4094
        %v4096 = vpop.f32.mrb[0].mxu0
        %v4097 = vadd.f32 %v4056, %v4096
        %v4098 = vpop.f32.mrb[0].mxu0
        %v4099 = vpop.f32.mrb[0].mxu0
        %4100 = vdwg.mxu0
        %4101 = vmatprep.subr.bf16.mxu0 %v3212
        %4102 = vmatpush1.bf16.msra.mxu0 %v3211
        %4103 = vmatprep.subr.bf16.mxu0 %v3214
        %4104 = vmatpush1.bf16.msra.mxu0 %v3213
        %4105 = vmatprep.subr.bf16.mxu0 %v3216
        %4106 = vmatpush1.bf16.msra.mxu0 %v3215
        %4107 = vmatprep.subr.bf16.mxu0 %v3218
        %4108 = vmatpush1.bf16.msra.mxu0 %v3217
        %4109 = vmatprep.subr.bf16.mxu0 %v3220
        %4110 = vmatpush1.bf16.msra.mxu0 %v3219
        %4111 = vmatprep.subr.bf16.mxu0 %v3222
        %4112 = vmatpush1.bf16.msra.mxu0 %v3221
        %4113 = vmatprep.subr.bf16.mxu0 %v3224
        %4114 = vmatpush1.bf16.msra.mxu0 %v3223
        %4115 = vmatprep.subr.bf16.mxu0 %v3226
        %4116 = vmatpush1.bf16.msra.mxu0 %v3225
        %4117 = vmatprep.subr.bf16.mxu0 %v3228
        %4118 = vmatpush1.bf16.msra.mxu0 %v3227
        %4119 = vmatprep.subr.bf16.mxu0 %v3230
        %4120 = vmatpush1.bf16.msra.mxu0 %v3229
        %4121 = vmatprep.subr.bf16.mxu0 %v3232
        %4122 = vmatpush1.bf16.msra.mxu0 %v3231
        %4123 = vmatprep.subr.bf16.mxu0 %v3234
        %4124 = vmatpush1.bf16.msra.mxu0 %v3233
        %4125 = vmatprep.subr.bf16.mxu0 %v3236
        %4126 = vmatpush1.bf16.msra.mxu0 %v3235
        %4127 = vmatprep.subr.bf16.mxu0 %v3238
        %4128 = vmatpush1.bf16.msra.mxu0 %v3237
        %4129 = vmatprep.subr.bf16.mxu0 %v3240
        %4130 = vmatpush1.bf16.msra.mxu0 %v3239
        %4131 = vmatprep.subr.bf16.mxu0 %v3242
        %4132 = vmatpush1.bf16.msra.mxu0 %v3241
        %4133 = vmatprep.mubr.bf16.mxu0 %v1275
        %4134 = vmatmul.mubr.bf16.gmra.mrb[0].mxu0 %v1274
        %v4135 = vpop.f32.mrb[0].mxu0
        %v4136 = vadd.f32 %v4095, %v4135
        %v4137 = vpop.f32.mrb[0].mxu0
        %v4138 = vadd.f32 %v4097, %v4137
        %v4139 = vpop.f32.mrb[0].mxu0
        %v4140 = vpop.f32.mrb[0].mxu0
        %4141 = vdwg.mxu0
        %4142 = vmatprep.subr.bf16.mxu0 %v3244
        %4143 = vmatpush1.bf16.msra.mxu0 %v3243
        %4144 = vmatprep.subr.bf16.mxu0 %v3246
        %4145 = vmatpush1.bf16.msra.mxu0 %v3245
        %4146 = vmatprep.subr.bf16.mxu0 %v3248
        %4147 = vmatpush1.bf16.msra.mxu0 %v3247
        %4148 = vmatprep.subr.bf16.mxu0 %v3250
        %4149 = vmatpush1.bf16.msra.mxu0 %v3249
        %4150 = vmatprep.subr.bf16.mxu0 %v3252
        %4151 = vmatpush1.bf16.msra.mxu0 %v3251
        %4152 = vmatprep.subr.bf16.mxu0 %v3254
        %4153 = vmatpush1.bf16.msra.mxu0 %v3253
        %4154 = vmatprep.subr.bf16.mxu0 %v3256
        %4155 = vmatpush1.bf16.msra.mxu0 %v3255
        %4156 = vmatprep.subr.bf16.mxu0 %v3258
        %4157 = vmatpush1.bf16.msra.mxu0 %v3257
        %4158 = vmatprep.subr.bf16.mxu0 %v3260
        %4159 = vmatpush1.bf16.msra.mxu0 %v3259
        %4160 = vmatprep.subr.bf16.mxu0 %v3262
        %4161 = vmatpush1.bf16.msra.mxu0 %v3261
        %4162 = vmatprep.subr.bf16.mxu0 %v3264
        %4163 = vmatpush1.bf16.msra.mxu0 %v3263
        %4164 = vmatprep.subr.bf16.mxu0 %v3266
        %4165 = vmatpush1.bf16.msra.mxu0 %v3265
        %4166 = vmatprep.subr.bf16.mxu0 %v3268
        %4167 = vmatpush1.bf16.msra.mxu0 %v3267
        %4168 = vmatprep.subr.bf16.mxu0 %v3270
        %4169 = vmatpush1.bf16.msra.mxu0 %v3269
        %4170 = vmatprep.subr.bf16.mxu0 %v3272
        %4171 = vmatpush1.bf16.msra.mxu0 %v3271
        %4172 = vmatprep.subr.bf16.mxu0 %v3274
        %4173 = vmatpush1.bf16.msra.mxu0 %v3273
        %4174 = vmatprep.mubr.bf16.mxu0 %v1277
        %4175 = vmatmul.mubr.bf16.gmra.mrb[0].mxu0 %v1276
        %v4176 = vpop.f32.mrb[0].mxu0
        %v4177 = vadd.f32 %v4136, %v4176
        %v4178 = vpop.f32.mrb[0].mxu0
        %v4179 = vadd.f32 %v4138, %v4178
        %v4180 = vpop.f32.mrb[0].mxu0
        %v4181 = vpop.f32.mrb[0].mxu0
        %4182 = vdwg.mxu0
        %4183 = vmatprep.subr.bf16.mxu0 %v3276
        %4184 = vmatpush1.bf16.msra.mxu0 %v3275
        %4185 = vmatprep.subr.bf16.mxu0 %v3278
        %4186 = vmatpush1.bf16.msra.mxu0 %v3277
        %4187 = vmatprep.subr.bf16.mxu0 %v3280
        %4188 = vmatpush1.bf16.msra.mxu0 %v3279
        %4189 = vmatprep.subr.bf16.mxu0 %v3282
        %4190 = vmatpush1.bf16.msra.mxu0 %v3281
        %4191 = vmatprep.subr.bf16.mxu0 %v3284
        %4192 = vmatpush1.bf16.msra.mxu0 %v3283
        %4193 = vmatprep.subr.bf16.mxu0 %v3286
        %4194 = vmatpush1.bf16.msra.mxu0 %v3285
        %4195 = vmatprep.subr.bf16.mxu0 %v3288
        %4196 = vmatpush1.bf16.msra.mxu0 %v3287
        %4197 = vmatprep.subr.bf16.mxu0 %v3290
        %4198 = vmatpush1.bf16.msra.mxu0 %v3289
        %4199 = vmatprep.subr.bf16.mxu0 0
        %4200 = vmatpush1.bf16.msra.mxu0 0
        %4201 = vmatprep.subr.bf16.mxu0 0
        %4202 = vmatpush1.bf16.msra.mxu0 0
        %4203 = vmatprep.subr.bf16.mxu0 0
        %4204 = vmatpush1.bf16.msra.mxu0 0
        %4205 = vmatprep.subr.bf16.mxu0 0
        %4206 = vmatpush1.bf16.msra.mxu0 0
        %4207 = vmatprep.subr.bf16.mxu0 0
        %4208 = vmatpush1.bf16.msra.mxu0 0
        %4209 = vmatprep.subr.bf16.mxu0 0
        %4210 = vmatpush1.bf16.msra.mxu0 0
        %4211 = vmatprep.subr.bf16.mxu0 0
        %4212 = vmatpush1.bf16.msra.mxu0 0
        %4213 = vmatprep.subr.bf16.mxu0 0
        %4214 = vmatpush1.bf16.msra.mxu0 0
        %4215 = vmatprep.mubr.bf16.mxu0 0
        %4216 = vmatmul.mubr.bf16.gmra.mrb[0].mxu0 %v1278
        %v4217 = vpop.f32.mrb[0].mxu0
        %v4218 = vadd.f32 %v4177, %v4217
        %v4219 = vpop.f32.mrb[0].mxu0
        %v4220 = vadd.f32 %v4179, %v4219
        %v4221 = vpop.f32.mrb[0].mxu0
        %v4222 = vpop.f32.mrb[0].mxu0
        %4223 = vdwg.mxu0
        %v4224 = vmax.f32 %v4218, 0.0
        %v4225 = vmax.f32 %v4220, 0.0
        %v4226 = vpack.c.bf16 %v4224, %v4224
        %v4227 = vpack.c.bf16 %v4225, %v4225
        %v4228 = vld [vmem:[%s436] sm:$0xf]
        %v4229 = vld [vmem:[%s436 + $0x4] sm:$0xf]
        %v4230 = vld [vmem:[%s436 + $0x8] sm:$0xf]
        %v4231 = vld [vmem:[%s436 + $0xc] sm:$0xf]
        %v4232 = vld [vmem:[%s436 + $0x10] sm:$0xf]
        %v4233 = vld [vmem:[%s436 + $0x14] sm:$0xf]
        %v4234 = vld [vmem:[%s436 + $0x18] sm:$0xf]
        %v4235 = vld [vmem:[%s436 + $0x1c] sm:$0xf]
        %v4236 = vld [vmem:[%s436 + $0x20] sm:$0xf]
        %v4237 = vld [vmem:[%s436 + $0x24] sm:$0xf]
        %v4238 = vld [vmem:[%s436 + $0x28] sm:$0xf]
        %v4239 = vld [vmem:[%s436 + $0x2c] sm:$0xf]
        %v4240 = vld [vmem:[%s436 + $0x30] sm:$0xf]
        %v4241 = vld [vmem:[%s436 + $0x34] sm:$0xf]
        %v4242 = vld [vmem:[%s436 + $0x38] sm:$0xf]
        %v4243 = vld [vmem:[%s436 + $0x3c] sm:$0xf]
        %v4244 = vld [vmem:[%s436 + $0x40] sm:$0xf]
        %v4245 = vld [vmem:[%s436 + $0x44] sm:$0xf]
        %v4246 = vld [vmem:[%s436 + $0x48] sm:$0xf]
        %v4247 = vld [vmem:[%s436 + $0x4c] sm:$0xf]
        %v4248 = vld [vmem:[%s436 + $0x50] sm:$0xf]
        %v4249 = vld [vmem:[%s436 + $0x54] sm:$0xf]
        %v4250 = vld [vmem:[%s436 + $0x58] sm:$0xf]
        %v4251 = vld [vmem:[%s436 + $0x5c] sm:$0xf]
        %v4252 = vld [vmem:[%s436 + $0x60] sm:$0xf]
        %v4253 = vld [vmem:[%s436 + $0x64] sm:$0xf]
        %v4254 = vld [vmem:[%s436 + $0x68] sm:$0xf]
        %v4255 = vld [vmem:[%s436 + $0x6c] sm:$0xf]
        %v4256 = vld [vmem:[%s436 + $0x70] sm:$0xf]
        %v4257 = vld [vmem:[%s436 + $0x74] sm:$0xf]
        %v4258 = vld [vmem:[%s436 + $0x78] sm:$0xf]
        %v4259 = vld [vmem:[%s436 + $0x7c] sm:$0xf]
        %v4292 = vunpack.c.l.b16 %v4228
        %v4293 = vunpack.c.l.b16 %v4229
        %v4294 = vunpack.c.l.b16 %v4230
        %v4295 = vunpack.c.l.b16 %v4231
        %v4296 = vunpack.c.l.b16 %v4232
        %v4297 = vunpack.c.l.b16 %v4233
        %v4298 = vunpack.c.l.b16 %v4234
        %v4299 = vunpack.c.l.b16 %v4235
        %v4300 = vunpack.c.l.b16 %v4236
        %v4301 = vunpack.c.l.b16 %v4237
        %v4302 = vunpack.c.l.b16 %v4238
        %v4303 = vunpack.c.l.b16 %v4239
        %v4304 = vunpack.c.l.b16 %v4240
        %v4305 = vunpack.c.l.b16 %v4241
        %v4306 = vunpack.c.l.b16 %v4242
        %v4307 = vunpack.c.l.b16 %v4243
        %v4308 = vunpack.c.l.b16 %v4244
        %v4309 = vunpack.c.l.b16 %v4245
        %v4310 = vunpack.c.l.b16 %v4246
        %v4311 = vunpack.c.l.b16 %v4247
        %v4312 = vunpack.c.l.b16 %v4248
        %v4313 = vunpack.c.l.b16 %v4249
        %v4314 = vunpack.c.l.b16 %v4250
        %v4315 = vunpack.c.l.b16 %v4251
        %v4316 = vunpack.c.l.b16 %v4252
        %v4317 = vunpack.c.l.b16 %v4253
        %v4318 = vunpack.c.l.b16 %v4254
        %v4319 = vunpack.c.l.b16 %v4255
        %v4320 = vunpack.c.l.b16 %v4256
        %v4321 = vunpack.c.l.b16 %v4257
        %v4322 = vunpack.c.l.b16 %v4258
        %v4323 = vunpack.c.l.b16 %v4259
        %v4324 = vpack.c.b16 %v4293, %v4292
        %v4325 = vpack.c.b16 %v4295, %v4294
        %v4326 = vpack.c.b16 %v4297, %v4296
        %v4327 = vpack.c.b16 %v4299, %v4298
        %v4328 = vpack.c.b16 %v4301, %v4300
        %v4329 = vpack.c.b16 %v4303, %v4302
        %v4330 = vpack.c.b16 %v4305, %v4304
        %v4331 = vpack.c.b16 %v4307, %v4306
        %v4332 = vpack.c.b16 %v4309, %v4308
        %v4333 = vpack.c.b16 %v4311, %v4310
        %v4334 = vpack.c.b16 %v4313, %v4312
        %v4335 = vpack.c.b16 %v4315, %v4314
        %v4336 = vpack.c.b16 %v4317, %v4316
        %v4337 = vpack.c.b16 %v4319, %v4318
        %v4338 = vpack.c.b16 %v4321, %v4320
        %v4339 = vpack.c.b16 %v4323, %v4322
        %4356 = vmatprep.subr.bf16.mxu0 0
        %4357 = vmatpush1.bf16.msra.mxu0 %v4324
        %4358 = vmatprep.subr.bf16.mxu0 0
        %4359 = vmatpush1.bf16.msra.mxu0 %v4325
        %4360 = vmatprep.subr.bf16.mxu0 0
        %4361 = vmatpush1.bf16.msra.mxu0 %v4326
        %4362 = vmatprep.subr.bf16.mxu0 0
        %4363 = vmatpush1.bf16.msra.mxu0 %v4327
        %4364 = vmatprep.subr.bf16.mxu0 0
        %4365 = vmatpush1.bf16.msra.mxu0 %v4328
        %4366 = vmatprep.subr.bf16.mxu0 0
        %4367 = vmatpush1.bf16.msra.mxu0 %v4329
        %4368 = vmatprep.subr.bf16.mxu0 0
        %4369 = vmatpush1.bf16.msra.mxu0 %v4330
        %4370 = vmatprep.subr.bf16.mxu0 0
        %4371 = vmatpush1.bf16.msra.mxu0 %v4331
        %4372 = vmatprep.subr.bf16.mxu0 0
        %4373 = vmatpush1.bf16.msra.mxu0 %v4332
        %4374 = vmatprep.subr.bf16.mxu0 0
        %4375 = vmatpush1.bf16.msra.mxu0 %v4333
        %4376 = vmatprep.subr.bf16.mxu0 0
        %4377 = vmatpush1.bf16.msra.mxu0 %v4334
        %4378 = vmatprep.subr.bf16.mxu0 0
        %4379 = vmatpush1.bf16.msra.mxu0 %v4335
        %4380 = vmatprep.subr.bf16.mxu0 0
        %4381 = vmatpush1.bf16.msra.mxu0 %v4336
        %4382 = vmatprep.subr.bf16.mxu0 0
        %4383 = vmatpush1.bf16.msra.mxu0 %v4337
        %4384 = vmatprep.subr.bf16.mxu0 0
        %4385 = vmatpush1.bf16.msra.mxu0 %v4338
        %4386 = vmatprep.subr.bf16.mxu0 0
        %4387 = vmatpush1.bf16.msra.mxu0 %v4339
        %4388 = vmatprep.mubr.bf16.mxu0 %v4227
        %4389 = vmatmul.mubr.bf16.gmra.mrb[0].mxu0 %v4226
        %v4390 = vpop.f32.mrb[0].mxu0
        %v4391 = vadd.f32 0.0, %v4390
        %v4392 = vpop.f32.mrb[0].mxu0
        %v4393 = vpop.f32.mrb[0].mxu0
        %v4394 = vpop.f32.mrb[0].mxu0
        %4395 = vdwg.mxu0
        %4396 = vst [vmem:[%s484] sm:$0x3] %v4391
        %p4397 = scmp.eq.s32.totalorder %s26, 3
        // Predicated region
        $region89: #{tpu_custom_call.1} parent=55 // pred_check
          %p4398 = pneg %p4397
        $region90: #{tpu_custom_call.1} parent=55 // pred_check_branch
          %4400 = sbr.rel (%p4398) target = $region92
        $region91: #{tpu_custom_call.1} parent=55 // pred_region
          %v4401 = vld [vmem:[%s484] sm:$0x3]
          %v4402 = vld [vmem:[#allocation13] sm:$0x1]
          %v4404 = vlaneseq
          %v4405 = vshrl.u32 %v4404, 7
          %v4406 = vsub.s32 0, %v4405
          %v4407 = vrot.slane %v4402, %v4406
          %v4409 = vadd.f32 %v4401, %v4407
          %4410 = vst [vmem:[%s484] sm:$0x3] %v4409
        $region92: #{tpu_custom_call.1} parent=55 // pred_fallthru
          _
        %s4411 = sand.u32 %s238, 1
        %s4412 = scalar_lea.sflag [#allocation4], %s4411
        %s4413 = sand.u32 %s238, 1
        %s4414 = smul.addr %s4413, 2
        %s4415 = scalar_lea.vmem [#allocation14], %s4414
        // Predicated region
        $region93: #{tpu_custom_call.1} parent=55 // pred_check
          %p4416 = pneg %p248
        $region94: #{tpu_custom_call.1} parent=55 // pred_check_branch
          %4418 = sbr.rel (%p4416) target = $region96
        $region95: #{tpu_custom_call.1} parent=55 // pred_region
          %s4420 = ssub.s32 32, 32
          %4421 = vsyncadd %s4412, %s4420
          %s4422 = smul.addr %s26, 32
          %s4423 = scalar_lea.hbm %s9, %s4422
          %s4425 = sshll.u32 %s4415, 4
          %s4426 = int_to_ptr.vmem [resolvable:$true] %s4425
          %4428 = dma.vmem_to_hbm [thread:$0]  %s4426, 32, %s4423, %s4412
        $region96: #{tpu_custom_call.1} parent=55 // pred_fallthru
          _
      $region56: #{tpu_custom_call.1} parent=5 // pred_fallthru
        _
      %p4429 = scmp.le.s32.totalorder 2, %s21
      // Predicated region
      $region97: #{tpu_custom_call.1} parent=5 // pred_check
        %p4430 = pneg %p4429
      $region98: #{tpu_custom_call.1} parent=5 // pred_check_branch
        %4432 = sbr.rel (%p4430) target = $region100
      $region99: #{tpu_custom_call.1} parent=5 // pred_region
        %s4433 = ssub.s32 %s21, 2
        // Predicated region
        $region101: #{tpu_custom_call.1} parent=99 // pred_check
          %p4434 = pneg %p254
        $region102: #{tpu_custom_call.1} parent=99 // pred_check_branch
          %4436 = sbr.rel (%p4434) target = $region104
        $region103: #{tpu_custom_call.1} parent=99 // pred_region
          %s4437 = sand.u32 %s239, 1
          %s4438 = scalar_lea.sflag [#allocation4], %s4437
          %s4439 = sand.u32 %s239, 1
          %s4440 = smul.addr %s4439, 2
          %s4441 = scalar_lea.vmem [#allocation14], %s4440
          %4442 = dma.done %s4438, 32
        $region104: #{tpu_custom_call.1} parent=99 // pred_fallthru
          _
      $region100: #{tpu_custom_call.1} parent=5 // pred_fallthru
        _
    $region6: #{tpu_custom_call.1} parent=1 // loop_footer
      %s25 = sadd.s32 1, %s21
    $region7: #{tpu_custom_call.1} parent=1 // loop_footer_branch
      %20 = sbr.rel target = $region3
    $region8: #{tpu_custom_call.1} parent=1 // loop_exit
      _
    %4443 = vsyncpa [#allocation3], 1
    %s4444 = scalar_lea.sflag [#allocation3], 1
    %4445 = vsyncpa %s4444, 1
    %4446 = vsyncpa [#allocation6], 1
    %4447 = vsyncpa [#allocation9], 1
    %4448 = vsyncpa [#allocation4], 1
    %s4449 = scalar_lea.sflag [#allocation4], 1
    %4450 = vsyncpa %s4449, 1

</llo_original>
